<compile_context>
chip_gen: v5e
topology: v5e:2x2
jax: 0.10.0
libtpu: 0.0.40
codegen_flags: <defaults>
</compile_context>

<pallas_src>
import jax
import jax.numpy as jnp
from jax.experimental import pallas as pl
from jax.experimental.pallas import tpu as pltpu

# ---------------- synthetic tiny-BERT config ----------------
VOCAB = 50
MAX_POS = 16
TYPE_VOCAB = 2
HIDDEN = 32
NUM_HEADS = 4
HEAD_DIM = HIDDEN // NUM_HEADS
INTERMEDIATE = 64
NUM_LAYERS = 2
NUM_CLASSES = 3
NUM_SENTIMENT = 2
LN_EPS = 1e-12
HEAD_PAD = 128          # lane-dense padded width for the merged head output


def _ln(x, g, b):
    mu = jnp.mean(x, axis=-1, keepdims=True)
    var = jnp.mean((x - mu) * (x - mu), axis=-1, keepdims=True)
    return (x - mu) * jax.lax.rsqrt(var + LN_EPS) * g + b


# ---------------- the single fused kernel ----------------
def fused_forward_kernel(mask_ref, emb_ref, eg_ref, eb_ref,
                         wqh_ref, bqh_ref, wkh_ref, bkh_ref, wvh_ref, bvh_ref,
                         woh_ref, bo_ref, ln1g_ref, ln1b_ref,
                         w1_ref, b1_ref, w2_ref, b2_ref, ln2g_ref, ln2b_ref,
                         hw_ref, hb_ref, out_ref):
    B, S = mask_ref.shape
    L, NH, H, HD = wqh_ref.shape
    scale = 1.0 / (float(HD) ** 0.5)

    neg_bias = (1.0 - mask_ref[...]) * (-1e9)              # (B, S) additive key mask

    # embedding LayerNorm on the flattened (B*S, H) residual stream
    x = _ln(emb_ref[...], eg_ref[...], eb_ref[...])

    for li in range(L):                                     # static unroll over layers
        wq_l, bq_l = wqh_ref[li], bqh_ref[li]               # (NH,H,HD) / (NH,1,HD)
        wk_l, bk_l = wkh_ref[li], bkh_ref[li]
        wv_l, bv_l = wvh_ref[li], bvh_ref[li]
        wo_l, bo_l = woh_ref[li], bo_ref[li]                # (NH,HD,H) / (1,H)

        attn_rows = []
        for b in range(B):                                  # static unroll, B is tiny
            xb = x[b * S:(b + 1) * S, :]                    # (S,H) sublane-tile-aligned
            xb_h = jnp.broadcast_to(xb[None], (NH, S, H))   # hoisted broadcast (once)

            q = jnp.einsum('nsh,nhd->nsd', xb_h, wq_l,
                           preferred_element_type=jnp.float32) + bq_l
            k = jnp.einsum('nsh,nhd->nsd', xb_h, wk_l,
                           preferred_element_type=jnp.float32) + bk_l
            v = jnp.einsum('nsh,nhd->nsd', xb_h, wv_l,
                           preferred_element_type=jnp.float32) + bv_l

            sc = jnp.einsum('nqd,nkd->nqk', q, k,
                            preferred_element_type=jnp.float32) * scale
            sc = sc + neg_bias[b:b + 1, :][None]            # (1,1,S) -> (NH,S,S)
            sc = sc - jnp.max(sc, axis=-1, keepdims=True)
            p = jnp.exp(sc)
            p = p * pl.reciprocal(jnp.sum(p, axis=-1, keepdims=True), approx=True)
            ctx = jnp.einsum('nqk,nkd->nqd', p, v,
                             preferred_element_type=jnp.float32)   # (NH,S,HD)

            ab = jnp.broadcast_to(bo_l, (S, H))             # single broadcast of bias
            for h in range(NH):                             # leading-dim indexing only
                ab = ab + jnp.dot(ctx[h], wo_l[h],
                                  preferred_element_type=jnp.float32)
            attn_rows.append(ab)
        attn = jnp.concatenate(attn_rows, axis=0)           # (B*S, H)

        h1 = _ln(x + attn, ln1g_ref[li], ln1b_ref[li])

        ff = jnp.dot(h1, w1_ref[li],
                     preferred_element_type=jnp.float32) + b1_ref[li]
        # TODO(synk): HF BERT uses exact erf-GELU; erf has no guaranteed Mosaic
        # lowering, so the tanh approximation is used (tiny numerical delta).
        ff = jax.nn.gelu(ff, approximate=True)
        ff = jnp.dot(ff, w2_ref[li],
                     preferred_element_type=jnp.float32) + b2_ref[li]

        x = _ln(h1 + ff, ln2g_ref[li], ln2b_ref[li])

    # Merged (lane-padded) classification + sentiment heads.  Applying the linear
    # heads to every token row keeps the final store fully lane/sublane dense;
    # since the heads are linear (and dropout is identity in eval mode), the CLS
    # logits selected afterwards are identical to heads(pooled).
    out_ref[...] = jnp.dot(x, hw_ref[...],
                           preferred_element_type=jnp.float32) + hb_ref[...]


# ---------------- wrapper ----------------
def _full_spec(shape):
    nd = len(shape)
    return pl.BlockSpec(tuple(shape), lambda i, _nd=nd: (0,) * _nd)


@jax.jit
def multitask_forward(packed, input_ids, attention_mask):
    """Mirrors MultiTaskSentenceTransformer.forward -> (class_logits, sentiment_logits)."""
    B, S = input_ids.shape
    # Embedding gathers are plain-JAX glue; token_type_ids are implicitly all
    # zeros (same as HF BERT's default when they are not provided).
    emb = (packed["word_emb"][input_ids]
           + packed["pos_emb"][None, :S, :]
           + packed["type_emb"][0][None, None, :])
    emb2d = emb.reshape(B * S, HIDDEN)
    mask_f = attention_mask.astype(jnp.float32)

    args = (mask_f, emb2d, packed["emb_ln_g"], packed["emb_ln_b"],
            packed["wqh"], packed["bqh"], packed["wkh"], packed["bkh"],
            packed["wvh"], packed["bvh"], packed["woh"], packed["bo"],
            packed["ln1_g"], packed["ln1_b"], packed["w1"], packed["b1"],
            packed["w2"], packed["b2"], packed["ln2_g"], packed["ln2_b"],
            packed["head_w"], packed["head_b"])

    logits_all = pl.pallas_call(
        fused_forward_kernel,
        out_shape=jax.ShapeDtypeStruct((B * S, HEAD_PAD), jnp.float32),
        grid=(1,),
        in_specs=[_full_spec(a.shape) for a in args],
        out_specs=pl.BlockSpec((B * S, HEAD_PAD), lambda i: (0, 0)),
        compiler_params=pltpu.CompilerParams(dimension_semantics=("arbitrary",)),
    )(*args)

    cls_rows = logits_all.reshape(B, S, HEAD_PAD)[:, 0, :]   # [CLS] token rows
    class_logits = cls_rows[:, :NUM_CLASSES]
    sentiment_logits = cls_rows[:, NUM_CLASSES:NUM_CLASSES + NUM_SENTIMENT]
    return class_logits, sentiment_logits


# ---------------- parameter init (deterministic, synthetic) ----------------
def init_params(key):
    ks = jax.random.split(key, 8 + NUM_LAYERS)

    def dense(k, fan_in, fan_out):
        return 0.02 * jax.random.normal(k, (fan_in, fan_out), jnp.float32)

    params = {
        "word_emb": 0.02 * jax.random.normal(ks[0], (VOCAB, HIDDEN), jnp.float32),
        "pos_emb": 0.02 * jax.random.normal(ks[1], (MAX_POS, HIDDEN), jnp.float32),
        "type_emb": 0.02 * jax.random.normal(ks[2], (TYPE_VOCAB, HIDDEN), jnp.float32),
        "emb_ln_g": jnp.ones((1, HIDDEN), jnp.float32),
        "emb_ln_b": jnp.zeros((1, HIDDEN), jnp.float32),
        "cls_w": dense(ks[3], HIDDEN, NUM_CLASSES),
        "cls_b": jnp.zeros((1, NUM_CLASSES), jnp.float32),
        "sent_w": dense(ks[4], HIDDEN, NUM_SENTIMENT),
        "sent_b": jnp.zeros((1, NUM_SENTIMENT), jnp.float32),
        "layers": [],
    }
    for li in range(NUM_LAYERS):
        lk = jax.random.split(ks[5 + li], 6)
        params["layers"].append({
            "wq": dense(lk[0], HIDDEN, HIDDEN), "bq": jnp.zeros((1, HIDDEN), jnp.float32),
            "wk": dense(lk[1], HIDDEN, HIDDEN), "bk": jnp.zeros((1, HIDDEN), jnp.float32),
            "wv": dense(lk[2], HIDDEN, HIDDEN), "bv": jnp.zeros((1, HIDDEN), jnp.float32),
            "wo": dense(lk[3], HIDDEN, HIDDEN), "bo": jnp.zeros((1, HIDDEN), jnp.float32),
            "ln1_g": jnp.ones((1, HIDDEN), jnp.float32),
            "ln1_b": jnp.zeros((1, HIDDEN), jnp.float32),
            "w1": dense(lk[4], HIDDEN, INTERMEDIATE),
            "b1": jnp.zeros((1, INTERMEDIATE), jnp.float32),
            "w2": dense(lk[5], INTERMEDIATE, HIDDEN),
            "b2": jnp.zeros((1, HIDDEN), jnp.float32),
            "ln2_g": jnp.ones((1, HIDDEN), jnp.float32),
            "ln2_b": jnp.zeros((1, HIDDEN), jnp.float32),
        })
    return params


def pack_params(p):
    """One-time re-layout for the fused kernel: stacked layer axis, head-stacked
    attention weights, merged + lane-padded classification heads."""
    L, H, NH, HD = NUM_LAYERS, HIDDEN, NUM_HEADS, HEAD_DIM

    def stk(name):
        return jnp.stack([lp[name] for lp in p["layers"]])

    def heads_w(w):   # (L,H,H) -> (L,NH,H,HD): column block per head
        return jnp.transpose(w.reshape(L, H, NH, HD), (0, 2, 1, 3))

    def heads_b(b):   # (L,1,H) -> (L,NH,1,HD)
        return jnp.transpose(b.reshape(L, 1, NH, HD), (0, 2, 1, 3))

    head_w = jnp.concatenate([p["cls_w"], p["sent_w"]], axis=1)     # (H, 5)
    head_b = jnp.concatenate([p["cls_b"], p["sent_b"]], axis=1)     # (1, 5)
    pad = HEAD_PAD - head_w.shape[1]

    return {
        "word_emb": p["word_emb"], "pos_emb": p["pos_emb"], "type_emb": p["type_emb"],
        "emb_ln_g": p["emb_ln_g"], "emb_ln_b": p["emb_ln_b"],
        "wqh": heads_w(stk("wq")), "bqh": heads_b(stk("bq")),
        "wkh": heads_w(stk("wk")), "bkh": heads_b(stk("bk")),
        "wvh": heads_w(stk("wv")), "bvh": heads_b(stk("bv")),
        "woh": stk("wo").reshape(L, NH, HD, H), "bo": stk("bo"),
        "ln1_g": stk("ln1_g"), "ln1_b": stk("ln1_b"),
        "w1": stk("w1"), "b1": stk("b1"),
        "w2": stk("w2"), "b2": stk("b2"),
        "ln2_g": stk("ln2_g"), "ln2_b": stk("ln2_b"),
        "head_w": jnp.pad(head_w, ((0, 0), (0, pad))),
        "head_b": jnp.pad(head_b, ((0, 0), (0, pad))),
    }


if __name__ == "__main__":
    key = jax.random.PRNGKey(0)
    pkey, ikey = jax.random.split(key)
    params = init_params(pkey)
    packed = pack_params(params)

    B, S = 2, 8
    input_ids = jax.random.randint(ikey, (B, S), 0, VOCAB, dtype=jnp.int32)
    attention_mask = jnp.array([[1] * S, [1] * 6 + [0] * 2], dtype=jnp.int32)

    class_logits, sentiment_logits = multitask_forward(packed, input_ids, attention_mask)
    jax.block_until_ready((class_logits, sentiment_logits))

    assert class_logits.shape == (B, NUM_CLASSES)
    assert sentiment_logits.shape == (B, NUM_SENTIMENT)
    assert class_logits.dtype == jnp.float32 and sentiment_logits.dtype == jnp.float32
    assert bool(jnp.all(jnp.isfinite(class_logits)))
    assert bool(jnp.all(jnp.isfinite(sentiment_logits)))
    print("KERNEL_OK")
</pallas_src>

<mosaic_0001>
module attributes {stable_mosaic.version = 11 : i64} {
  func.func @fused_forward_kernel(%arg0: i32, %arg1: memref<2x8xf32, #tpu.memory_space<vmem>>, %arg2: memref<16x32xf32, #tpu.memory_space<vmem>>, %arg3: memref<1x32xf32, #tpu.memory_space<vmem>>, %arg4: memref<1x32xf32, #tpu.memory_space<vmem>>, %arg5: memref<2x4x32x8xf32, #tpu.memory_space<vmem>>, %arg6: memref<2x4x1x8xf32, #tpu.memory_space<vmem>>, %arg7: memref<2x4x32x8xf32, #tpu.memory_space<vmem>>, %arg8: memref<2x4x1x8xf32, #tpu.memory_space<vmem>>, %arg9: memref<2x4x32x8xf32, #tpu.memory_space<vmem>>, %arg10: memref<2x4x1x8xf32, #tpu.memory_space<vmem>>, %arg11: memref<2x4x8x32xf32, #tpu.memory_space<vmem>>, %arg12: memref<2x1x32xf32, #tpu.memory_space<vmem>>, %arg13: memref<2x1x32xf32, #tpu.memory_space<vmem>>, %arg14: memref<2x1x32xf32, #tpu.memory_space<vmem>>, %arg15: memref<2x32x64xf32, #tpu.memory_space<vmem>>, %arg16: memref<2x1x64xf32, #tpu.memory_space<vmem>>, %arg17: memref<2x64x32xf32, #tpu.memory_space<vmem>>, %arg18: memref<2x1x32xf32, #tpu.memory_space<vmem>>, %arg19: memref<2x1x32xf32, #tpu.memory_space<vmem>>, %arg20: memref<2x1x32xf32, #tpu.memory_space<vmem>>, %arg21: memref<32x128xf32, #tpu.memory_space<vmem>>, %arg22: memref<1x128xf32, #tpu.memory_space<vmem>>, %arg23: memref<16x128xf32, #tpu.memory_space<vmem>>) attributes {dimension_semantics = [#tpu.dimension_semantics<arbitrary>], iteration_bounds = array<i64: 1>, scalar_prefetch = 0 : i64, scratch_operands = 0 : i64, tpu.core_type = #tpu.core_type<tc>, window_params = [{pipeline_mode = #tpu.pipeline_mode<synchronous>, transform_indices = @transform_0, window_bounds = array<i64: 2, 8>}, {pipeline_mode = #tpu.pipeline_mode<synchronous>, transform_indices = @transform_1, window_bounds = array<i64: 16, 32>}, {pipeline_mode = #tpu.pipeline_mode<synchronous>, transform_indices = @transform_2, window_bounds = array<i64: 1, 32>}, {pipeline_mode = #tpu.pipeline_mode<synchronous>, transform_indices = @transform_3, window_bounds = array<i64: 1, 32>}, {pipeline_mode = #tpu.pipeline_mode<synchronous>, transform_indices = @transform_4, window_bounds = array<i64: 2, 4, 32, 8>}, {pipeline_mode = #tpu.pipeline_mode<synchronous>, transform_indices = @transform_5, window_bounds = array<i64: 2, 4, 1, 8>}, {pipeline_mode = #tpu.pipeline_mode<synchronous>, transform_indices = @transform_6, window_bounds = array<i64: 2, 4, 32, 8>}, {pipeline_mode = #tpu.pipeline_mode<synchronous>, transform_indices = @transform_7, window_bounds = array<i64: 2, 4, 1, 8>}, {pipeline_mode = #tpu.pipeline_mode<synchronous>, transform_indices = @transform_8, window_bounds = array<i64: 2, 4, 32, 8>}, {pipeline_mode = #tpu.pipeline_mode<synchronous>, transform_indices = @transform_9, window_bounds = array<i64: 2, 4, 1, 8>}, {pipeline_mode = #tpu.pipeline_mode<synchronous>, transform_indices = @transform_10, window_bounds = array<i64: 2, 4, 8, 32>}, {pipeline_mode = #tpu.pipeline_mode<synchronous>, transform_indices = @transform_11, window_bounds = array<i64: 2, 1, 32>}, {pipeline_mode = #tpu.pipeline_mode<synchronous>, transform_indices = @transform_12, window_bounds = array<i64: 2, 1, 32>}, {pipeline_mode = #tpu.pipeline_mode<synchronous>, transform_indices = @transform_13, window_bounds = array<i64: 2, 1, 32>}, {pipeline_mode = #tpu.pipeline_mode<synchronous>, transform_indices = @transform_14, window_bounds = array<i64: 2, 32, 64>}, {pipeline_mode = #tpu.pipeline_mode<synchronous>, transform_indices = @transform_15, window_bounds = array<i64: 2, 1, 64>}, {pipeline_mode = #tpu.pipeline_mode<synchronous>, transform_indices = @transform_16, window_bounds = array<i64: 2, 64, 32>}, {pipeline_mode = #tpu.pipeline_mode<synchronous>, transform_indices = @transform_17, window_bounds = array<i64: 2, 1, 32>}, {pipeline_mode = #tpu.pipeline_mode<synchronous>, transform_indices = @transform_18, window_bounds = array<i64: 2, 1, 32>}, {pipeline_mode = #tpu.pipeline_mode<synchronous>, transform_indices = @transform_19, window_bounds = array<i64: 2, 1, 32>}, {pipeline_mode = #tpu.pipeline_mode<synchronous>, transform_indices = @transform_20, window_bounds = array<i64: 32, 128>}, {pipeline_mode = #tpu.pipeline_mode<synchronous>, transform_indices = @transform_21, window_bounds = array<i64: 1, 128>}, {pipeline_mode = #tpu.pipeline_mode<synchronous>, transform_indices = @transform_22, window_bounds = array<i64: 16, 128>}]} {
    %c0 = arith.constant 0 : index
    %c0_0 = arith.constant 0 : index
    %0 = vector.load %arg1[%c0, %c0_0] : memref<2x8xf32, #tpu.memory_space<vmem>>, vector<2x8xf32>
    %cst = arith.constant 1.000000e+00 : f32
    %1 = vector.broadcast %cst : f32 to vector<2x8xf32>
    %2 = arith.subf %1, %0 : vector<2x8xf32>
    %cst_1 = arith.constant -1.000000e+09 : f32
    %3 = vector.broadcast %cst_1 : f32 to vector<2x8xf32>
    %4 = arith.mulf %2, %3 : vector<2x8xf32>
    %c0_2 = arith.constant 0 : index
    %c0_3 = arith.constant 0 : index
    %5 = vector.load %arg2[%c0_2, %c0_3] : memref<16x32xf32, #tpu.memory_space<vmem>>, vector<16x32xf32>
    %c0_4 = arith.constant 0 : index
    %c0_5 = arith.constant 0 : index
    %6 = vector.load %arg3[%c0_4, %c0_5] : memref<1x32xf32, #tpu.memory_space<vmem>>, vector<1x32xf32>
    %c0_6 = arith.constant 0 : index
    %c0_7 = arith.constant 0 : index
    %7 = vector.load %arg4[%c0_6, %c0_7] : memref<1x32xf32, #tpu.memory_space<vmem>>, vector<1x32xf32>
    %cst_8 = arith.constant dense<0.000000e+00> : vector<16xf32>
    %8 = vector.multi_reduction <add>, %5, %cst_8 [1] : vector<16x32xf32> to vector<16xf32>
    %9 = vector.shape_cast %8 : vector<16xf32> to vector<16x1xf32>
    %cst_9 = arith.constant 3.200000e+01 : f32
    %10 = vector.broadcast %cst_9 : f32 to vector<16x1xf32>
    %11 = arith.divf %9, %10 : vector<16x1xf32>
    %12 = vector.broadcast %11 : vector<16x1xf32> to vector<16x32xf32>
    %13 = arith.subf %5, %12 : vector<16x32xf32>
    %14 = vector.broadcast %11 : vector<16x1xf32> to vector<16x32xf32>
    %15 = arith.subf %5, %14 : vector<16x32xf32>
    %16 = arith.mulf %13, %15 : vector<16x32xf32>
    %cst_10 = arith.constant dense<0.000000e+00> : vector<16xf32>
    %17 = vector.multi_reduction <add>, %16, %cst_10 [1] : vector<16x32xf32> to vector<16xf32>
    %18 = vector.shape_cast %17 : vector<16xf32> to vector<16x1xf32>
    %cst_11 = arith.constant 3.200000e+01 : f32
    %19 = vector.broadcast %cst_11 : f32 to vector<16x1xf32>
    %20 = arith.divf %18, %19 : vector<16x1xf32>
    %21 = vector.broadcast %11 : vector<16x1xf32> to vector<16x32xf32>
    %22 = arith.subf %5, %21 : vector<16x32xf32>
    %cst_12 = arith.constant 9.99999996E-13 : f32
    %23 = vector.broadcast %cst_12 : f32 to vector<16x1xf32>
    %24 = arith.addf %20, %23 : vector<16x1xf32>
    %25 = math.rsqrt %24 : vector<16x1xf32>
    %26 = vector.broadcast %25 : vector<16x1xf32> to vector<16x32xf32>
    %27 = arith.mulf %22, %26 : vector<16x32xf32>
    %28 = vector.broadcast %6 : vector<1x32xf32> to vector<16x32xf32>
    %29 = arith.mulf %27, %28 : vector<16x32xf32>
    %30 = vector.broadcast %7 : vector<1x32xf32> to vector<16x32xf32>
    %31 = arith.addf %29, %30 : vector<16x32xf32>
    %c0_13 = arith.constant 0 : index
    %c0_14 = arith.constant 0 : index
    %c0_15 = arith.constant 0 : index
    %c0_16 = arith.constant 0 : index
    %32 = vector.load %arg5[%c0_13, %c0_14, %c0_15, %c0_16] : memref<2x4x32x8xf32, #tpu.memory_space<vmem>>, vector<1x4x32x8xf32>
    %33 = vector.shape_cast %32 : vector<1x4x32x8xf32> to vector<4x32x8xf32>
    %c0_17 = arith.constant 0 : index
    %c0_18 = arith.constant 0 : index
    %c0_19 = arith.constant 0 : index
    %c0_20 = arith.constant 0 : index
    %34 = vector.load %arg6[%c0_17, %c0_18, %c0_19, %c0_20] : memref<2x4x1x8xf32, #tpu.memory_space<vmem>>, vector<1x4x1x8xf32>
    %35 = vector.shape_cast %34 : vector<1x4x1x8xf32> to vector<4x1x8xf32>
    %c0_21 = arith.constant 0 : index
    %c0_22 = arith.constant 0 : index
    %c0_23 = arith.constant 0 : index
    %c0_24 = arith.constant 0 : index
    %36 = vector.load %arg7[%c0_21, %c0_22, %c0_23, %c0_24] : memref<2x4x32x8xf32, #tpu.memory_space<vmem>>, vector<1x4x32x8xf32>
    %37 = vector.shape_cast %36 : vector<1x4x32x8xf32> to vector<4x32x8xf32>
    %c0_25 = arith.constant 0 : index
    %c0_26 = arith.constant 0 : index
    %c0_27 = arith.constant 0 : index
    %c0_28 = arith.constant 0 : index
    %38 = vector.load %arg8[%c0_25, %c0_26, %c0_27, %c0_28] : memref<2x4x1x8xf32, #tpu.memory_space<vmem>>, vector<1x4x1x8xf32>
    %39 = vector.shape_cast %38 : vector<1x4x1x8xf32> to vector<4x1x8xf32>
    %c0_29 = arith.constant 0 : index
    %c0_30 = arith.constant 0 : index
    %c0_31 = arith.constant 0 : index
    %c0_32 = arith.constant 0 : index
    %40 = vector.load %arg9[%c0_29, %c0_30, %c0_31, %c0_32] : memref<2x4x32x8xf32, #tpu.memory_space<vmem>>, vector<1x4x32x8xf32>
    %41 = vector.shape_cast %40 : vector<1x4x32x8xf32> to vector<4x32x8xf32>
    %c0_33 = arith.constant 0 : index
    %c0_34 = arith.constant 0 : index
    %c0_35 = arith.constant 0 : index
    %c0_36 = arith.constant 0 : index
    %42 = vector.load %arg10[%c0_33, %c0_34, %c0_35, %c0_36] : memref<2x4x1x8xf32, #tpu.memory_space<vmem>>, vector<1x4x1x8xf32>
    %43 = vector.shape_cast %42 : vector<1x4x1x8xf32> to vector<4x1x8xf32>
    %c0_37 = arith.constant 0 : index
    %c0_38 = arith.constant 0 : index
    %c0_39 = arith.constant 0 : index
    %c0_40 = arith.constant 0 : index
    %44 = vector.load %arg11[%c0_37, %c0_38, %c0_39, %c0_40] : memref<2x4x8x32xf32, #tpu.memory_space<vmem>>, vector<1x4x8x32xf32>
    %45 = vector.shape_cast %44 : vector<1x4x8x32xf32> to vector<4x8x32xf32>
    %c0_41 = arith.constant 0 : index
    %c0_42 = arith.constant 0 : index
    %c0_43 = arith.constant 0 : index
    %46 = vector.load %arg12[%c0_41, %c0_42, %c0_43] : memref<2x1x32xf32, #tpu.memory_space<vmem>>, vector<1x1x32xf32>
    %47 = vector.shape_cast %46 : vector<1x1x32xf32> to vector<1x32xf32>
    %48 = vector.extract_strided_slice %31 {offsets = [0, 0], sizes = [8, 32], strides = [1, 1]} : vector<16x32xf32> to vector<8x32xf32>
    %49 = vector.shape_cast %48 : vector<8x32xf32> to vector<1x8x32xf32>
    %50 = vector.shape_cast %49 : vector<1x8x32xf32> to vector<1x8x32xf32>
    %51 = vector.broadcast %50 : vector<1x8x32xf32> to vector<4x8x32xf32>
    "tpu.trace_start"() <{level = 10 : i32, message = "nsh,nhd->nsd"}> : () -> ()
    %cst_44 = arith.constant dense<0.000000e+00> : vector<4x8x8xf32>
    %52 = tpu.matmul %51, %33, %cst_44 {dimension_numbers = #tpu.dot_dimension_numbers<[2], [1], [1], [2], [0, 0, 0, 1, 1, 2], [0], [0]>} : vector<4x8x32xf32>, vector<4x32x8xf32>, vector<4x8x8xf32> -> vector<4x8x8xf32>
    "tpu.trace_stop"() : () -> ()
    %53 = vector.broadcast %35 : vector<4x1x8xf32> to vector<4x8x8xf32>
    %54 = arith.addf %52, %53 : vector<4x8x8xf32>
    "tpu.trace_start"() <{level = 10 : i32, message = "nsh,nhd->nsd"}> : () -> ()
    %cst_45 = arith.constant dense<0.000000e+00> : vector<4x8x8xf32>
    %55 = tpu.matmul %51, %37, %cst_45 {dimension_numbers = #tpu.dot_dimension_numbers<[2], [1], [1], [2], [0, 0, 0, 1, 1, 2], [0], [0]>} : vector<4x8x32xf32>, vector<4x32x8xf32>, vector<4x8x8xf32> -> vector<4x8x8xf32>
    "tpu.trace_stop"() : () -> ()
    %56 = vector.broadcast %39 : vector<4x1x8xf32> to vector<4x8x8xf32>
    %57 = arith.addf %55, %56 : vector<4x8x8xf32>
    "tpu.trace_start"() <{level = 10 : i32, message = "nsh,nhd->nsd"}> : () -> ()
    %cst_46 = arith.constant dense<0.000000e+00> : vector<4x8x8xf32>
    %58 = tpu.matmul %51, %41, %cst_46 {dimension_numbers = #tpu.dot_dimension_numbers<[2], [1], [1], [2], [0, 0, 0, 1, 1, 2], [0], [0]>} : vector<4x8x32xf32>, vector<4x32x8xf32>, vector<4x8x8xf32> -> vector<4x8x8xf32>
    "tpu.trace_stop"() : () -> ()
    %59 = vector.broadcast %43 : vector<4x1x8xf32> to vector<4x8x8xf32>
    %60 = arith.addf %58, %59 : vector<4x8x8xf32>
    "tpu.trace_start"() <{level = 10 : i32, message = "nqd,nkd->nqk"}> : () -> ()
    %cst_47 = arith.constant dense<0.000000e+00> : vector<4x8x8xf32>
    %61 = tpu.matmul %54, %57, %cst_47 {dimension_numbers = #tpu.dot_dimension_numbers<[2], [2], [1], [1], [0, 0, 0, 1, 1, 1], [0], [0]>} : vector<4x8x8xf32>, vector<4x8x8xf32>, vector<4x8x8xf32> -> vector<4x8x8xf32>
    "tpu.trace_stop"() : () -> ()
    %cst_48 = arith.constant 0.353553385 : f32
    %62 = vector.broadcast %cst_48 : f32 to vector<4x8x8xf32>
    %63 = arith.mulf %61, %62 : vector<4x8x8xf32>
    %64 = vector.extract_strided_slice %4 {offsets = [0, 0], sizes = [1, 8], strides = [1, 1]} : vector<2x8xf32> to vector<1x8xf32>
    %65 = vector.shape_cast %64 : vector<1x8xf32> to vector<1x1x8xf32>
    %66 = vector.broadcast %65 : vector<1x1x8xf32> to vector<4x8x8xf32>
    %67 = arith.addf %63, %66 : vector<4x8x8xf32>
    %cst_49 = arith.constant dense<0xFF800000> : vector<4x8xf32>
    %68 = vector.multi_reduction <maximumf>, %67, %cst_49 [2] : vector<4x8x8xf32> to vector<4x8xf32>
    %69 = vector.shape_cast %68 : vector<4x8xf32> to vector<4x8x1xf32>
    %70 = vector.broadcast %69 : vector<4x8x1xf32> to vector<4x8x8xf32>
    %71 = arith.subf %67, %70 : vector<4x8x8xf32>
    %72 = math.exp %71 : vector<4x8x8xf32>
    %cst_50 = arith.constant dense<0.000000e+00> : vector<4x8xf32>
    %73 = vector.multi_reduction <add>, %72, %cst_50 [2] : vector<4x8x8xf32> to vector<4x8xf32>
    %74 = vector.shape_cast %73 : vector<4x8xf32> to vector<4x8x1xf32>
    %75 = tpu.reciprocal %74 {approx = true} : vector<4x8x1xf32> -> vector<4x8x1xf32>
    %76 = vector.broadcast %75 : vector<4x8x1xf32> to vector<4x8x8xf32>
    %77 = arith.mulf %72, %76 : vector<4x8x8xf32>
    "tpu.trace_start"() <{level = 10 : i32, message = "nqk,nkd->nqd"}> : () -> ()
    %cst_51 = arith.constant dense<0.000000e+00> : vector<4x8x8xf32>
    %78 = tpu.matmul %77, %60, %cst_51 {dimension_numbers = #tpu.dot_dimension_numbers<[2], [1], [1], [2], [0, 0, 0, 1, 1, 2], [0], [0]>} : vector<4x8x8xf32>, vector<4x8x8xf32>, vector<4x8x8xf32> -> vector<4x8x8xf32>
    "tpu.trace_stop"() : () -> ()
    %79 = vector.shape_cast %47 : vector<1x32xf32> to vector<1x32xf32>
    %80 = vector.broadcast %79 : vector<1x32xf32> to vector<8x32xf32>
    %81 = vector.extract_strided_slice %78 {offsets = [0, 0, 0], sizes = [1, 8, 8], strides = [1, 1, 1]} : vector<4x8x8xf32> to vector<1x8x8xf32>
    %82 = vector.shape_cast %81 : vector<1x8x8xf32> to vector<8x8xf32>
    %83 = vector.extract_strided_slice %45 {offsets = [0, 0, 0], sizes = [1, 8, 32], strides = [1, 1, 1]} : vector<4x8x32xf32> to vector<1x8x32xf32>
    %84 = vector.shape_cast %83 : vector<1x8x32xf32> to vector<8x32xf32>
    %cst_52 = arith.constant dense<0.000000e+00> : vector<8x32xf32>
    %85 = tpu.matmul %82, %84, %cst_52 {dimension_numbers = #tpu.dot_dimension_numbers<[1], [0], [0], [1], [0, 0, 1, 1], [], []>} : vector<8x8xf32>, vector<8x32xf32>, vector<8x32xf32> -> vector<8x32xf32>
    %86 = arith.addf %80, %85 : vector<8x32xf32>
    %87 = vector.extract_strided_slice %78 {offsets = [1, 0, 0], sizes = [1, 8, 8], strides = [1, 1, 1]} : vector<4x8x8xf32> to vector<1x8x8xf32>
    %88 = vector.shape_cast %87 : vector<1x8x8xf32> to vector<8x8xf32>
    %89 = vector.extract_strided_slice %45 {offsets = [1, 0, 0], sizes = [1, 8, 32], strides = [1, 1, 1]} : vector<4x8x32xf32> to vector<1x8x32xf32>
    %90 = vector.shape_cast %89 : vector<1x8x32xf32> to vector<8x32xf32>
    %cst_53 = arith.constant dense<0.000000e+00> : vector<8x32xf32>
    %91 = tpu.matmul %88, %90, %cst_53 {dimension_numbers = #tpu.dot_dimension_numbers<[1], [0], [0], [1], [0, 0, 1, 1], [], []>} : vector<8x8xf32>, vector<8x32xf32>, vector<8x32xf32> -> vector<8x32xf32>
    %92 = arith.addf %86, %91 : vector<8x32xf32>
    %93 = vector.extract_strided_slice %78 {offsets = [2, 0, 0], sizes = [1, 8, 8], strides = [1, 1, 1]} : vector<4x8x8xf32> to vector<1x8x8xf32>
    %94 = vector.shape_cast %93 : vector<1x8x8xf32> to vector<8x8xf32>
    %95 = vector.extract_strided_slice %45 {offsets = [2, 0, 0], sizes = [1, 8, 32], strides = [1, 1, 1]} : vector<4x8x32xf32> to vector<1x8x32xf32>
    %96 = vector.shape_cast %95 : vector<1x8x32xf32> to vector<8x32xf32>
    %cst_54 = arith.constant dense<0.000000e+00> : vector<8x32xf32>
    %97 = tpu.matmul %94, %96, %cst_54 {dimension_numbers = #tpu.dot_dimension_numbers<[1], [0], [0], [1], [0, 0, 1, 1], [], []>} : vector<8x8xf32>, vector<8x32xf32>, vector<8x32xf32> -> vector<8x32xf32>
    %98 = arith.addf %92, %97 : vector<8x32xf32>
    %99 = vector.extract_strided_slice %78 {offsets = [3, 0, 0], sizes = [1, 8, 8], strides = [1, 1, 1]} : vector<4x8x8xf32> to vector<1x8x8xf32>
    %100 = vector.shape_cast %99 : vector<1x8x8xf32> to vector<8x8xf32>
    %101 = vector.extract_strided_slice %45 {offsets = [3, 0, 0], sizes = [1, 8, 32], strides = [1, 1, 1]} : vector<4x8x32xf32> to vector<1x8x32xf32>
    %102 = vector.shape_cast %101 : vector<1x8x32xf32> to vector<8x32xf32>
    %cst_55 = arith.constant dense<0.000000e+00> : vector<8x32xf32>
    %103 = tpu.matmul %100, %102, %cst_55 {dimension_numbers = #tpu.dot_dimension_numbers<[1], [0], [0], [1], [0, 0, 1, 1], [], []>} : vector<8x8xf32>, vector<8x32xf32>, vector<8x32xf32> -> vector<8x32xf32>
    %104 = arith.addf %98, %103 : vector<8x32xf32>
    %105 = vector.extract_strided_slice %31 {offsets = [8, 0], sizes = [8, 32], strides = [1, 1]} : vector<16x32xf32> to vector<8x32xf32>
    %106 = vector.shape_cast %105 : vector<8x32xf32> to vector<1x8x32xf32>
    %107 = vector.shape_cast %106 : vector<1x8x32xf32> to vector<1x8x32xf32>
    %108 = vector.broadcast %107 : vector<1x8x32xf32> to vector<4x8x32xf32>
    "tpu.trace_start"() <{level = 10 : i32, message = "nsh,nhd->nsd"}> : () -> ()
    %cst_56 = arith.constant dense<0.000000e+00> : vector<4x8x8xf32>
    %109 = tpu.matmul %108, %33, %cst_56 {dimension_numbers = #tpu.dot_dimension_numbers<[2], [1], [1], [2], [0, 0, 0, 1, 1, 2], [0], [0]>} : vector<4x8x32xf32>, vector<4x32x8xf32>, vector<4x8x8xf32> -> vector<4x8x8xf32>
    "tpu.trace_stop"() : () -> ()
    %110 = vector.broadcast %35 : vector<4x1x8xf32> to vector<4x8x8xf32>
    %111 = arith.addf %109, %110 : vector<4x8x8xf32>
    "tpu.trace_start"() <{level = 10 : i32, message = "nsh,nhd->nsd"}> : () -> ()
    %cst_57 = arith.constant dense<0.000000e+00> : vector<4x8x8xf32>
    %112 = tpu.matmul %108, %37, %cst_57 {dimension_numbers = #tpu.dot_dimension_numbers<[2], [1], [1], [2], [0, 0, 0, 1, 1, 2], [0], [0]>} : vector<4x8x32xf32>, vector<4x32x8xf32>, vector<4x8x8xf32> -> vector<4x8x8xf32>
    "tpu.trace_stop"() : () -> ()
    %113 = vector.broadcast %39 : vector<4x1x8xf32> to vector<4x8x8xf32>
    %114 = arith.addf %112, %113 : vector<4x8x8xf32>
    "tpu.trace_start"() <{level = 10 : i32, message = "nsh,nhd->nsd"}> : () -> ()
    %cst_58 = arith.constant dense<0.000000e+00> : vector<4x8x8xf32>
    %115 = tpu.matmul %108, %41, %cst_58 {dimension_numbers = #tpu.dot_dimension_numbers<[2], [1], [1], [2], [0, 0, 0, 1, 1, 2], [0], [0]>} : vector<4x8x32xf32>, vector<4x32x8xf32>, vector<4x8x8xf32> -> vector<4x8x8xf32>
    "tpu.trace_stop"() : () -> ()
    %116 = vector.broadcast %43 : vector<4x1x8xf32> to vector<4x8x8xf32>
    %117 = arith.addf %115, %116 : vector<4x8x8xf32>
    "tpu.trace_start"() <{level = 10 : i32, message = "nqd,nkd->nqk"}> : () -> ()
    %cst_59 = arith.constant dense<0.000000e+00> : vector<4x8x8xf32>
    %118 = tpu.matmul %111, %114, %cst_59 {dimension_numbers = #tpu.dot_dimension_numbers<[2], [2], [1], [1], [0, 0, 0, 1, 1, 1], [0], [0]>} : vector<4x8x8xf32>, vector<4x8x8xf32>, vector<4x8x8xf32> -> vector<4x8x8xf32>
    "tpu.trace_stop"() : () -> ()
    %cst_60 = arith.constant 0.353553385 : f32
    %119 = vector.broadcast %cst_60 : f32 to vector<4x8x8xf32>
    %120 = arith.mulf %118, %119 : vector<4x8x8xf32>
    %121 = vector.extract_strided_slice %4 {offsets = [1, 0], sizes = [1, 8], strides = [1, 1]} : vector<2x8xf32> to vector<1x8xf32>
    %122 = vector.shape_cast %121 : vector<1x8xf32> to vector<1x1x8xf32>
    %123 = vector.broadcast %122 : vector<1x1x8xf32> to vector<4x8x8xf32>
    %124 = arith.addf %120, %123 : vector<4x8x8xf32>
    %cst_61 = arith.constant dense<0xFF800000> : vector<4x8xf32>
    %125 = vector.multi_reduction <maximumf>, %124, %cst_61 [2] : vector<4x8x8xf32> to vector<4x8xf32>
    %126 = vector.shape_cast %125 : vector<4x8xf32> to vector<4x8x1xf32>
    %127 = vector.broadcast %126 : vector<4x8x1xf32> to vector<4x8x8xf32>
    %128 = arith.subf %124, %127 : vector<4x8x8xf32>
    %129 = math.exp %128 : vector<4x8x8xf32>
    %cst_62 = arith.constant dense<0.000000e+00> : vector<4x8xf32>
    %130 = vector.multi_reduction <add>, %129, %cst_62 [2] : vector<4x8x8xf32> to vector<4x8xf32>
    %131 = vector.shape_cast %130 : vector<4x8xf32> to vector<4x8x1xf32>
    %132 = tpu.reciprocal %131 {approx = true} : vector<4x8x1xf32> -> vector<4x8x1xf32>
    %133 = vector.broadcast %132 : vector<4x8x1xf32> to vector<4x8x8xf32>
    %134 = arith.mulf %129, %133 : vector<4x8x8xf32>
    "tpu.trace_start"() <{level = 10 : i32, message = "nqk,nkd->nqd"}> : () -> ()
    %cst_63 = arith.constant dense<0.000000e+00> : vector<4x8x8xf32>
    %135 = tpu.matmul %134, %117, %cst_63 {dimension_numbers = #tpu.dot_dimension_numbers<[2], [1], [1], [2], [0, 0, 0, 1, 1, 2], [0], [0]>} : vector<4x8x8xf32>, vector<4x8x8xf32>, vector<4x8x8xf32> -> vector<4x8x8xf32>
    "tpu.trace_stop"() : () -> ()
    %136 = vector.shape_cast %47 : vector<1x32xf32> to vector<1x32xf32>
    %137 = vector.broadcast %136 : vector<1x32xf32> to vector<8x32xf32>
    %138 = vector.extract_strided_slice %135 {offsets = [0, 0, 0], sizes = [1, 8, 8], strides = [1, 1, 1]} : vector<4x8x8xf32> to vector<1x8x8xf32>
    %139 = vector.shape_cast %138 : vector<1x8x8xf32> to vector<8x8xf32>
    %140 = vector.extract_strided_slice %45 {offsets = [0, 0, 0], sizes = [1, 8, 32], strides = [1, 1, 1]} : vector<4x8x32xf32> to vector<1x8x32xf32>
    %141 = vector.shape_cast %140 : vector<1x8x32xf32> to vector<8x32xf32>
    %cst_64 = arith.constant dense<0.000000e+00> : vector<8x32xf32>
    %142 = tpu.matmul %139, %141, %cst_64 {dimension_numbers = #tpu.dot_dimension_numbers<[1], [0], [0], [1], [0, 0, 1, 1], [], []>} : vector<8x8xf32>, vector<8x32xf32>, vector<8x32xf32> -> vector<8x32xf32>
    %143 = arith.addf %137, %142 : vector<8x32xf32>
    %144 = vector.extract_strided_slice %135 {offsets = [1, 0, 0], sizes = [1, 8, 8], strides = [1, 1, 1]} : vector<4x8x8xf32> to vector<1x8x8xf32>
    %145 = vector.shape_cast %144 : vector<1x8x8xf32> to vector<8x8xf32>
    %146 = vector.extract_strided_slice %45 {offsets = [1, 0, 0], sizes = [1, 8, 32], strides = [1, 1, 1]} : vector<4x8x32xf32> to vector<1x8x32xf32>
    %147 = vector.shape_cast %146 : vector<1x8x32xf32> to vector<8x32xf32>
    %cst_65 = arith.constant dense<0.000000e+00> : vector<8x32xf32>
    %148 = tpu.matmul %145, %147, %cst_65 {dimension_numbers = #tpu.dot_dimension_numbers<[1], [0], [0], [1], [0, 0, 1, 1], [], []>} : vector<8x8xf32>, vector<8x32xf32>, vector<8x32xf32> -> vector<8x32xf32>
    %149 = arith.addf %143, %148 : vector<8x32xf32>
    %150 = vector.extract_strided_slice %135 {offsets = [2, 0, 0], sizes = [1, 8, 8], strides = [1, 1, 1]} : vector<4x8x8xf32> to vector<1x8x8xf32>
    %151 = vector.shape_cast %150 : vector<1x8x8xf32> to vector<8x8xf32>
    %152 = vector.extract_strided_slice %45 {offsets = [2, 0, 0], sizes = [1, 8, 32], strides = [1, 1, 1]} : vector<4x8x32xf32> to vector<1x8x32xf32>
    %153 = vector.shape_cast %152 : vector<1x8x32xf32> to vector<8x32xf32>
    %cst_66 = arith.constant dense<0.000000e+00> : vector<8x32xf32>
    %154 = tpu.matmul %151, %153, %cst_66 {dimension_numbers = #tpu.dot_dimension_numbers<[1], [0], [0], [1], [0, 0, 1, 1], [], []>} : vector<8x8xf32>, vector<8x32xf32>, vector<8x32xf32> -> vector<8x32xf32>
    %155 = arith.addf %149, %154 : vector<8x32xf32>
    %156 = vector.extract_strided_slice %135 {offsets = [3, 0, 0], sizes = [1, 8, 8], strides = [1, 1, 1]} : vector<4x8x8xf32> to vector<1x8x8xf32>
    %157 = vector.shape_cast %156 : vector<1x8x8xf32> to vector<8x8xf32>
    %158 = vector.extract_strided_slice %45 {offsets = [3, 0, 0], sizes = [1, 8, 32], strides = [1, 1, 1]} : vector<4x8x32xf32> to vector<1x8x32xf32>
    %159 = vector.shape_cast %158 : vector<1x8x32xf32> to vector<8x32xf32>
    %cst_67 = arith.constant dense<0.000000e+00> : vector<8x32xf32>
    %160 = tpu.matmul %157, %159, %cst_67 {dimension_numbers = #tpu.dot_dimension_numbers<[1], [0], [0], [1], [0, 0, 1, 1], [], []>} : vector<8x8xf32>, vector<8x32xf32>, vector<8x32xf32> -> vector<8x32xf32>
    %161 = arith.addf %155, %160 : vector<8x32xf32>
    %162 = tpu.concatenate %104, %161 in 0 : vector<8x32xf32>, vector<8x32xf32> -> vector<16x32xf32>
    %163 = arith.addf %31, %162 : vector<16x32xf32>
    %c0_68 = arith.constant 0 : index
    %c0_69 = arith.constant 0 : index
    %c0_70 = arith.constant 0 : index
    %164 = vector.load %arg13[%c0_68, %c0_69, %c0_70] : memref<2x1x32xf32, #tpu.memory_space<vmem>>, vector<1x1x32xf32>
    %165 = vector.shape_cast %164 : vector<1x1x32xf32> to vector<1x32xf32>
    %c0_71 = arith.constant 0 : index
    %c0_72 = arith.constant 0 : index
    %c0_73 = arith.constant 0 : index
    %166 = vector.load %arg14[%c0_71, %c0_72, %c0_73] : memref<2x1x32xf32, #tpu.memory_space<vmem>>, vector<1x1x32xf32>
    %167 = vector.shape_cast %166 : vector<1x1x32xf32> to vector<1x32xf32>
    %cst_74 = arith.constant dense<0.000000e+00> : vector<16xf32>
    %168 = vector.multi_reduction <add>, %163, %cst_74 [1] : vector<16x32xf32> to vector<16xf32>
    %169 = vector.shape_cast %168 : vector<16xf32> to vector<16x1xf32>
    %cst_75 = arith.constant 3.200000e+01 : f32
    %170 = vector.broadcast %cst_75 : f32 to vector<16x1xf32>
    %171 = arith.divf %169, %170 : vector<16x1xf32>
    %172 = vector.broadcast %171 : vector<16x1xf32> to vector<16x32xf32>
    %173 = arith.subf %163, %172 : vector<16x32xf32>
    %174 = vector.broadcast %171 : vector<16x1xf32> to vector<16x32xf32>
    %175 = arith.subf %163, %174 : vector<16x32xf32>
    %176 = arith.mulf %173, %175 : vector<16x32xf32>
    %cst_76 = arith.constant dense<0.000000e+00> : vector<16xf32>
    %177 = vector.multi_reduction <add>, %176, %cst_76 [1] : vector<16x32xf32> to vector<16xf32>
    %178 = vector.shape_cast %177 : vector<16xf32> to vector<16x1xf32>
    %cst_77 = arith.constant 3.200000e+01 : f32
    %179 = vector.broadcast %cst_77 : f32 to vector<16x1xf32>
    %180 = arith.divf %178, %179 : vector<16x1xf32>
    %181 = vector.broadcast %171 : vector<16x1xf32> to vector<16x32xf32>
    %182 = arith.subf %163, %181 : vector<16x32xf32>
    %cst_78 = arith.constant 9.99999996E-13 : f32
    %183 = vector.broadcast %cst_78 : f32 to vector<16x1xf32>
    %184 = arith.addf %180, %183 : vector<16x1xf32>
    %185 = math.rsqrt %184 : vector<16x1xf32>
    %186 = vector.broadcast %185 : vector<16x1xf32> to vector<16x32xf32>
    %187 = arith.mulf %182, %186 : vector<16x32xf32>
    %188 = vector.broadcast %165 : vector<1x32xf32> to vector<16x32xf32>
    %189 = arith.mulf %187, %188 : vector<16x32xf32>
    %190 = vector.broadcast %167 : vector<1x32xf32> to vector<16x32xf32>
    %191 = arith.addf %189, %190 : vector<16x32xf32>
    %c0_79 = arith.constant 0 : index
    %c0_80 = arith.constant 0 : index
    %c0_81 = arith.constant 0 : index
    %192 = vector.load %arg15[%c0_79, %c0_80, %c0_81] : memref<2x32x64xf32, #tpu.memory_space<vmem>>, vector<1x32x64xf32>
    %193 = vector.shape_cast %192 : vector<1x32x64xf32> to vector<32x64xf32>
    %cst_82 = arith.constant dense<0.000000e+00> : vector<16x64xf32>
    %194 = tpu.matmul %191, %193, %cst_82 {dimension_numbers = #tpu.dot_dimension_numbers<[1], [0], [0], [1], [0, 0, 1, 1], [], []>} : vector<16x32xf32>, vector<32x64xf32>, vector<16x64xf32> -> vector<16x64xf32>
    %c0_83 = arith.constant 0 : index
    %c0_84 = arith.constant 0 : index
    %c0_85 = arith.constant 0 : index
    %195 = vector.load %arg16[%c0_83, %c0_84, %c0_85] : memref<2x1x64xf32, #tpu.memory_space<vmem>>, vector<1x1x64xf32>
    %196 = vector.shape_cast %195 : vector<1x1x64xf32> to vector<1x64xf32>
    %197 = vector.broadcast %196 : vector<1x64xf32> to vector<16x64xf32>
    %198 = arith.addf %194, %197 : vector<16x64xf32>
    %199 = arith.mulf %198, %198 : vector<16x64xf32>
    %200 = arith.mulf %198, %199 : vector<16x64xf32>
    %cst_86 = arith.constant 4.471500e-02 : f32
    %201 = vector.broadcast %cst_86 : f32 to vector<16x64xf32>
    %202 = arith.mulf %201, %200 : vector<16x64xf32>
    %203 = arith.addf %198, %202 : vector<16x64xf32>
    %cst_87 = arith.constant 0.797884583 : f32
    %204 = vector.broadcast %cst_87 : f32 to vector<16x64xf32>
    %205 = arith.mulf %204, %203 : vector<16x64xf32>
    %206 = math.tanh %205 : vector<16x64xf32>
    %cst_88 = arith.constant 1.000000e+00 : f32
    %207 = vector.broadcast %cst_88 : f32 to vector<16x64xf32>
    %208 = arith.addf %207, %206 : vector<16x64xf32>
    %cst_89 = arith.constant 5.000000e-01 : f32
    %209 = vector.broadcast %cst_89 : f32 to vector<16x64xf32>
    %210 = arith.mulf %209, %208 : vector<16x64xf32>
    %211 = arith.mulf %198, %210 : vector<16x64xf32>
    %c0_90 = arith.constant 0 : index
    %c0_91 = arith.constant 0 : index
    %c0_92 = arith.constant 0 : index
    %212 = vector.load %arg17[%c0_90, %c0_91, %c0_92] : memref<2x64x32xf32, #tpu.memory_space<vmem>>, vector<1x64x32xf32>
    %213 = vector.shape_cast %212 : vector<1x64x32xf32> to vector<64x32xf32>
    %cst_93 = arith.constant dense<0.000000e+00> : vector<16x32xf32>
    %214 = tpu.matmul %211, %213, %cst_93 {dimension_numbers = #tpu.dot_dimension_numbers<[1], [0], [0], [1], [0, 0, 1, 1], [], []>} : vector<16x64xf32>, vector<64x32xf32>, vector<16x32xf32> -> vector<16x32xf32>
    %c0_94 = arith.constant 0 : index
    %c0_95 = arith.constant 0 : index
    %c0_96 = arith.constant 0 : index
    %215 = vector.load %arg18[%c0_94, %c0_95, %c0_96] : memref<2x1x32xf32, #tpu.memory_space<vmem>>, vector<1x1x32xf32>
    %216 = vector.shape_cast %215 : vector<1x1x32xf32> to vector<1x32xf32>
    %217 = vector.broadcast %216 : vector<1x32xf32> to vector<16x32xf32>
    %218 = arith.addf %214, %217 : vector<16x32xf32>
    %219 = arith.addf %191, %218 : vector<16x32xf32>
    %c0_97 = arith.constant 0 : index
    %c0_98 = arith.constant 0 : index
    %c0_99 = arith.constant 0 : index
    %220 = vector.load %arg19[%c0_97, %c0_98, %c0_99] : memref<2x1x32xf32, #tpu.memory_space<vmem>>, vector<1x1x32xf32>
    %221 = vector.shape_cast %220 : vector<1x1x32xf32> to vector<1x32xf32>
    %c0_100 = arith.constant 0 : index
    %c0_101 = arith.constant 0 : index
    %c0_102 = arith.constant 0 : index
    %222 = vector.load %arg20[%c0_100, %c0_101, %c0_102] : memref<2x1x32xf32, #tpu.memory_space<vmem>>, vector<1x1x32xf32>
    %223 = vector.shape_cast %222 : vector<1x1x32xf32> to vector<1x32xf32>
    %cst_103 = arith.constant dense<0.000000e+00> : vector<16xf32>
    %224 = vector.multi_reduction <add>, %219, %cst_103 [1] : vector<16x32xf32> to vector<16xf32>
    %225 = vector.shape_cast %224 : vector<16xf32> to vector<16x1xf32>
    %cst_104 = arith.constant 3.200000e+01 : f32
    %226 = vector.broadcast %cst_104 : f32 to vector<16x1xf32>
    %227 = arith.divf %225, %226 : vector<16x1xf32>
    %228 = vector.broadcast %227 : vector<16x1xf32> to vector<16x32xf32>
    %229 = arith.subf %219, %228 : vector<16x32xf32>
    %230 = vector.broadcast %227 : vector<16x1xf32> to vector<16x32xf32>
    %231 = arith.subf %219, %230 : vector<16x32xf32>
    %232 = arith.mulf %229, %231 : vector<16x32xf32>
    %cst_105 = arith.constant dense<0.000000e+00> : vector<16xf32>
    %233 = vector.multi_reduction <add>, %232, %cst_105 [1] : vector<16x32xf32> to vector<16xf32>
    %234 = vector.shape_cast %233 : vector<16xf32> to vector<16x1xf32>
    %cst_106 = arith.constant 3.200000e+01 : f32
    %235 = vector.broadcast %cst_106 : f32 to vector<16x1xf32>
    %236 = arith.divf %234, %235 : vector<16x1xf32>
    %237 = vector.broadcast %227 : vector<16x1xf32> to vector<16x32xf32>
    %238 = arith.subf %219, %237 : vector<16x32xf32>
    %cst_107 = arith.constant 9.99999996E-13 : f32
    %239 = vector.broadcast %cst_107 : f32 to vector<16x1xf32>
    %240 = arith.addf %236, %239 : vector<16x1xf32>
    %241 = math.rsqrt %240 : vector<16x1xf32>
    %242 = vector.broadcast %241 : vector<16x1xf32> to vector<16x32xf32>
    %243 = arith.mulf %238, %242 : vector<16x32xf32>
    %244 = vector.broadcast %221 : vector<1x32xf32> to vector<16x32xf32>
    %245 = arith.mulf %243, %244 : vector<16x32xf32>
    %246 = vector.broadcast %223 : vector<1x32xf32> to vector<16x32xf32>
    %247 = arith.addf %245, %246 : vector<16x32xf32>
    %c1 = arith.constant 1 : index
    %c0_108 = arith.constant 0 : index
    %c0_109 = arith.constant 0 : index
    %c0_110 = arith.constant 0 : index
    %248 = vector.load %arg5[%c1, %c0_108, %c0_109, %c0_110] : memref<2x4x32x8xf32, #tpu.memory_space<vmem>>, vector<1x4x32x8xf32>
    %249 = vector.shape_cast %248 : vector<1x4x32x8xf32> to vector<4x32x8xf32>
    %c1_111 = arith.constant 1 : index
    %c0_112 = arith.constant 0 : index
    %c0_113 = arith.constant 0 : index
    %c0_114 = arith.constant 0 : index
    %250 = vector.load %arg6[%c1_111, %c0_112, %c0_113, %c0_114] : memref<2x4x1x8xf32, #tpu.memory_space<vmem>>, vector<1x4x1x8xf32>
    %251 = vector.shape_cast %250 : vector<1x4x1x8xf32> to vector<4x1x8xf32>
    %c1_115 = arith.constant 1 : index
    %c0_116 = arith.constant 0 : index
    %c0_117 = arith.constant 0 : index
    %c0_118 = arith.constant 0 : index
    %252 = vector.load %arg7[%c1_115, %c0_116, %c0_117, %c0_118] : memref<2x4x32x8xf32, #tpu.memory_space<vmem>>, vector<1x4x32x8xf32>
    %253 = vector.shape_cast %252 : vector<1x4x32x8xf32> to vector<4x32x8xf32>
    %c1_119 = arith.constant 1 : index
    %c0_120 = arith.constant 0 : index
    %c0_121 = arith.constant 0 : index
    %c0_122 = arith.constant 0 : index
    %254 = vector.load %arg8[%c1_119, %c0_120, %c0_121, %c0_122] : memref<2x4x1x8xf32, #tpu.memory_space<vmem>>, vector<1x4x1x8xf32>
    %255 = vector.shape_cast %254 : vector<1x4x1x8xf32> to vector<4x1x8xf32>
    %c1_123 = arith.constant 1 : index
    %c0_124 = arith.constant 0 : index
    %c0_125 = arith.constant 0 : index
    %c0_126 = arith.constant 0 : index
    %256 = vector.load %arg9[%c1_123, %c0_124, %c0_125, %c0_126] : memref<2x4x32x8xf32, #tpu.memory_space<vmem>>, vector<1x4x32x8xf32>
    %257 = vector.shape_cast %256 : vector<1x4x32x8xf32> to vector<4x32x8xf32>
    %c1_127 = arith.constant 1 : index
    %c0_128 = arith.constant 0 : index
    %c0_129 = arith.constant 0 : index
    %c0_130 = arith.constant 0 : index
    %258 = vector.load %arg10[%c1_127, %c0_128, %c0_129, %c0_130] : memref<2x4x1x8xf32, #tpu.memory_space<vmem>>, vector<1x4x1x8xf32>
    %259 = vector.shape_cast %258 : vector<1x4x1x8xf32> to vector<4x1x8xf32>
    %c1_131 = arith.constant 1 : index
    %c0_132 = arith.constant 0 : index
    %c0_133 = arith.constant 0 : index
    %c0_134 = arith.constant 0 : index
    %260 = vector.load %arg11[%c1_131, %c0_132, %c0_133, %c0_134] : memref<2x4x8x32xf32, #tpu.memory_space<vmem>>, vector<1x4x8x32xf32>
    %261 = vector.shape_cast %260 : vector<1x4x8x32xf32> to vector<4x8x32xf32>
    %c1_135 = arith.constant 1 : index
    %c0_136 = arith.constant 0 : index
    %c0_137 = arith.constant 0 : index
    %262 = vector.load %arg12[%c1_135, %c0_136, %c0_137] : memref<2x1x32xf32, #tpu.memory_space<vmem>>, vector<1x1x32xf32>
    %263 = vector.shape_cast %262 : vector<1x1x32xf32> to vector<1x32xf32>
    %264 = vector.extract_strided_slice %247 {offsets = [0, 0], sizes = [8, 32], strides = [1, 1]} : vector<16x32xf32> to vector<8x32xf32>
    %265 = vector.shape_cast %264 : vector<8x32xf32> to vector<1x8x32xf32>
    %266 = vector.shape_cast %265 : vector<1x8x32xf32> to vector<1x8x32xf32>
    %267 = vector.broadcast %266 : vector<1x8x32xf32> to vector<4x8x32xf32>
    "tpu.trace_start"() <{level = 10 : i32, message = "nsh,nhd->nsd"}> : () -> ()
    %cst_138 = arith.constant dense<0.000000e+00> : vector<4x8x8xf32>
    %268 = tpu.matmul %267, %249, %cst_138 {dimension_numbers = #tpu.dot_dimension_numbers<[2], [1], [1], [2], [0, 0, 0, 1, 1, 2], [0], [0]>} : vector<4x8x32xf32>, vector<4x32x8xf32>, vector<4x8x8xf32> -> vector<4x8x8xf32>
    "tpu.trace_stop"() : () -> ()
    %269 = vector.broadcast %251 : vector<4x1x8xf32> to vector<4x8x8xf32>
    %270 = arith.addf %268, %269 : vector<4x8x8xf32>
    "tpu.trace_start"() <{level = 10 : i32, message = "nsh,nhd->nsd"}> : () -> ()
    %cst_139 = arith.constant dense<0.000000e+00> : vector<4x8x8xf32>
    %271 = tpu.matmul %267, %253, %cst_139 {dimension_numbers = #tpu.dot_dimension_numbers<[2], [1], [1], [2], [0, 0, 0, 1, 1, 2], [0], [0]>} : vector<4x8x32xf32>, vector<4x32x8xf32>, vector<4x8x8xf32> -> vector<4x8x8xf32>
    "tpu.trace_stop"() : () -> ()
    %272 = vector.broadcast %255 : vector<4x1x8xf32> to vector<4x8x8xf32>
    %273 = arith.addf %271, %272 : vector<4x8x8xf32>
    "tpu.trace_start"() <{level = 10 : i32, message = "nsh,nhd->nsd"}> : () -> ()
    %cst_140 = arith.constant dense<0.000000e+00> : vector<4x8x8xf32>
    %274 = tpu.matmul %267, %257, %cst_140 {dimension_numbers = #tpu.dot_dimension_numbers<[2], [1], [1], [2], [0, 0, 0, 1, 1, 2], [0], [0]>} : vector<4x8x32xf32>, vector<4x32x8xf32>, vector<4x8x8xf32> -> vector<4x8x8xf32>
    "tpu.trace_stop"() : () -> ()
    %275 = vector.broadcast %259 : vector<4x1x8xf32> to vector<4x8x8xf32>
    %276 = arith.addf %274, %275 : vector<4x8x8xf32>
    "tpu.trace_start"() <{level = 10 : i32, message = "nqd,nkd->nqk"}> : () -> ()
    %cst_141 = arith.constant dense<0.000000e+00> : vector<4x8x8xf32>
    %277 = tpu.matmul %270, %273, %cst_141 {dimension_numbers = #tpu.dot_dimension_numbers<[2], [2], [1], [1], [0, 0, 0, 1, 1, 1], [0], [0]>} : vector<4x8x8xf32>, vector<4x8x8xf32>, vector<4x8x8xf32> -> vector<4x8x8xf32>
    "tpu.trace_stop"() : () -> ()
    %cst_142 = arith.constant 0.353553385 : f32
    %278 = vector.broadcast %cst_142 : f32 to vector<4x8x8xf32>
    %279 = arith.mulf %277, %278 : vector<4x8x8xf32>
    %280 = vector.extract_strided_slice %4 {offsets = [0, 0], sizes = [1, 8], strides = [1, 1]} : vector<2x8xf32> to vector<1x8xf32>
    %281 = vector.shape_cast %280 : vector<1x8xf32> to vector<1x1x8xf32>
    %282 = vector.broadcast %281 : vector<1x1x8xf32> to vector<4x8x8xf32>
    %283 = arith.addf %279, %282 : vector<4x8x8xf32>
    %cst_143 = arith.constant dense<0xFF800000> : vector<4x8xf32>
    %284 = vector.multi_reduction <maximumf>, %283, %cst_143 [2] : vector<4x8x8xf32> to vector<4x8xf32>
    %285 = vector.shape_cast %284 : vector<4x8xf32> to vector<4x8x1xf32>
    %286 = vector.broadcast %285 : vector<4x8x1xf32> to vector<4x8x8xf32>
    %287 = arith.subf %283, %286 : vector<4x8x8xf32>
    %288 = math.exp %287 : vector<4x8x8xf32>
    %cst_144 = arith.constant dense<0.000000e+00> : vector<4x8xf32>
    %289 = vector.multi_reduction <add>, %288, %cst_144 [2] : vector<4x8x8xf32> to vector<4x8xf32>
    %290 = vector.shape_cast %289 : vector<4x8xf32> to vector<4x8x1xf32>
    %291 = tpu.reciprocal %290 {approx = true} : vector<4x8x1xf32> -> vector<4x8x1xf32>
    %292 = vector.broadcast %291 : vector<4x8x1xf32> to vector<4x8x8xf32>
    %293 = arith.mulf %288, %292 : vector<4x8x8xf32>
    "tpu.trace_start"() <{level = 10 : i32, message = "nqk,nkd->nqd"}> : () -> ()
    %cst_145 = arith.constant dense<0.000000e+00> : vector<4x8x8xf32>
    %294 = tpu.matmul %293, %276, %cst_145 {dimension_numbers = #tpu.dot_dimension_numbers<[2], [1], [1], [2], [0, 0, 0, 1, 1, 2], [0], [0]>} : vector<4x8x8xf32>, vector<4x8x8xf32>, vector<4x8x8xf32> -> vector<4x8x8xf32>
    "tpu.trace_stop"() : () -> ()
    %295 = vector.shape_cast %263 : vector<1x32xf32> to vector<1x32xf32>
    %296 = vector.broadcast %295 : vector<1x32xf32> to vector<8x32xf32>
    %297 = vector.extract_strided_slice %294 {offsets = [0, 0, 0], sizes = [1, 8, 8], strides = [1, 1, 1]} : vector<4x8x8xf32> to vector<1x8x8xf32>
    %298 = vector.shape_cast %297 : vector<1x8x8xf32> to vector<8x8xf32>
    %299 = vector.extract_strided_slice %261 {offsets = [0, 0, 0], sizes = [1, 8, 32], strides = [1, 1, 1]} : vector<4x8x32xf32> to vector<1x8x32xf32>
    %300 = vector.shape_cast %299 : vector<1x8x32xf32> to vector<8x32xf32>
    %cst_146 = arith.constant dense<0.000000e+00> : vector<8x32xf32>
    %301 = tpu.matmul %298, %300, %cst_146 {dimension_numbers = #tpu.dot_dimension_numbers<[1], [0], [0], [1], [0, 0, 1, 1], [], []>} : vector<8x8xf32>, vector<8x32xf32>, vector<8x32xf32> -> vector<8x32xf32>
    %302 = arith.addf %296, %301 : vector<8x32xf32>
    %303 = vector.extract_strided_slice %294 {offsets = [1, 0, 0], sizes = [1, 8, 8], strides = [1, 1, 1]} : vector<4x8x8xf32> to vector<1x8x8xf32>
    %304 = vector.shape_cast %303 : vector<1x8x8xf32> to vector<8x8xf32>
    %305 = vector.extract_strided_slice %261 {offsets = [1, 0, 0], sizes = [1, 8, 32], strides = [1, 1, 1]} : vector<4x8x32xf32> to vector<1x8x32xf32>
    %306 = vector.shape_cast %305 : vector<1x8x32xf32> to vector<8x32xf32>
    %cst_147 = arith.constant dense<0.000000e+00> : vector<8x32xf32>
    %307 = tpu.matmul %304, %306, %cst_147 {dimension_numbers = #tpu.dot_dimension_numbers<[1], [0], [0], [1], [0, 0, 1, 1], [], []>} : vector<8x8xf32>, vector<8x32xf32>, vector<8x32xf32> -> vector<8x32xf32>
    %308 = arith.addf %302, %307 : vector<8x32xf32>
    %309 = vector.extract_strided_slice %294 {offsets = [2, 0, 0], sizes = [1, 8, 8], strides = [1, 1, 1]} : vector<4x8x8xf32> to vector<1x8x8xf32>
    %310 = vector.shape_cast %309 : vector<1x8x8xf32> to vector<8x8xf32>
    %311 = vector.extract_strided_slice %261 {offsets = [2, 0, 0], sizes = [1, 8, 32], strides = [1, 1, 1]} : vector<4x8x32xf32> to vector<1x8x32xf32>
    %312 = vector.shape_cast %311 : vector<1x8x32xf32> to vector<8x32xf32>
    %cst_148 = arith.constant dense<0.000000e+00> : vector<8x32xf32>
    %313 = tpu.matmul %310, %312, %cst_148 {dimension_numbers = #tpu.dot_dimension_numbers<[1], [0], [0], [1], [0, 0, 1, 1], [], []>} : vector<8x8xf32>, vector<8x32xf32>, vector<8x32xf32> -> vector<8x32xf32>
    %314 = arith.addf %308, %313 : vector<8x32xf32>
    %315 = vector.extract_strided_slice %294 {offsets = [3, 0, 0], sizes = [1, 8, 8], strides = [1, 1, 1]} : vector<4x8x8xf32> to vector<1x8x8xf32>
    %316 = vector.shape_cast %315 : vector<1x8x8xf32> to vector<8x8xf32>
    %317 = vector.extract_strided_slice %261 {offsets = [3, 0, 0], sizes = [1, 8, 32], strides = [1, 1, 1]} : vector<4x8x32xf32> to vector<1x8x32xf32>
    %318 = vector.shape_cast %317 : vector<1x8x32xf32> to vector<8x32xf32>
    %cst_149 = arith.constant dense<0.000000e+00> : vector<8x32xf32>
    %319 = tpu.matmul %316, %318, %cst_149 {dimension_numbers = #tpu.dot_dimension_numbers<[1], [0], [0], [1], [0, 0, 1, 1], [], []>} : vector<8x8xf32>, vector<8x32xf32>, vector<8x32xf32> -> vector<8x32xf32>
    %320 = arith.addf %314, %319 : vector<8x32xf32>
    %321 = vector.extract_strided_slice %247 {offsets = [8, 0], sizes = [8, 32], strides = [1, 1]} : vector<16x32xf32> to vector<8x32xf32>
    %322 = vector.shape_cast %321 : vector<8x32xf32> to vector<1x8x32xf32>
    %323 = vector.shape_cast %322 : vector<1x8x32xf32> to vector<1x8x32xf32>
    %324 = vector.broadcast %323 : vector<1x8x32xf32> to vector<4x8x32xf32>
    "tpu.trace_start"() <{level = 10 : i32, message = "nsh,nhd->nsd"}> : () -> ()
    %cst_150 = arith.constant dense<0.000000e+00> : vector<4x8x8xf32>
    %325 = tpu.matmul %324, %249, %cst_150 {dimension_numbers = #tpu.dot_dimension_numbers<[2], [1], [1], [2], [0, 0, 0, 1, 1, 2], [0], [0]>} : vector<4x8x32xf32>, vector<4x32x8xf32>, vector<4x8x8xf32> -> vector<4x8x8xf32>
    "tpu.trace_stop"() : () -> ()
    %326 = vector.broadcast %251 : vector<4x1x8xf32> to vector<4x8x8xf32>
    %327 = arith.addf %325, %326 : vector<4x8x8xf32>
    "tpu.trace_start"() <{level = 10 : i32, message = "nsh,nhd->nsd"}> : () -> ()
    %cst_151 = arith.constant dense<0.000000e+00> : vector<4x8x8xf32>
    %328 = tpu.matmul %324, %253, %cst_151 {dimension_numbers = #tpu.dot_dimension_numbers<[2], [1], [1], [2], [0, 0, 0, 1, 1, 2], [0], [0]>} : vector<4x8x32xf32>, vector<4x32x8xf32>, vector<4x8x8xf32> -> vector<4x8x8xf32>
    "tpu.trace_stop"() : () -> ()
    %329 = vector.broadcast %255 : vector<4x1x8xf32> to vector<4x8x8xf32>
    %330 = arith.addf %328, %329 : vector<4x8x8xf32>
    "tpu.trace_start"() <{level = 10 : i32, message = "nsh,nhd->nsd"}> : () -> ()
    %cst_152 = arith.constant dense<0.000000e+00> : vector<4x8x8xf32>
    %331 = tpu.matmul %324, %257, %cst_152 {dimension_numbers = #tpu.dot_dimension_numbers<[2], [1], [1], [2], [0, 0, 0, 1, 1, 2], [0], [0]>} : vector<4x8x32xf32>, vector<4x32x8xf32>, vector<4x8x8xf32> -> vector<4x8x8xf32>
    "tpu.trace_stop"() : () -> ()
    %332 = vector.broadcast %259 : vector<4x1x8xf32> to vector<4x8x8xf32>
    %333 = arith.addf %331, %332 : vector<4x8x8xf32>
    "tpu.trace_start"() <{level = 10 : i32, message = "nqd,nkd->nqk"}> : () -> ()
    %cst_153 = arith.constant dense<0.000000e+00> : vector<4x8x8xf32>
    %334 = tpu.matmul %327, %330, %cst_153 {dimension_numbers = #tpu.dot_dimension_numbers<[2], [2], [1], [1], [0, 0, 0, 1, 1, 1], [0], [0]>} : vector<4x8x8xf32>, vector<4x8x8xf32>, vector<4x8x8xf32> -> vector<4x8x8xf32>
    "tpu.trace_stop"() : () -> ()
    %cst_154 = arith.constant 0.353553385 : f32
    %335 = vector.broadcast %cst_154 : f32 to vector<4x8x8xf32>
    %336 = arith.mulf %334, %335 : vector<4x8x8xf32>
    %337 = vector.extract_strided_slice %4 {offsets = [1, 0], sizes = [1, 8], strides = [1, 1]} : vector<2x8xf32> to vector<1x8xf32>
    %338 = vector.shape_cast %337 : vector<1x8xf32> to vector<1x1x8xf32>
    %339 = vector.broadcast %338 : vector<1x1x8xf32> to vector<4x8x8xf32>
    %340 = arith.addf %336, %339 : vector<4x8x8xf32>
    %cst_155 = arith.constant dense<0xFF800000> : vector<4x8xf32>
    %341 = vector.multi_reduction <maximumf>, %340, %cst_155 [2] : vector<4x8x8xf32> to vector<4x8xf32>
    %342 = vector.shape_cast %341 : vector<4x8xf32> to vector<4x8x1xf32>
    %343 = vector.broadcast %342 : vector<4x8x1xf32> to vector<4x8x8xf32>
    %344 = arith.subf %340, %343 : vector<4x8x8xf32>
    %345 = math.exp %344 : vector<4x8x8xf32>
    %cst_156 = arith.constant dense<0.000000e+00> : vector<4x8xf32>
    %346 = vector.multi_reduction <add>, %345, %cst_156 [2] : vector<4x8x8xf32> to vector<4x8xf32>
    %347 = vector.shape_cast %346 : vector<4x8xf32> to vector<4x8x1xf32>
    %348 = tpu.reciprocal %347 {approx = true} : vector<4x8x1xf32> -> vector<4x8x1xf32>
    %349 = vector.broadcast %348 : vector<4x8x1xf32> to vector<4x8x8xf32>
    %350 = arith.mulf %345, %349 : vector<4x8x8xf32>
    "tpu.trace_start"() <{level = 10 : i32, message = "nqk,nkd->nqd"}> : () -> ()
    %cst_157 = arith.constant dense<0.000000e+00> : vector<4x8x8xf32>
    %351 = tpu.matmul %350, %333, %cst_157 {dimension_numbers = #tpu.dot_dimension_numbers<[2], [1], [1], [2], [0, 0, 0, 1, 1, 2], [0], [0]>} : vector<4x8x8xf32>, vector<4x8x8xf32>, vector<4x8x8xf32> -> vector<4x8x8xf32>
    "tpu.trace_stop"() : () -> ()
    %352 = vector.shape_cast %263 : vector<1x32xf32> to vector<1x32xf32>
    %353 = vector.broadcast %352 : vector<1x32xf32> to vector<8x32xf32>
    %354 = vector.extract_strided_slice %351 {offsets = [0, 0, 0], sizes = [1, 8, 8], strides = [1, 1, 1]} : vector<4x8x8xf32> to vector<1x8x8xf32>
    %355 = vector.shape_cast %354 : vector<1x8x8xf32> to vector<8x8xf32>
    %356 = vector.extract_strided_slice %261 {offsets = [0, 0, 0], sizes = [1, 8, 32], strides = [1, 1, 1]} : vector<4x8x32xf32> to vector<1x8x32xf32>
    %357 = vector.shape_cast %356 : vector<1x8x32xf32> to vector<8x32xf32>
    %cst_158 = arith.constant dense<0.000000e+00> : vector<8x32xf32>
    %358 = tpu.matmul %355, %357, %cst_158 {dimension_numbers = #tpu.dot_dimension_numbers<[1], [0], [0], [1], [0, 0, 1, 1], [], []>} : vector<8x8xf32>, vector<8x32xf32>, vector<8x32xf32> -> vector<8x32xf32>
    %359 = arith.addf %353, %358 : vector<8x32xf32>
    %360 = vector.extract_strided_slice %351 {offsets = [1, 0, 0], sizes = [1, 8, 8], strides = [1, 1, 1]} : vector<4x8x8xf32> to vector<1x8x8xf32>
    %361 = vector.shape_cast %360 : vector<1x8x8xf32> to vector<8x8xf32>
    %362 = vector.extract_strided_slice %261 {offsets = [1, 0, 0], sizes = [1, 8, 32], strides = [1, 1, 1]} : vector<4x8x32xf32> to vector<1x8x32xf32>
    %363 = vector.shape_cast %362 : vector<1x8x32xf32> to vector<8x32xf32>
    %cst_159 = arith.constant dense<0.000000e+00> : vector<8x32xf32>
    %364 = tpu.matmul %361, %363, %cst_159 {dimension_numbers = #tpu.dot_dimension_numbers<[1], [0], [0], [1], [0, 0, 1, 1], [], []>} : vector<8x8xf32>, vector<8x32xf32>, vector<8x32xf32> -> vector<8x32xf32>
    %365 = arith.addf %359, %364 : vector<8x32xf32>
    %366 = vector.extract_strided_slice %351 {offsets = [2, 0, 0], sizes = [1, 8, 8], strides = [1, 1, 1]} : vector<4x8x8xf32> to vector<1x8x8xf32>
    %367 = vector.shape_cast %366 : vector<1x8x8xf32> to vector<8x8xf32>
    %368 = vector.extract_strided_slice %261 {offsets = [2, 0, 0], sizes = [1, 8, 32], strides = [1, 1, 1]} : vector<4x8x32xf32> to vector<1x8x32xf32>
    %369 = vector.shape_cast %368 : vector<1x8x32xf32> to vector<8x32xf32>
    %cst_160 = arith.constant dense<0.000000e+00> : vector<8x32xf32>
    %370 = tpu.matmul %367, %369, %cst_160 {dimension_numbers = #tpu.dot_dimension_numbers<[1], [0], [0], [1], [0, 0, 1, 1], [], []>} : vector<8x8xf32>, vector<8x32xf32>, vector<8x32xf32> -> vector<8x32xf32>
    %371 = arith.addf %365, %370 : vector<8x32xf32>
    %372 = vector.extract_strided_slice %351 {offsets = [3, 0, 0], sizes = [1, 8, 8], strides = [1, 1, 1]} : vector<4x8x8xf32> to vector<1x8x8xf32>
    %373 = vector.shape_cast %372 : vector<1x8x8xf32> to vector<8x8xf32>
    %374 = vector.extract_strided_slice %261 {offsets = [3, 0, 0], sizes = [1, 8, 32], strides = [1, 1, 1]} : vector<4x8x32xf32> to vector<1x8x32xf32>
    %375 = vector.shape_cast %374 : vector<1x8x32xf32> to vector<8x32xf32>
    %cst_161 = arith.constant dense<0.000000e+00> : vector<8x32xf32>
    %376 = tpu.matmul %373, %375, %cst_161 {dimension_numbers = #tpu.dot_dimension_numbers<[1], [0], [0], [1], [0, 0, 1, 1], [], []>} : vector<8x8xf32>, vector<8x32xf32>, vector<8x32xf32> -> vector<8x32xf32>
    %377 = arith.addf %371, %376 : vector<8x32xf32>
    %378 = tpu.concatenate %320, %377 in 0 : vector<8x32xf32>, vector<8x32xf32> -> vector<16x32xf32>
    %379 = arith.addf %247, %378 : vector<16x32xf32>
    %c1_162 = arith.constant 1 : index
    %c0_163 = arith.constant 0 : index
    %c0_164 = arith.constant 0 : index
    %380 = vector.load %arg13[%c1_162, %c0_163, %c0_164] : memref<2x1x32xf32, #tpu.memory_space<vmem>>, vector<1x1x32xf32>
    %381 = vector.shape_cast %380 : vector<1x1x32xf32> to vector<1x32xf32>
    %c1_165 = arith.constant 1 : index
    %c0_166 = arith.constant 0 : index
    %c0_167 = arith.constant 0 : index
    %382 = vector.load %arg14[%c1_165, %c0_166, %c0_167] : memref<2x1x32xf32, #tpu.memory_space<vmem>>, vector<1x1x32xf32>
    %383 = vector.shape_cast %382 : vector<1x1x32xf32> to vector<1x32xf32>
    %cst_168 = arith.constant dense<0.000000e+00> : vector<16xf32>
    %384 = vector.multi_reduction <add>, %379, %cst_168 [1] : vector<16x32xf32> to vector<16xf32>
    %385 = vector.shape_cast %384 : vector<16xf32> to vector<16x1xf32>
    %cst_169 = arith.constant 3.200000e+01 : f32
    %386 = vector.broadcast %cst_169 : f32 to vector<16x1xf32>
    %387 = arith.divf %385, %386 : vector<16x1xf32>
    %388 = vector.broadcast %387 : vector<16x1xf32> to vector<16x32xf32>
    %389 = arith.subf %379, %388 : vector<16x32xf32>
    %390 = vector.broadcast %387 : vector<16x1xf32> to vector<16x32xf32>
    %391 = arith.subf %379, %390 : vector<16x32xf32>
    %392 = arith.mulf %389, %391 : vector<16x32xf32>
    %cst_170 = arith.constant dense<0.000000e+00> : vector<16xf32>
    %393 = vector.multi_reduction <add>, %392, %cst_170 [1] : vector<16x32xf32> to vector<16xf32>
    %394 = vector.shape_cast %393 : vector<16xf32> to vector<16x1xf32>
    %cst_171 = arith.constant 3.200000e+01 : f32
    %395 = vector.broadcast %cst_171 : f32 to vector<16x1xf32>
    %396 = arith.divf %394, %395 : vector<16x1xf32>
    %397 = vector.broadcast %387 : vector<16x1xf32> to vector<16x32xf32>
    %398 = arith.subf %379, %397 : vector<16x32xf32>
    %cst_172 = arith.constant 9.99999996E-13 : f32
    %399 = vector.broadcast %cst_172 : f32 to vector<16x1xf32>
    %400 = arith.addf %396, %399 : vector<16x1xf32>
    %401 = math.rsqrt %400 : vector<16x1xf32>
    %402 = vector.broadcast %401 : vector<16x1xf32> to vector<16x32xf32>
    %403 = arith.mulf %398, %402 : vector<16x32xf32>
    %404 = vector.broadcast %381 : vector<1x32xf32> to vector<16x32xf32>
    %405 = arith.mulf %403, %404 : vector<16x32xf32>
    %406 = vector.broadcast %383 : vector<1x32xf32> to vector<16x32xf32>
    %407 = arith.addf %405, %406 : vector<16x32xf32>
    %c1_173 = arith.constant 1 : index
    %c0_174 = arith.constant 0 : index
    %c0_175 = arith.constant 0 : index
    %408 = vector.load %arg15[%c1_173, %c0_174, %c0_175] : memref<2x32x64xf32, #tpu.memory_space<vmem>>, vector<1x32x64xf32>
    %409 = vector.shape_cast %408 : vector<1x32x64xf32> to vector<32x64xf32>
    %cst_176 = arith.constant dense<0.000000e+00> : vector<16x64xf32>
    %410 = tpu.matmul %407, %409, %cst_176 {dimension_numbers = #tpu.dot_dimension_numbers<[1], [0], [0], [1], [0, 0, 1, 1], [], []>} : vector<16x32xf32>, vector<32x64xf32>, vector<16x64xf32> -> vector<16x64xf32>
    %c1_177 = arith.constant 1 : index
    %c0_178 = arith.constant 0 : index
    %c0_179 = arith.constant 0 : index
    %411 = vector.load %arg16[%c1_177, %c0_178, %c0_179] : memref<2x1x64xf32, #tpu.memory_space<vmem>>, vector<1x1x64xf32>
    %412 = vector.shape_cast %411 : vector<1x1x64xf32> to vector<1x64xf32>
    %413 = vector.broadcast %412 : vector<1x64xf32> to vector<16x64xf32>
    %414 = arith.addf %410, %413 : vector<16x64xf32>
    %415 = arith.mulf %414, %414 : vector<16x64xf32>
    %416 = arith.mulf %414, %415 : vector<16x64xf32>
    %cst_180 = arith.constant 4.471500e-02 : f32
    %417 = vector.broadcast %cst_180 : f32 to vector<16x64xf32>
    %418 = arith.mulf %417, %416 : vector<16x64xf32>
    %419 = arith.addf %414, %418 : vector<16x64xf32>
    %cst_181 = arith.constant 0.797884583 : f32
    %420 = vector.broadcast %cst_181 : f32 to vector<16x64xf32>
    %421 = arith.mulf %420, %419 : vector<16x64xf32>
    %422 = math.tanh %421 : vector<16x64xf32>
    %cst_182 = arith.constant 1.000000e+00 : f32
    %423 = vector.broadcast %cst_182 : f32 to vector<16x64xf32>
    %424 = arith.addf %423, %422 : vector<16x64xf32>
    %cst_183 = arith.constant 5.000000e-01 : f32
    %425 = vector.broadcast %cst_183 : f32 to vector<16x64xf32>
    %426 = arith.mulf %425, %424 : vector<16x64xf32>
    %427 = arith.mulf %414, %426 : vector<16x64xf32>
    %c1_184 = arith.constant 1 : index
    %c0_185 = arith.constant 0 : index
    %c0_186 = arith.constant 0 : index
    %428 = vector.load %arg17[%c1_184, %c0_185, %c0_186] : memref<2x64x32xf32, #tpu.memory_space<vmem>>, vector<1x64x32xf32>
    %429 = vector.shape_cast %428 : vector<1x64x32xf32> to vector<64x32xf32>
    %cst_187 = arith.constant dense<0.000000e+00> : vector<16x32xf32>
    %430 = tpu.matmul %427, %429, %cst_187 {dimension_numbers = #tpu.dot_dimension_numbers<[1], [0], [0], [1], [0, 0, 1, 1], [], []>} : vector<16x64xf32>, vector<64x32xf32>, vector<16x32xf32> -> vector<16x32xf32>
    %c1_188 = arith.constant 1 : index
    %c0_189 = arith.constant 0 : index
    %c0_190 = arith.constant 0 : index
    %431 = vector.load %arg18[%c1_188, %c0_189, %c0_190] : memref<2x1x32xf32, #tpu.memory_space<vmem>>, vector<1x1x32xf32>
    %432 = vector.shape_cast %431 : vector<1x1x32xf32> to vector<1x32xf32>
    %433 = vector.broadcast %432 : vector<1x32xf32> to vector<16x32xf32>
    %434 = arith.addf %430, %433 : vector<16x32xf32>
    %435 = arith.addf %407, %434 : vector<16x32xf32>
    %c1_191 = arith.constant 1 : index
    %c0_192 = arith.constant 0 : index
    %c0_193 = arith.constant 0 : index
    %436 = vector.load %arg19[%c1_191, %c0_192, %c0_193] : memref<2x1x32xf32, #tpu.memory_space<vmem>>, vector<1x1x32xf32>
    %437 = vector.shape_cast %436 : vector<1x1x32xf32> to vector<1x32xf32>
    %c1_194 = arith.constant 1 : index
    %c0_195 = arith.constant 0 : index
    %c0_196 = arith.constant 0 : index
    %438 = vector.load %arg20[%c1_194, %c0_195, %c0_196] : memref<2x1x32xf32, #tpu.memory_space<vmem>>, vector<1x1x32xf32>
    %439 = vector.shape_cast %438 : vector<1x1x32xf32> to vector<1x32xf32>
    %cst_197 = arith.constant dense<0.000000e+00> : vector<16xf32>
    %440 = vector.multi_reduction <add>, %435, %cst_197 [1] : vector<16x32xf32> to vector<16xf32>
    %441 = vector.shape_cast %440 : vector<16xf32> to vector<16x1xf32>
    %cst_198 = arith.constant 3.200000e+01 : f32
    %442 = vector.broadcast %cst_198 : f32 to vector<16x1xf32>
    %443 = arith.divf %441, %442 : vector<16x1xf32>
    %444 = vector.broadcast %443 : vector<16x1xf32> to vector<16x32xf32>
    %445 = arith.subf %435, %444 : vector<16x32xf32>
    %446 = vector.broadcast %443 : vector<16x1xf32> to vector<16x32xf32>
    %447 = arith.subf %435, %446 : vector<16x32xf32>
    %448 = arith.mulf %445, %447 : vector<16x32xf32>
    %cst_199 = arith.constant dense<0.000000e+00> : vector<16xf32>
    %449 = vector.multi_reduction <add>, %448, %cst_199 [1] : vector<16x32xf32> to vector<16xf32>
    %450 = vector.shape_cast %449 : vector<16xf32> to vector<16x1xf32>
    %cst_200 = arith.constant 3.200000e+01 : f32
    %451 = vector.broadcast %cst_200 : f32 to vector<16x1xf32>
    %452 = arith.divf %450, %451 : vector<16x1xf32>
    %453 = vector.broadcast %443 : vector<16x1xf32> to vector<16x32xf32>
    %454 = arith.subf %435, %453 : vector<16x32xf32>
    %cst_201 = arith.constant 9.99999996E-13 : f32
    %455 = vector.broadcast %cst_201 : f32 to vector<16x1xf32>
    %456 = arith.addf %452, %455 : vector<16x1xf32>
    %457 = math.rsqrt %456 : vector<16x1xf32>
    %458 = vector.broadcast %457 : vector<16x1xf32> to vector<16x32xf32>
    %459 = arith.mulf %454, %458 : vector<16x32xf32>
    %460 = vector.broadcast %437 : vector<1x32xf32> to vector<16x32xf32>
    %461 = arith.mulf %459, %460 : vector<16x32xf32>
    %462 = vector.broadcast %439 : vector<1x32xf32> to vector<16x32xf32>
    %463 = arith.addf %461, %462 : vector<16x32xf32>
    %c0_202 = arith.constant 0 : index
    %c0_203 = arith.constant 0 : index
    %464 = vector.load %arg21[%c0_202, %c0_203] : memref<32x128xf32, #tpu.memory_space<vmem>>, vector<32x128xf32>
    %cst_204 = arith.constant dense<0.000000e+00> : vector<16x128xf32>
    %465 = tpu.matmul %463, %464, %cst_204 {dimension_numbers = #tpu.dot_dimension_numbers<[1], [0], [0], [1], [0, 0, 1, 1], [], []>} : vector<16x32xf32>, vector<32x128xf32>, vector<16x128xf32> -> vector<16x128xf32>
    %c0_205 = arith.constant 0 : index
    %c0_206 = arith.constant 0 : index
    %466 = vector.load %arg22[%c0_205, %c0_206] : memref<1x128xf32, #tpu.memory_space<vmem>>, vector<1x128xf32>
    %467 = vector.broadcast %466 : vector<1x128xf32> to vector<16x128xf32>
    %468 = arith.addf %465, %467 : vector<16x128xf32>
    %c0_207 = arith.constant 0 : index
    %c0_208 = arith.constant 0 : index
    %469 = vector.load %arg23[%c0_207, %c0_208] : memref<16x128xf32, #tpu.memory_space<vmem>>, vector<16x128xf32>
    tpu.vector_store %arg23[%c0_207, %c0_208], %468 {strides = array<i32>} : memref<16x128xf32, #tpu.memory_space<vmem>>, vector<16x128xf32>,
    return
  }
  func.func @transform_0(%arg0: i32) -> (i32, i32) {
    %c0_i32 = arith.constant 0 : i32
    %c0_i32_0 = arith.constant 0 : i32
    %c0_i32_1 = arith.constant 0 : i32
    return %c0_i32, %c0_i32_0 : i32, i32
  }
  func.func @transform_1(%arg0: i32) -> (i32, i32) {
    %c0_i32 = arith.constant 0 : i32
    %c0_i32_0 = arith.constant 0 : i32
    %c0_i32_1 = arith.constant 0 : i32
    return %c0_i32, %c0_i32_0 : i32, i32
  }
  func.func @transform_2(%arg0: i32) -> (i32, i32) {
    %c0_i32 = arith.constant 0 : i32
    %c0_i32_0 = arith.constant 0 : i32
    %c0_i32_1 = arith.constant 0 : i32
    return %c0_i32, %c0_i32_0 : i32, i32
  }
  func.func @transform_3(%arg0: i32) -> (i32, i32) {
    %c0_i32 = arith.constant 0 : i32
    %c0_i32_0 = arith.constant 0 : i32
    %c0_i32_1 = arith.constant 0 : i32
    return %c0_i32, %c0_i32_0 : i32, i32
  }
  func.func @transform_4(%arg0: i32) -> (i32, i32, i32, i32) {
    %c0_i32 = arith.constant 0 : i32
    %c0_i32_0 = arith.constant 0 : i32
    %c0_i32_1 = arith.constant 0 : i32
    %c0_i32_2 = arith.constant 0 : i32
    %c0_i32_3 = arith.constant 0 : i32
    return %c0_i32, %c0_i32_0, %c0_i32_1, %c0_i32_2 : i32, i32, i32, i32
  }
  func.func @transform_5(%arg0: i32) -> (i32, i32, i32, i32) {
    %c0_i32 = arith.constant 0 : i32
    %c0_i32_0 = arith.constant 0 : i32
    %c0_i32_1 = arith.constant 0 : i32
    %c0_i32_2 = arith.constant 0 : i32
    %c0_i32_3 = arith.constant 0 : i32
    return %c0_i32, %c0_i32_0, %c0_i32_1, %c0_i32_2 : i32, i32, i32, i32
  }
  func.func @transform_6(%arg0: i32) -> (i32, i32, i32, i32) {
    %c0_i32 = arith.constant 0 : i32
    %c0_i32_0 = arith.constant 0 : i32
    %c0_i32_1 = arith.constant 0 : i32
    %c0_i32_2 = arith.constant 0 : i32
    %c0_i32_3 = arith.constant 0 : i32
    return %c0_i32, %c0_i32_0, %c0_i32_1, %c0_i32_2 : i32, i32, i32, i32
  }
  func.func @transform_7(%arg0: i32) -> (i32, i32, i32, i32) {
    %c0_i32 = arith.constant 0 : i32
    %c0_i32_0 = arith.constant 0 : i32
    %c0_i32_1 = arith.constant 0 : i32
    %c0_i32_2 = arith.constant 0 : i32
    %c0_i32_3 = arith.constant 0 : i32
    return %c0_i32, %c0_i32_0, %c0_i32_1, %c0_i32_2 : i32, i32, i32, i32
  }
  func.func @transform_8(%arg0: i32) -> (i32, i32, i32, i32) {
    %c0_i32 = arith.constant 0 : i32
    %c0_i32_0 = arith.constant 0 : i32
    %c0_i32_1 = arith.constant 0 : i32
    %c0_i32_2 = arith.constant 0 : i32
    %c0_i32_3 = arith.constant 0 : i32
    return %c0_i32, %c0_i32_0, %c0_i32_1, %c0_i32_2 : i32, i32, i32, i32
  }
  func.func @transform_9(%arg0: i32) -> (i32, i32, i32, i32) {
    %c0_i32 = arith.constant 0 : i32
    %c0_i32_0 = arith.constant 0 : i32
    %c0_i32_1 = arith.constant 0 : i32
    %c0_i32_2 = arith.constant 0 : i32
    %c0_i32_3 = arith.constant 0 : i32
    return %c0_i32, %c0_i32_0, %c0_i32_1, %c0_i32_2 : i32, i32, i32, i32
  }
  func.func @transform_10(%arg0: i32) -> (i32, i32, i32, i32) {
    %c0_i32 = arith.constant 0 : i32
    %c0_i32_0 = arith.constant 0 : i32
    %c0_i32_1 = arith.constant 0 : i32
    %c0_i32_2 = arith.constant 0 : i32
    %c0_i32_3 = arith.constant 0 : i32
    return %c0_i32, %c0_i32_0, %c0_i32_1, %c0_i32_2 : i32, i32, i32, i32
  }
  func.func @transform_11(%arg0: i32) -> (i32, i32, i32) {
    %c0_i32 = arith.constant 0 : i32
    %c0_i32_0 = arith.constant 0 : i32
    %c0_i32_1 = arith.constant 0 : i32
    %c0_i32_2 = arith.constant 0 : i32
    return %c0_i32, %c0_i32_0, %c0_i32_1 : i32, i32, i32
  }
  func.func @transform_12(%arg0: i32) -> (i32, i32, i32) {
    %c0_i32 = arith.constant 0 : i32
    %c0_i32_0 = arith.constant 0 : i32
    %c0_i32_1 = arith.constant 0 : i32
    %c0_i32_2 = arith.constant 0 : i32
    return %c0_i32, %c0_i32_0, %c0_i32_1 : i32, i32, i32
  }
  func.func @transform_13(%arg0: i32) -> (i32, i32, i32) {
    %c0_i32 = arith.constant 0 : i32
    %c0_i32_0 = arith.constant 0 : i32
    %c0_i32_1 = arith.constant 0 : i32
    %c0_i32_2 = arith.constant 0 : i32
    return %c0_i32, %c0_i32_0, %c0_i32_1 : i32, i32, i32
  }
  func.func @transform_14(%arg0: i32) -> (i32, i32, i32) {
    %c0_i32 = arith.constant 0 : i32
    %c0_i32_0 = arith.constant 0 : i32
    %c0_i32_1 = arith.constant 0 : i32
    %c0_i32_2 = arith.constant 0 : i32
    return %c0_i32, %c0_i32_0, %c0_i32_1 : i32, i32, i32
  }
  func.func @transform_15(%arg0: i32) -> (i32, i32, i32) {
    %c0_i32 = arith.constant 0 : i32
    %c0_i32_0 = arith.constant 0 : i32
    %c0_i32_1 = arith.constant 0 : i32
    %c0_i32_2 = arith.constant 0 : i32
    return %c0_i32, %c0_i32_0, %c0_i32_1 : i32, i32, i32
  }
  func.func @transform_16(%arg0: i32) -> (i32, i32, i32) {
    %c0_i32 = arith.constant 0 : i32
    %c0_i32_0 = arith.constant 0 : i32
    %c0_i32_1 = arith.constant 0 : i32
    %c0_i32_2 = arith.constant 0 : i32
    return %c0_i32, %c0_i32_0, %c0_i32_1 : i32, i32, i32
  }
  func.func @transform_17(%arg0: i32) -> (i32, i32, i32) {
    %c0_i32 = arith.constant 0 : i32
    %c0_i32_0 = arith.constant 0 : i32
    %c0_i32_1 = arith.constant 0 : i32
    %c0_i32_2 = arith.constant 0 : i32
    return %c0_i32, %c0_i32_0, %c0_i32_1 : i32, i32, i32
  }
  func.func @transform_18(%arg0: i32) -> (i32, i32, i32) {
    %c0_i32 = arith.constant 0 : i32
    %c0_i32_0 = arith.constant 0 : i32
    %c0_i32_1 = arith.constant 0 : i32
    %c0_i32_2 = arith.constant 0 : i32
    return %c0_i32, %c0_i32_0, %c0_i32_1 : i32, i32, i32
  }
  func.func @transform_19(%arg0: i32) -> (i32, i32, i32) {
    %c0_i32 = arith.constant 0 : i32
    %c0_i32_0 = arith.constant 0 : i32
    %c0_i32_1 = arith.constant 0 : i32
    %c0_i32_2 = arith.constant 0 : i32
    return %c0_i32, %c0_i32_0, %c0_i32_1 : i32, i32, i32
  }
  func.func @transform_20(%arg0: i32) -> (i32, i32) {
    %c0_i32 = arith.constant 0 : i32
    %c0_i32_0 = arith.constant 0 : i32
    %c0_i32_1 = arith.constant 0 : i32
    return %c0_i32, %c0_i32_0 : i32, i32
  }
  func.func @transform_21(%arg0: i32) -> (i32, i32) {
    %c0_i32 = arith.constant 0 : i32
    %c0_i32_0 = arith.constant 0 : i32
    %c0_i32_1 = arith.constant 0 : i32
    return %c0_i32, %c0_i32_0 : i32, i32
  }
  func.func @transform_22(%arg0: i32) -> (i32, i32) {
    %c0_i32 = arith.constant 0 : i32
    %c0_i32_0 = arith.constant 0 : i32
    %c0_i32_1 = arith.constant 0 : i32
    return %c0_i32, %c0_i32_0 : i32, i32
  }
}

</mosaic_0001>

<llo_original>
// kernel: multitask_forward.1
$region0: #{multitask_forward.1}
  #allocation0 [shape = 'u32[]', space=smem, size = 0x4, offset = 0x4, fixed_abs, tag = 'smem constant byte address 0x4 - core index']
  #allocation1 [shape = 'u32[72,128]{1,0:T(1,128)}', space=vmem, size = 0x9000, scoped, tag = 'internal scratch']
  %s0 = inlined_call_operand.vmem [shape: f32[2,8], index: 0, kind: input, shape index: {}]
  %s1 = inlined_call_operand.vmem [shape: f32[16,32], index: 1, kind: input, shape index: {}]
  %s2 = inlined_call_operand.vmem [shape: f32[1,32], index: 2, kind: input, shape index: {}]
  %s3 = inlined_call_operand.vmem [shape: f32[1,32], index: 3, kind: input, shape index: {}]
  %s4 = inlined_call_operand.vmem [shape: f32[2,4,32,8], index: 4, kind: input, shape index: {}]
  %s5 = inlined_call_operand.vmem [shape: f32[2,4,1,8], index: 5, kind: input, shape index: {}]
  %s6 = inlined_call_operand.vmem [shape: f32[2,4,32,8], index: 6, kind: input, shape index: {}]
  %s7 = inlined_call_operand.vmem [shape: f32[2,4,1,8], index: 7, kind: input, shape index: {}]
  %s8 = inlined_call_operand.vmem [shape: f32[2,4,32,8], index: 8, kind: input, shape index: {}]
  %s9 = inlined_call_operand.vmem [shape: f32[2,4,1,8], index: 9, kind: input, shape index: {}]
  %s10 = inlined_call_operand.vmem [shape: f32[2,4,8,32], index: 10, kind: input, shape index: {}]
  %s11 = inlined_call_operand.vmem [shape: f32[2,1,32], index: 11, kind: input, shape index: {}]
  %s12 = inlined_call_operand.vmem [shape: f32[2,1,32], index: 12, kind: input, shape index: {}]
  %s13 = inlined_call_operand.vmem [shape: f32[2,1,32], index: 13, kind: input, shape index: {}]
  %s14 = inlined_call_operand.vmem [shape: f32[2,32,64], index: 14, kind: input, shape index: {}]
  %s15 = inlined_call_operand.vmem [shape: f32[2,1,64], index: 15, kind: input, shape index: {}]
  %s16 = inlined_call_operand.vmem [shape: f32[2,64,32], index: 16, kind: input, shape index: {}]
  %s17 = inlined_call_operand.vmem [shape: f32[2,1,32], index: 17, kind: input, shape index: {}]
  %s18 = inlined_call_operand.vmem [shape: f32[2,1,32], index: 18, kind: input, shape index: {}]
  %s19 = inlined_call_operand.vmem [shape: f32[2,1,32], index: 19, kind: input, shape index: {}]
  %s20 = inlined_call_operand.vmem [shape: f32[32,128], index: 20, kind: input, shape index: {}]
  %s21 = inlined_call_operand.vmem [shape: f32[1,128], index: 21, kind: input, shape index: {}]
  %s22 = inlined_call_operand.vmem [shape: f32[16,128], index: 22, kind: output, shape index: {}]
  %s23 = sld [smem:[#allocation0]]
  $region98: #{multitask_forward.1} parent=0
    _
  %s25 = ssub.s32 1, %s23
  %s26 = scalar_select 0, %s25, %s23
  // Predicated region
  $region2: #{multitask_forward.1} parent=0 // pred_check
    _
  $region3: #{multitask_forward.1} parent=0 // pred_check_branch
    %28 = sbr.rel (0) target = $region5
  $region4: #{multitask_forward.1} parent=0 // pred_region
    _
  $region5: #{multitask_forward.1} parent=0 // pred_fallthru
    _
  // Predicated region
  $region6: #{multitask_forward.1} parent=0 // pred_check
    _
  $region7: #{multitask_forward.1} parent=0 // pred_check_branch
    %30 = sbr.rel (0) target = $region9
  $region8: #{multitask_forward.1} parent=0 // pred_region
    _
  $region9: #{multitask_forward.1} parent=0 // pred_fallthru
    _
  // Predicated region
  $region10: #{multitask_forward.1} parent=0 // pred_check
    _
  $region11: #{multitask_forward.1} parent=0 // pred_check_branch
    %32 = sbr.rel (0) target = $region13
  $region12: #{multitask_forward.1} parent=0 // pred_region
    _
  $region13: #{multitask_forward.1} parent=0 // pred_fallthru
    _
  // Predicated region
  $region14: #{multitask_forward.1} parent=0 // pred_check
    _
  $region15: #{multitask_forward.1} parent=0 // pred_check_branch
    %34 = sbr.rel (0) target = $region17
  $region16: #{multitask_forward.1} parent=0 // pred_region
    _
  $region17: #{multitask_forward.1} parent=0 // pred_fallthru
    _
  // Predicated region
  $region18: #{multitask_forward.1} parent=0 // pred_check
    _
  $region19: #{multitask_forward.1} parent=0 // pred_check_branch
    %36 = sbr.rel (0) target = $region21
  $region20: #{multitask_forward.1} parent=0 // pred_region
    _
  $region21: #{multitask_forward.1} parent=0 // pred_fallthru
    _
  // Predicated region
  $region22: #{multitask_forward.1} parent=0 // pred_check
    _
  $region23: #{multitask_forward.1} parent=0 // pred_check_branch
    %38 = sbr.rel (0) target = $region25
  $region24: #{multitask_forward.1} parent=0 // pred_region
    _
  $region25: #{multitask_forward.1} parent=0 // pred_fallthru
    _
  // Predicated region
  $region26: #{multitask_forward.1} parent=0 // pred_check
    _
  $region27: #{multitask_forward.1} parent=0 // pred_check_branch
    %40 = sbr.rel (0) target = $region29
  $region28: #{multitask_forward.1} parent=0 // pred_region
    _
  $region29: #{multitask_forward.1} parent=0 // pred_fallthru
    _
  // Predicated region
  $region30: #{multitask_forward.1} parent=0 // pred_check
    _
  $region31: #{multitask_forward.1} parent=0 // pred_check_branch
    %42 = sbr.rel (0) target = $region33
  $region32: #{multitask_forward.1} parent=0 // pred_region
    _
  $region33: #{multitask_forward.1} parent=0 // pred_fallthru
    _
  // Predicated region
  $region34: #{multitask_forward.1} parent=0 // pred_check
    _
  $region35: #{multitask_forward.1} parent=0 // pred_check_branch
    %44 = sbr.rel (0) target = $region37
  $region36: #{multitask_forward.1} parent=0 // pred_region
    _
  $region37: #{multitask_forward.1} parent=0 // pred_fallthru
    _
  // Predicated region
  $region38: #{multitask_forward.1} parent=0 // pred_check
    _
  $region39: #{multitask_forward.1} parent=0 // pred_check_branch
    %46 = sbr.rel (0) target = $region41
  $region40: #{multitask_forward.1} parent=0 // pred_region
    _
  $region41: #{multitask_forward.1} parent=0 // pred_fallthru
    _
  // Predicated region
  $region42: #{multitask_forward.1} parent=0 // pred_check
    _
  $region43: #{multitask_forward.1} parent=0 // pred_check_branch
    %48 = sbr.rel (0) target = $region45
  $region44: #{multitask_forward.1} parent=0 // pred_region
    _
  $region45: #{multitask_forward.1} parent=0 // pred_fallthru
    _
  // Predicated region
  $region46: #{multitask_forward.1} parent=0 // pred_check
    _
  $region47: #{multitask_forward.1} parent=0 // pred_check_branch
    %50 = sbr.rel (0) target = $region49
  $region48: #{multitask_forward.1} parent=0 // pred_region
    _
  $region49: #{multitask_forward.1} parent=0 // pred_fallthru
    _
  // Predicated region
  $region50: #{multitask_forward.1} parent=0 // pred_check
    _
  $region51: #{multitask_forward.1} parent=0 // pred_check_branch
    %52 = sbr.rel (0) target = $region53
  $region52: #{multitask_forward.1} parent=0 // pred_region
    _
  $region53: #{multitask_forward.1} parent=0 // pred_fallthru
    _
  // Predicated region
  $region54: #{multitask_forward.1} parent=0 // pred_check
    _
  $region55: #{multitask_forward.1} parent=0 // pred_check_branch
    %54 = sbr.rel (0) target = $region57
  $region56: #{multitask_forward.1} parent=0 // pred_region
    _
  $region57: #{multitask_forward.1} parent=0 // pred_fallthru
    _
  // Predicated region
  $region58: #{multitask_forward.1} parent=0 // pred_check
    _
  $region59: #{multitask_forward.1} parent=0 // pred_check_branch
    %56 = sbr.rel (0) target = $region61
  $region60: #{multitask_forward.1} parent=0 // pred_region
    _
  $region61: #{multitask_forward.1} parent=0 // pred_fallthru
    _
  // Predicated region
  $region62: #{multitask_forward.1} parent=0 // pred_check
    _
  $region63: #{multitask_forward.1} parent=0 // pred_check_branch
    %58 = sbr.rel (0) target = $region65
  $region64: #{multitask_forward.1} parent=0 // pred_region
    _
  $region65: #{multitask_forward.1} parent=0 // pred_fallthru
    _
  // Predicated region
  $region66: #{multitask_forward.1} parent=0 // pred_check
    _
  $region67: #{multitask_forward.1} parent=0 // pred_check_branch
    %60 = sbr.rel (0) target = $region69
  $region68: #{multitask_forward.1} parent=0 // pred_region
    _
  $region69: #{multitask_forward.1} parent=0 // pred_fallthru
    _
  // Predicated region
  $region70: #{multitask_forward.1} parent=0 // pred_check
    _
  $region71: #{multitask_forward.1} parent=0 // pred_check_branch
    %62 = sbr.rel (0) target = $region73
  $region72: #{multitask_forward.1} parent=0 // pred_region
    _
  $region73: #{multitask_forward.1} parent=0 // pred_fallthru
    _
  // Predicated region
  $region74: #{multitask_forward.1} parent=0 // pred_check
    _
  $region75: #{multitask_forward.1} parent=0 // pred_check_branch
    %64 = sbr.rel (0) target = $region77
  $region76: #{multitask_forward.1} parent=0 // pred_region
    _
  $region77: #{multitask_forward.1} parent=0 // pred_fallthru
    _
  // Predicated region
  $region78: #{multitask_forward.1} parent=0 // pred_check
    _
  $region79: #{multitask_forward.1} parent=0 // pred_check_branch
    %66 = sbr.rel (0) target = $region81
  $region80: #{multitask_forward.1} parent=0 // pred_region
    _
  $region81: #{multitask_forward.1} parent=0 // pred_fallthru
    _
  // Predicated region
  $region82: #{multitask_forward.1} parent=0 // pred_check
    _
  $region83: #{multitask_forward.1} parent=0 // pred_check_branch
    %68 = sbr.rel (0) target = $region85
  $region84: #{multitask_forward.1} parent=0 // pred_region
    _
  $region85: #{multitask_forward.1} parent=0 // pred_fallthru
    _
  // Predicated region
  $region86: #{multitask_forward.1} parent=0 // pred_check
    _
  $region87: #{multitask_forward.1} parent=0 // pred_check_branch
    %70 = sbr.rel (0) target = $region89
  $region88: #{multitask_forward.1} parent=0 // pred_region
    _
  $region89: #{multitask_forward.1} parent=0 // pred_fallthru
    _
  %v71 = vld [vmem:[%s0] sm:$0x3]
  %v72 = vsub.f32 1.0, %v71
  %v73 = vmul.f32 %v72, -1e+09
  %v74 = vld [vmem:[%s1] sm:$0xff]
  %v75 = vld [vmem:[%s1 + $0x8] sm:$0xff]
  %v76 = vld [vmem:[%s2] sm:$0x1]
  %v77 = vld [vmem:[%s3] sm:$0x1]
  %vm78 = vcmask 261120
  %v79 = vsel %vm78, %v74, 0.0
  %80 = vadd.xlane.f32.xlu0 %v79
  %v81 = vpop.xlane.xlu0 %80
  %v82 = vsel %vm78, %v75, 0.0
  %83 = vadd.xlane.f32.xlu0 %v82
  %v84 = vpop.xlane.xlu0 %83
  %v85 = vrcp.pop 32.0
  %v86 = vmul.f32 32.0, %v85
  %v87 = vsub.f32 1.0, %v86
  %v88 = vmul.f32 %v85, %v87
  %v89 = vadd.f32 %v85, %v88
  %vm90 = vweird.f32 %v85
  %v91 = vsel %vm90, %v85, %v89
  %v92 = vmul.f32 %v81, %v91
  %v93 = vmul.f32 %v84, %v91
  %v94 = vsub.f32 %v74, %v92
  %v95 = vsub.f32 %v75, %v93
  %v96 = vmul.f32 %v94, %v94
  %v97 = vmul.f32 %v95, %v95
  %v98 = vsel %vm78, %v96, 0.0
  %99 = vadd.xlane.f32.xlu0 %v98
  %v100 = vpop.xlane.xlu0 %99
  %v101 = vsel %vm78, %v97, 0.0
  %102 = vadd.xlane.f32.xlu0 %v101
  %v103 = vpop.xlane.xlu0 %102
  %v104 = vmul.f32 %v100, %v91
  %v105 = vmul.f32 %v103, %v91
  %v106 = vadd.f32 %v104, 1e-12
  %v107 = vadd.f32 %v105, 1e-12
  %v108 = vrsqrt.pop %v106
  %v109 = vmul.f32 %v108, %v106
  %v110 = vmul.f32 %v109, %v108
  %v111 = vmul.f32 0.5, %v110
  %v112 = vsub.f32 1.5, %v111
  %v113 = vmul.f32 %v108, %v112
  %vm114 = vweird.f32 %v106
  %vm115 = vweird.f32 %v108
  %vm116 = vmor %vm114, %vm115
  %v117 = vsel %vm116, %v108, %v113
  %v118 = vrsqrt.pop %v107
  %v119 = vmul.f32 %v118, %v107
  %v120 = vmul.f32 %v119, %v118
  %v121 = vmul.f32 0.5, %v120
  %v122 = vsub.f32 1.5, %v121
  %v123 = vmul.f32 %v118, %v122
  %vm124 = vweird.f32 %v107
  %vm125 = vweird.f32 %v118
  %vm126 = vmor %vm124, %vm125
  %v127 = vsel %vm126, %v118, %v123
  %v128 = vmul.f32 %v94, %v117
  %v129 = vmul.f32 %v95, %v127
  %v131 = vperm.slane %v76, 0
  %v133 = vmul.f32 %v128, %v131
  %v134 = vmul.f32 %v129, %v131
  %v136 = vperm.slane %v77, 0
  %v138 = vadd.f32 %v133, %v136
  %v139 = vadd.f32 %v134, %v136
  %v140 = vld [vmem:[%s4] sm:$0xff]
  %v141 = vld [vmem:[%s4 + $0x8] sm:$0xff]
  %v142 = vld [vmem:[%s4 + $0x10] sm:$0xff]
  %v143 = vld [vmem:[%s4 + $0x18] sm:$0xff]
  %v144 = vld [vmem:[%s4 + $0x20] sm:$0xff]
  %v145 = vld [vmem:[%s4 + $0x28] sm:$0xff]
  %v146 = vld [vmem:[%s4 + $0x30] sm:$0xff]
  %v147 = vld [vmem:[%s4 + $0x38] sm:$0xff]
  %v148 = vld [vmem:[%s4 + $0x40] sm:$0xff]
  %v149 = vld [vmem:[%s4 + $0x48] sm:$0xff]
  %v150 = vld [vmem:[%s4 + $0x50] sm:$0xff]
  %v151 = vld [vmem:[%s4 + $0x58] sm:$0xff]
  %v152 = vld [vmem:[%s4 + $0x60] sm:$0xff]
  %v153 = vld [vmem:[%s4 + $0x68] sm:$0xff]
  %v154 = vld [vmem:[%s4 + $0x70] sm:$0xff]
  %v155 = vld [vmem:[%s4 + $0x78] sm:$0xff]
  %v156 = vld [vmem:[%s5] sm:$0x1]
  %v157 = vld [vmem:[%s5 + $0x1] sm:$0x1]
  %v158 = vld [vmem:[%s5 + $0x2] sm:$0x1]
  %v159 = vld [vmem:[%s5 + $0x3] sm:$0x1]
  %v160 = vld [vmem:[%s6] sm:$0xff]
  %v161 = vld [vmem:[%s6 + $0x8] sm:$0xff]
  %v162 = vld [vmem:[%s6 + $0x10] sm:$0xff]
  %v163 = vld [vmem:[%s6 + $0x18] sm:$0xff]
  %v164 = vld [vmem:[%s6 + $0x20] sm:$0xff]
  %v165 = vld [vmem:[%s6 + $0x28] sm:$0xff]
  %v166 = vld [vmem:[%s6 + $0x30] sm:$0xff]
  %v167 = vld [vmem:[%s6 + $0x38] sm:$0xff]
  %v168 = vld [vmem:[%s6 + $0x40] sm:$0xff]
  %v169 = vld [vmem:[%s6 + $0x48] sm:$0xff]
  %v170 = vld [vmem:[%s6 + $0x50] sm:$0xff]
  %v171 = vld [vmem:[%s6 + $0x58] sm:$0xff]
  %v172 = vld [vmem:[%s6 + $0x60] sm:$0xff]
  %v173 = vld [vmem:[%s6 + $0x68] sm:$0xff]
  %v174 = vld [vmem:[%s6 + $0x70] sm:$0xff]
  %v175 = vld [vmem:[%s6 + $0x78] sm:$0xff]
  %v176 = vld [vmem:[%s7] sm:$0x1]
  %v177 = vld [vmem:[%s7 + $0x1] sm:$0x1]
  %v178 = vld [vmem:[%s7 + $0x2] sm:$0x1]
  %v179 = vld [vmem:[%s7 + $0x3] sm:$0x1]
  %v180 = vld [vmem:[%s8] sm:$0xff]
  %v181 = vld [vmem:[%s8 + $0x8] sm:$0xff]
  %v182 = vld [vmem:[%s8 + $0x10] sm:$0xff]
  %v183 = vld [vmem:[%s8 + $0x18] sm:$0xff]
  %v184 = vld [vmem:[%s8 + $0x20] sm:$0xff]
  %v185 = vld [vmem:[%s8 + $0x28] sm:$0xff]
  %v186 = vld [vmem:[%s8 + $0x30] sm:$0xff]
  %v187 = vld [vmem:[%s8 + $0x38] sm:$0xff]
  %v188 = vld [vmem:[%s8 + $0x40] sm:$0xff]
  %v189 = vld [vmem:[%s8 + $0x48] sm:$0xff]
  %v190 = vld [vmem:[%s8 + $0x50] sm:$0xff]
  %v191 = vld [vmem:[%s8 + $0x58] sm:$0xff]
  %v192 = vld [vmem:[%s8 + $0x60] sm:$0xff]
  %v193 = vld [vmem:[%s8 + $0x68] sm:$0xff]
  %v194 = vld [vmem:[%s8 + $0x70] sm:$0xff]
  %v195 = vld [vmem:[%s8 + $0x78] sm:$0xff]
  %v196 = vld [vmem:[%s9] sm:$0x1]
  %v197 = vld [vmem:[%s9 + $0x1] sm:$0x1]
  %v198 = vld [vmem:[%s9 + $0x2] sm:$0x1]
  %v199 = vld [vmem:[%s9 + $0x3] sm:$0x1]
  %v200 = vld [vmem:[%s10] sm:$0xff]
  %v201 = vld [vmem:[%s10 + $0x8] sm:$0xff]
  %v202 = vld [vmem:[%s10 + $0x10] sm:$0xff]
  %v203 = vld [vmem:[%s10 + $0x18] sm:$0xff]
  %v204 = vld [vmem:[%s11] sm:$0x1]
  %v209 = vperm.slane %v156, 0
  %v210 = vperm.slane %v157, 0
  %v211 = vperm.slane %v158, 0
  %v212 = vperm.slane %v159, 0
  %v218 = vsel %vm78, %v138, 0
  %220 = vmatpush.msra.mxu0 0.0
  %221 = vmatpush.msra.mxu0 0.0
  %222 = vmatpush.msra.mxu0 0.0
  %223 = vmatpush.msra.mxu0 0.0
  %224 = vmatpush.msra.mxu0 0.0
  %225 = vmatpush.msra.mxu0 0.0
  %226 = vmatpush.msra.mxu0 0.0
  %227 = vmatpush.msra.mxu0 0.0
  %228 = vmatpush.msra.mxu0 0.0
  %229 = vmatpush.msra.mxu0 0.0
  %230 = vmatpush.msra.mxu0 0.0
  %231 = vmatpush.msra.mxu0 0.0
  %232 = vmatpush.msra.mxu0 %v143
  %233 = vmatpush.msra.mxu0 %v142
  %234 = vmatpush.msra.mxu0 %v141
  %235 = vmatpush.msra.mxu0 %v140
  %236 = vmatmul.f32.gmra.mxu0 %v218
  %v237 = vpop.f32.mrf.mxu0
  %v238 = vadd.f32 %v209, %v237
  %239 = vdwg.mxu0
  %240 = vmatpush.msra.mxu0 0.0
  %241 = vmatpush.msra.mxu0 0.0
  %242 = vmatpush.msra.mxu0 0.0
  %243 = vmatpush.msra.mxu0 0.0
  %244 = vmatpush.msra.mxu0 0.0
  %245 = vmatpush.msra.mxu0 0.0
  %246 = vmatpush.msra.mxu0 0.0
  %247 = vmatpush.msra.mxu0 0.0
  %248 = vmatpush.msra.mxu0 0.0
  %249 = vmatpush.msra.mxu0 0.0
  %250 = vmatpush.msra.mxu0 0.0
  %251 = vmatpush.msra.mxu0 0.0
  %252 = vmatpush.msra.mxu0 %v147
  %253 = vmatpush.msra.mxu0 %v146
  %254 = vmatpush.msra.mxu0 %v145
  %255 = vmatpush.msra.mxu0 %v144
  %256 = vmatmul.f32.gmra.mxu0 %v218
  %v257 = vpop.f32.mrf.mxu0
  %v258 = vadd.f32 %v210, %v257
  %259 = vdwg.mxu0
  %260 = vmatpush.msra.mxu0 0.0
  %261 = vmatpush.msra.mxu0 0.0
  %262 = vmatpush.msra.mxu0 0.0
  %263 = vmatpush.msra.mxu0 0.0
  %264 = vmatpush.msra.mxu0 0.0
  %265 = vmatpush.msra.mxu0 0.0
  %266 = vmatpush.msra.mxu0 0.0
  %267 = vmatpush.msra.mxu0 0.0
  %268 = vmatpush.msra.mxu0 0.0
  %269 = vmatpush.msra.mxu0 0.0
  %270 = vmatpush.msra.mxu0 0.0
  %271 = vmatpush.msra.mxu0 0.0
  %272 = vmatpush.msra.mxu0 %v151
  %273 = vmatpush.msra.mxu0 %v150
  %274 = vmatpush.msra.mxu0 %v149
  %275 = vmatpush.msra.mxu0 %v148
  %276 = vmatmul.f32.gmra.mxu0 %v218
  %v277 = vpop.f32.mrf.mxu0
  %v278 = vadd.f32 %v211, %v277
  %279 = vdwg.mxu0
  %280 = vmatpush.msra.mxu0 0.0
  %281 = vmatpush.msra.mxu0 0.0
  %282 = vmatpush.msra.mxu0 0.0
  %283 = vmatpush.msra.mxu0 0.0
  %284 = vmatpush.msra.mxu0 0.0
  %285 = vmatpush.msra.mxu0 0.0
  %286 = vmatpush.msra.mxu0 0.0
  %287 = vmatpush.msra.mxu0 0.0
  %288 = vmatpush.msra.mxu0 0.0
  %289 = vmatpush.msra.mxu0 0.0
  %290 = vmatpush.msra.mxu0 0.0
  %291 = vmatpush.msra.mxu0 0.0
  %292 = vmatpush.msra.mxu0 %v155
  %293 = vmatpush.msra.mxu0 %v154
  %294 = vmatpush.msra.mxu0 %v153
  %295 = vmatpush.msra.mxu0 %v152
  %296 = vmatmul.f32.gmra.mxu0 %v218
  %v297 = vpop.f32.mrf.mxu0
  %v298 = vadd.f32 %v212, %v297
  %299 = vdwg.mxu0
  %v304 = vperm.slane %v176, 0
  %v305 = vperm.slane %v177, 0
  %v306 = vperm.slane %v178, 0
  %v307 = vperm.slane %v179, 0
  %312 = vmatpush.msra.mxu0 0.0
  %313 = vmatpush.msra.mxu0 0.0
  %314 = vmatpush.msra.mxu0 0.0
  %315 = vmatpush.msra.mxu0 0.0
  %316 = vmatpush.msra.mxu0 0.0
  %317 = vmatpush.msra.mxu0 0.0
  %318 = vmatpush.msra.mxu0 0.0
  %319 = vmatpush.msra.mxu0 0.0
  %320 = vmatpush.msra.mxu0 0.0
  %321 = vmatpush.msra.mxu0 0.0
  %322 = vmatpush.msra.mxu0 0.0
  %323 = vmatpush.msra.mxu0 0.0
  %324 = vmatpush.msra.mxu0 %v163
  %325 = vmatpush.msra.mxu0 %v162
  %326 = vmatpush.msra.mxu0 %v161
  %327 = vmatpush.msra.mxu0 %v160
  %328 = vmatmul.f32.gmra.mxu0 %v218
  %v329 = vpop.f32.mrf.mxu0
  %v330 = vadd.f32 %v304, %v329
  %331 = vdwg.mxu0
  %332 = vmatpush.msra.mxu0 0.0
  %333 = vmatpush.msra.mxu0 0.0
  %334 = vmatpush.msra.mxu0 0.0
  %335 = vmatpush.msra.mxu0 0.0
  %336 = vmatpush.msra.mxu0 0.0
  %337 = vmatpush.msra.mxu0 0.0
  %338 = vmatpush.msra.mxu0 0.0
  %339 = vmatpush.msra.mxu0 0.0
  %340 = vmatpush.msra.mxu0 0.0
  %341 = vmatpush.msra.mxu0 0.0
  %342 = vmatpush.msra.mxu0 0.0
  %343 = vmatpush.msra.mxu0 0.0
  %344 = vmatpush.msra.mxu0 %v167
  %345 = vmatpush.msra.mxu0 %v166
  %346 = vmatpush.msra.mxu0 %v165
  %347 = vmatpush.msra.mxu0 %v164
  %348 = vmatmul.f32.gmra.mxu0 %v218
  %v349 = vpop.f32.mrf.mxu0
  %v350 = vadd.f32 %v305, %v349
  %351 = vdwg.mxu0
  %352 = vmatpush.msra.mxu0 0.0
  %353 = vmatpush.msra.mxu0 0.0
  %354 = vmatpush.msra.mxu0 0.0
  %355 = vmatpush.msra.mxu0 0.0
  %356 = vmatpush.msra.mxu0 0.0
  %357 = vmatpush.msra.mxu0 0.0
  %358 = vmatpush.msra.mxu0 0.0
  %359 = vmatpush.msra.mxu0 0.0
  %360 = vmatpush.msra.mxu0 0.0
  %361 = vmatpush.msra.mxu0 0.0
  %362 = vmatpush.msra.mxu0 0.0
  %363 = vmatpush.msra.mxu0 0.0
  %364 = vmatpush.msra.mxu0 %v171
  %365 = vmatpush.msra.mxu0 %v170
  %366 = vmatpush.msra.mxu0 %v169
  %367 = vmatpush.msra.mxu0 %v168
  %368 = vmatmul.f32.gmra.mxu0 %v218
  %v369 = vpop.f32.mrf.mxu0
  %v370 = vadd.f32 %v306, %v369
  %371 = vdwg.mxu0
  %372 = vmatpush.msra.mxu0 0.0
  %373 = vmatpush.msra.mxu0 0.0
  %374 = vmatpush.msra.mxu0 0.0
  %375 = vmatpush.msra.mxu0 0.0
  %376 = vmatpush.msra.mxu0 0.0
  %377 = vmatpush.msra.mxu0 0.0
  %378 = vmatpush.msra.mxu0 0.0
  %379 = vmatpush.msra.mxu0 0.0
  %380 = vmatpush.msra.mxu0 0.0
  %381 = vmatpush.msra.mxu0 0.0
  %382 = vmatpush.msra.mxu0 0.0
  %383 = vmatpush.msra.mxu0 0.0
  %384 = vmatpush.msra.mxu0 %v175
  %385 = vmatpush.msra.mxu0 %v174
  %386 = vmatpush.msra.mxu0 %v173
  %387 = vmatpush.msra.mxu0 %v172
  %388 = vmatmul.f32.gmra.mxu0 %v218
  %v389 = vpop.f32.mrf.mxu0
  %v390 = vadd.f32 %v307, %v389
  %391 = vdwg.mxu0
  %v396 = vperm.slane %v196, 0
  %v397 = vperm.slane %v197, 0
  %v398 = vperm.slane %v198, 0
  %v399 = vperm.slane %v199, 0
  %404 = vmatpush.msra.mxu0 0.0
  %405 = vmatpush.msra.mxu0 0.0
  %406 = vmatpush.msra.mxu0 0.0
  %407 = vmatpush.msra.mxu0 0.0
  %408 = vmatpush.msra.mxu0 0.0
  %409 = vmatpush.msra.mxu0 0.0
  %410 = vmatpush.msra.mxu0 0.0
  %411 = vmatpush.msra.mxu0 0.0
  %412 = vmatpush.msra.mxu0 0.0
  %413 = vmatpush.msra.mxu0 0.0
  %414 = vmatpush.msra.mxu0 0.0
  %415 = vmatpush.msra.mxu0 0.0
  %416 = vmatpush.msra.mxu0 %v183
  %417 = vmatpush.msra.mxu0 %v182
  %418 = vmatpush.msra.mxu0 %v181
  %419 = vmatpush.msra.mxu0 %v180
  %420 = vmatmul.f32.gmra.mxu0 %v218
  %v421 = vpop.f32.mrf.mxu0
  %v422 = vadd.f32 %v396, %v421
  %423 = vdwg.mxu0
  %424 = vmatpush.msra.mxu0 0.0
  %425 = vmatpush.msra.mxu0 0.0
  %426 = vmatpush.msra.mxu0 0.0
  %427 = vmatpush.msra.mxu0 0.0
  %428 = vmatpush.msra.mxu0 0.0
  %429 = vmatpush.msra.mxu0 0.0
  %430 = vmatpush.msra.mxu0 0.0
  %431 = vmatpush.msra.mxu0 0.0
  %432 = vmatpush.msra.mxu0 0.0
  %433 = vmatpush.msra.mxu0 0.0
  %434 = vmatpush.msra.mxu0 0.0
  %435 = vmatpush.msra.mxu0 0.0
  %436 = vmatpush.msra.mxu0 %v187
  %437 = vmatpush.msra.mxu0 %v186
  %438 = vmatpush.msra.mxu0 %v185
  %439 = vmatpush.msra.mxu0 %v184
  %440 = vmatmul.f32.gmra.mxu0 %v218
  %v441 = vpop.f32.mrf.mxu0
  %v442 = vadd.f32 %v397, %v441
  %443 = vdwg.mxu0
  %444 = vmatpush.msra.mxu0 0.0
  %445 = vmatpush.msra.mxu0 0.0
  %446 = vmatpush.msra.mxu0 0.0
  %447 = vmatpush.msra.mxu0 0.0
  %448 = vmatpush.msra.mxu0 0.0
  %449 = vmatpush.msra.mxu0 0.0
  %450 = vmatpush.msra.mxu0 0.0
  %451 = vmatpush.msra.mxu0 0.0
  %452 = vmatpush.msra.mxu0 0.0
  %453 = vmatpush.msra.mxu0 0.0
  %454 = vmatpush.msra.mxu0 0.0
  %455 = vmatpush.msra.mxu0 0.0
  %456 = vmatpush.msra.mxu0 %v191
  %457 = vmatpush.msra.mxu0 %v190
  %458 = vmatpush.msra.mxu0 %v189
  %459 = vmatpush.msra.mxu0 %v188
  %460 = vmatmul.f32.gmra.mxu0 %v218
  %v461 = vpop.f32.mrf.mxu0
  %v462 = vadd.f32 %v398, %v461
  %463 = vdwg.mxu0
  %464 = vmatpush.msra.mxu0 0.0
  %465 = vmatpush.msra.mxu0 0.0
  %466 = vmatpush.msra.mxu0 0.0
  %467 = vmatpush.msra.mxu0 0.0
  %468 = vmatpush.msra.mxu0 0.0
  %469 = vmatpush.msra.mxu0 0.0
  %470 = vmatpush.msra.mxu0 0.0
  %471 = vmatpush.msra.mxu0 0.0
  %472 = vmatpush.msra.mxu0 0.0
  %473 = vmatpush.msra.mxu0 0.0
  %474 = vmatpush.msra.mxu0 0.0
  %475 = vmatpush.msra.mxu0 0.0
  %476 = vmatpush.msra.mxu0 %v195
  %477 = vmatpush.msra.mxu0 %v194
  %478 = vmatpush.msra.mxu0 %v193
  %479 = vmatpush.msra.mxu0 %v192
  %480 = vmatmul.f32.gmra.mxu0 %v218
  %v481 = vpop.f32.mrf.mxu0
  %v482 = vadd.f32 %v399, %v481
  %483 = vdwg.mxu0
  %vm484 = vcmask 64512
  %v486 = vsel %vm484, %v238, 0
  %v489 = vsel %vm484, %v330, 0
  %491 = vmatpush.xpose.msra.mxu0 0.0
  %492 = vmatpush.xpose.msra.mxu0 0.0
  %493 = vmatpush.xpose.msra.mxu0 0.0
  %494 = vmatpush.xpose.msra.mxu0 0.0
  %495 = vmatpush.xpose.msra.mxu0 0.0
  %496 = vmatpush.xpose.msra.mxu0 0.0
  %497 = vmatpush.xpose.msra.mxu0 0.0
  %498 = vmatpush.xpose.msra.mxu0 0.0
  %499 = vmatpush.xpose.msra.mxu0 0.0
  %500 = vmatpush.xpose.msra.mxu0 0.0
  %501 = vmatpush.xpose.msra.mxu0 0.0
  %502 = vmatpush.xpose.msra.mxu0 0.0
  %503 = vmatpush.xpose.msra.mxu0 0.0
  %504 = vmatpush.xpose.msra.mxu0 0.0
  %505 = vmatpush.xpose.msra.mxu0 0.0
  %506 = vmatpush.xpose.msra.mxu0 %v489
  %507 = vmatmul.f32.gmra.mxu0 %v486
  %v508 = vpop.f32.mrf.mxu0
  %v509 = vadd.f32 0.0, %v508
  %510 = vdwg.mxu0
  %v512 = vsel %vm484, %v258, 0
  %v515 = vsel %vm484, %v350, 0
  %517 = vmatpush.xpose.msra.mxu0 0.0
  %518 = vmatpush.xpose.msra.mxu0 0.0
  %519 = vmatpush.xpose.msra.mxu0 0.0
  %520 = vmatpush.xpose.msra.mxu0 0.0
  %521 = vmatpush.xpose.msra.mxu0 0.0
  %522 = vmatpush.xpose.msra.mxu0 0.0
  %523 = vmatpush.xpose.msra.mxu0 0.0
  %524 = vmatpush.xpose.msra.mxu0 0.0
  %525 = vmatpush.xpose.msra.mxu0 0.0
  %526 = vmatpush.xpose.msra.mxu0 0.0
  %527 = vmatpush.xpose.msra.mxu0 0.0
  %528 = vmatpush.xpose.msra.mxu0 0.0
  %529 = vmatpush.xpose.msra.mxu0 0.0
  %530 = vmatpush.xpose.msra.mxu0 0.0
  %531 = vmatpush.xpose.msra.mxu0 0.0
  %532 = vmatpush.xpose.msra.mxu0 %v515
  %533 = vmatmul.f32.gmra.mxu0 %v512
  %v534 = vpop.f32.mrf.mxu0
  %v535 = vadd.f32 0.0, %v534
  %536 = vdwg.mxu0
  %v538 = vsel %vm484, %v278, 0
  %v541 = vsel %vm484, %v370, 0
  %543 = vmatpush.xpose.msra.mxu0 0.0
  %544 = vmatpush.xpose.msra.mxu0 0.0
  %545 = vmatpush.xpose.msra.mxu0 0.0
  %546 = vmatpush.xpose.msra.mxu0 0.0
  %547 = vmatpush.xpose.msra.mxu0 0.0
  %548 = vmatpush.xpose.msra.mxu0 0.0
  %549 = vmatpush.xpose.msra.mxu0 0.0
  %550 = vmatpush.xpose.msra.mxu0 0.0
  %551 = vmatpush.xpose.msra.mxu0 0.0
  %552 = vmatpush.xpose.msra.mxu0 0.0
  %553 = vmatpush.xpose.msra.mxu0 0.0
  %554 = vmatpush.xpose.msra.mxu0 0.0
  %555 = vmatpush.xpose.msra.mxu0 0.0
  %556 = vmatpush.xpose.msra.mxu0 0.0
  %557 = vmatpush.xpose.msra.mxu0 0.0
  %558 = vmatpush.xpose.msra.mxu0 %v541
  %559 = vmatmul.f32.gmra.mxu0 %v538
  %v560 = vpop.f32.mrf.mxu0
  %v561 = vadd.f32 0.0, %v560
  %562 = vdwg.mxu0
  %v564 = vsel %vm484, %v298, 0
  %v567 = vsel %vm484, %v390, 0
  %569 = vmatpush.xpose.msra.mxu0 0.0
  %570 = vmatpush.xpose.msra.mxu0 0.0
  %571 = vmatpush.xpose.msra.mxu0 0.0
  %572 = vmatpush.xpose.msra.mxu0 0.0
  %573 = vmatpush.xpose.msra.mxu0 0.0
  %574 = vmatpush.xpose.msra.mxu0 0.0
  %575 = vmatpush.xpose.msra.mxu0 0.0
  %576 = vmatpush.xpose.msra.mxu0 0.0
  %577 = vmatpush.xpose.msra.mxu0 0.0
  %578 = vmatpush.xpose.msra.mxu0 0.0
  %579 = vmatpush.xpose.msra.mxu0 0.0
  %580 = vmatpush.xpose.msra.mxu0 0.0
  %581 = vmatpush.xpose.msra.mxu0 0.0
  %582 = vmatpush.xpose.msra.mxu0 0.0
  %583 = vmatpush.xpose.msra.mxu0 0.0
  %584 = vmatpush.xpose.msra.mxu0 %v567
  %585 = vmatmul.f32.gmra.mxu0 %v564
  %v586 = vpop.f32.mrf.mxu0
  %v587 = vadd.f32 0.0, %v586
  %588 = vdwg.mxu0
  %v589 = vmul.f32 %v509, 0.35355338
  %v590 = vmul.f32 %v535, 0.35355338
  %v591 = vmul.f32 %v561, 0.35355338
  %v592 = vmul.f32 %v587, 0.35355338
  %v593 = vperm.slane %v73, 0
  %v594 = vadd.f32 %v589, %v593
  %v595 = vadd.f32 %v590, %v593
  %v596 = vadd.f32 %v591, %v593
  %v597 = vadd.f32 %v592, %v593
  %v598 = vsel %vm484, %v594, -inf
  %599 = vmax.xlane.f32.xlu0 %v598
  %v600 = vpop.xlane.xlu0 %599
  %v601 = vsel %vm484, %v595, -inf
  %602 = vmax.xlane.f32.xlu0 %v601
  %v603 = vpop.xlane.xlu0 %602
  %v604 = vsel %vm484, %v596, -inf
  %605 = vmax.xlane.f32.xlu0 %v604
  %v606 = vpop.xlane.xlu0 %605
  %v607 = vsel %vm484, %v597, -inf
  %608 = vmax.xlane.f32.xlu0 %v607
  %v609 = vpop.xlane.xlu0 %608
  %v610 = vsub.f32 %v594, %v600
  %v611 = vsub.f32 %v595, %v603
  %v612 = vsub.f32 %v596, %v606
  %v613 = vsub.f32 %v597, %v609
  %v614 = vmul.f32 %v610, 1.442695
  %v615 = vpow.pop %v614
  %v616 = vmul.f32 %v611, 1.442695
  %v617 = vpow.pop %v616
  %v618 = vmul.f32 %v612, 1.442695
  %v619 = vpow.pop %v618
  %v620 = vmul.f32 %v613, 1.442695
  %v621 = vpow.pop %v620
  %v622 = vsel %vm484, %v615, 0.0
  %623 = vadd.xlane.f32.xlu0 %v622
  %v624 = vpop.xlane.xlu0 %623
  %v625 = vsel %vm484, %v617, 0.0
  %626 = vadd.xlane.f32.xlu0 %v625
  %v627 = vpop.xlane.xlu0 %626
  %v628 = vsel %vm484, %v619, 0.0
  %629 = vadd.xlane.f32.xlu0 %v628
  %v630 = vpop.xlane.xlu0 %629
  %v631 = vsel %vm484, %v621, 0.0
  %632 = vadd.xlane.f32.xlu0 %v631
  %v633 = vpop.xlane.xlu0 %632
  %v634 = vrcp.pop %v624
  %v635 = vrcp.pop %v627
  %v636 = vrcp.pop %v630
  %v637 = vrcp.pop %v633
  %v638 = vmul.f32 %v615, %v634
  %v639 = vmul.f32 %v617, %v635
  %v640 = vmul.f32 %v619, %v636
  %v641 = vmul.f32 %v621, %v637
  %v643 = vsel %vm484, %v638, 0
  %645 = vmatpush.msra.mxu0 0.0
  %646 = vmatpush.msra.mxu0 0.0
  %647 = vmatpush.msra.mxu0 0.0
  %648 = vmatpush.msra.mxu0 0.0
  %649 = vmatpush.msra.mxu0 0.0
  %650 = vmatpush.msra.mxu0 0.0
  %651 = vmatpush.msra.mxu0 0.0
  %652 = vmatpush.msra.mxu0 0.0
  %653 = vmatpush.msra.mxu0 0.0
  %654 = vmatpush.msra.mxu0 0.0
  %655 = vmatpush.msra.mxu0 0.0
  %656 = vmatpush.msra.mxu0 0.0
  %657 = vmatpush.msra.mxu0 0.0
  %658 = vmatpush.msra.mxu0 0.0
  %659 = vmatpush.msra.mxu0 0.0
  %660 = vmatpush.msra.mxu0 %v422
  %661 = vmatmul.f32.gmra.mxu0 %v643
  %v662 = vpop.f32.mrf.mxu0
  %v663 = vadd.f32 0.0, %v662
  %664 = vdwg.mxu0
  %v666 = vsel %vm484, %v639, 0
  %668 = vmatpush.msra.mxu0 0.0
  %669 = vmatpush.msra.mxu0 0.0
  %670 = vmatpush.msra.mxu0 0.0
  %671 = vmatpush.msra.mxu0 0.0
  %672 = vmatpush.msra.mxu0 0.0
  %673 = vmatpush.msra.mxu0 0.0
  %674 = vmatpush.msra.mxu0 0.0
  %675 = vmatpush.msra.mxu0 0.0
  %676 = vmatpush.msra.mxu0 0.0
  %677 = vmatpush.msra.mxu0 0.0
  %678 = vmatpush.msra.mxu0 0.0
  %679 = vmatpush.msra.mxu0 0.0
  %680 = vmatpush.msra.mxu0 0.0
  %681 = vmatpush.msra.mxu0 0.0
  %682 = vmatpush.msra.mxu0 0.0
  %683 = vmatpush.msra.mxu0 %v442
  %684 = vmatmul.f32.gmra.mxu0 %v666
  %v685 = vpop.f32.mrf.mxu0
  %v686 = vadd.f32 0.0, %v685
  %687 = vdwg.mxu0
  %v689 = vsel %vm484, %v640, 0
  %691 = vmatpush.msra.mxu0 0.0
  %692 = vmatpush.msra.mxu0 0.0
  %693 = vmatpush.msra.mxu0 0.0
  %694 = vmatpush.msra.mxu0 0.0
  %695 = vmatpush.msra.mxu0 0.0
  %696 = vmatpush.msra.mxu0 0.0
  %697 = vmatpush.msra.mxu0 0.0
  %698 = vmatpush.msra.mxu0 0.0
  %699 = vmatpush.msra.mxu0 0.0
  %700 = vmatpush.msra.mxu0 0.0
  %701 = vmatpush.msra.mxu0 0.0
  %702 = vmatpush.msra.mxu0 0.0
  %703 = vmatpush.msra.mxu0 0.0
  %704 = vmatpush.msra.mxu0 0.0
  %705 = vmatpush.msra.mxu0 0.0
  %706 = vmatpush.msra.mxu0 %v462
  %707 = vmatmul.f32.gmra.mxu0 %v689
  %v708 = vpop.f32.mrf.mxu0
  %v709 = vadd.f32 0.0, %v708
  %710 = vdwg.mxu0
  %v712 = vsel %vm484, %v641, 0
  %714 = vmatpush.msra.mxu0 0.0
  %715 = vmatpush.msra.mxu0 0.0
  %716 = vmatpush.msra.mxu0 0.0
  %717 = vmatpush.msra.mxu0 0.0
  %718 = vmatpush.msra.mxu0 0.0
  %719 = vmatpush.msra.mxu0 0.0
  %720 = vmatpush.msra.mxu0 0.0
  %721 = vmatpush.msra.mxu0 0.0
  %722 = vmatpush.msra.mxu0 0.0
  %723 = vmatpush.msra.mxu0 0.0
  %724 = vmatpush.msra.mxu0 0.0
  %725 = vmatpush.msra.mxu0 0.0
  %726 = vmatpush.msra.mxu0 0.0
  %727 = vmatpush.msra.mxu0 0.0
  %728 = vmatpush.msra.mxu0 0.0
  %729 = vmatpush.msra.mxu0 %v482
  %730 = vmatmul.f32.gmra.mxu0 %v712
  %v731 = vpop.f32.mrf.mxu0
  %v732 = vadd.f32 0.0, %v731
  %733 = vdwg.mxu0
  %v735 = vperm.slane %v204, 0
  %v738 = vsel %vm484, %v663, 0
  %740 = vmatpush.msra.mxu0 0.0
  %741 = vmatpush.msra.mxu0 0.0
  %742 = vmatpush.msra.mxu0 0.0
  %743 = vmatpush.msra.mxu0 0.0
  %744 = vmatpush.msra.mxu0 0.0
  %745 = vmatpush.msra.mxu0 0.0
  %746 = vmatpush.msra.mxu0 0.0
  %747 = vmatpush.msra.mxu0 0.0
  %748 = vmatpush.msra.mxu0 0.0
  %749 = vmatpush.msra.mxu0 0.0
  %750 = vmatpush.msra.mxu0 0.0
  %751 = vmatpush.msra.mxu0 0.0
  %752 = vmatpush.msra.mxu0 0.0
  %753 = vmatpush.msra.mxu0 0.0
  %754 = vmatpush.msra.mxu0 0.0
  %755 = vmatpush.msra.mxu0 %v200
  %756 = vmatmul.f32.gmra.mxu0 %v738
  %v757 = vpop.f32.mrf.mxu0
  %v758 = vadd.f32 0.0, %v757
  %759 = vdwg.mxu0
  %v760 = vadd.f32 %v735, %v758
  %v762 = vsel %vm484, %v686, 0
  %764 = vmatpush.msra.mxu0 0.0
  %765 = vmatpush.msra.mxu0 0.0
  %766 = vmatpush.msra.mxu0 0.0
  %767 = vmatpush.msra.mxu0 0.0
  %768 = vmatpush.msra.mxu0 0.0
  %769 = vmatpush.msra.mxu0 0.0
  %770 = vmatpush.msra.mxu0 0.0
  %771 = vmatpush.msra.mxu0 0.0
  %772 = vmatpush.msra.mxu0 0.0
  %773 = vmatpush.msra.mxu0 0.0
  %774 = vmatpush.msra.mxu0 0.0
  %775 = vmatpush.msra.mxu0 0.0
  %776 = vmatpush.msra.mxu0 0.0
  %777 = vmatpush.msra.mxu0 0.0
  %778 = vmatpush.msra.mxu0 0.0
  %779 = vmatpush.msra.mxu0 %v201
  %780 = vmatmul.f32.gmra.mxu0 %v762
  %v781 = vpop.f32.mrf.mxu0
  %v782 = vadd.f32 0.0, %v781
  %783 = vdwg.mxu0
  %v784 = vadd.f32 %v760, %v782
  %v786 = vsel %vm484, %v709, 0
  %788 = vmatpush.msra.mxu0 0.0
  %789 = vmatpush.msra.mxu0 0.0
  %790 = vmatpush.msra.mxu0 0.0
  %791 = vmatpush.msra.mxu0 0.0
  %792 = vmatpush.msra.mxu0 0.0
  %793 = vmatpush.msra.mxu0 0.0
  %794 = vmatpush.msra.mxu0 0.0
  %795 = vmatpush.msra.mxu0 0.0
  %796 = vmatpush.msra.mxu0 0.0
  %797 = vmatpush.msra.mxu0 0.0
  %798 = vmatpush.msra.mxu0 0.0
  %799 = vmatpush.msra.mxu0 0.0
  %800 = vmatpush.msra.mxu0 0.0
  %801 = vmatpush.msra.mxu0 0.0
  %802 = vmatpush.msra.mxu0 0.0
  %803 = vmatpush.msra.mxu0 %v202
  %804 = vmatmul.f32.gmra.mxu0 %v786
  %v805 = vpop.f32.mrf.mxu0
  %v806 = vadd.f32 0.0, %v805
  %807 = vdwg.mxu0
  %v808 = vadd.f32 %v784, %v806
  %v810 = vsel %vm484, %v732, 0
  %812 = vmatpush.msra.mxu0 0.0
  %813 = vmatpush.msra.mxu0 0.0
  %814 = vmatpush.msra.mxu0 0.0
  %815 = vmatpush.msra.mxu0 0.0
  %816 = vmatpush.msra.mxu0 0.0
  %817 = vmatpush.msra.mxu0 0.0
  %818 = vmatpush.msra.mxu0 0.0
  %819 = vmatpush.msra.mxu0 0.0
  %820 = vmatpush.msra.mxu0 0.0
  %821 = vmatpush.msra.mxu0 0.0
  %822 = vmatpush.msra.mxu0 0.0
  %823 = vmatpush.msra.mxu0 0.0
  %824 = vmatpush.msra.mxu0 0.0
  %825 = vmatpush.msra.mxu0 0.0
  %826 = vmatpush.msra.mxu0 0.0
  %827 = vmatpush.msra.mxu0 %v203
  %828 = vmatmul.f32.gmra.mxu0 %v810
  %v829 = vpop.f32.mrf.mxu0
  %v830 = vadd.f32 0.0, %v829
  %831 = vdwg.mxu0
  %v832 = vadd.f32 %v808, %v830
  %v834 = vsel %vm78, %v139, 0
  %836 = vmatpush.msra.mxu0 0.0
  %837 = vmatpush.msra.mxu0 0.0
  %838 = vmatpush.msra.mxu0 0.0
  %839 = vmatpush.msra.mxu0 0.0
  %840 = vmatpush.msra.mxu0 0.0
  %841 = vmatpush.msra.mxu0 0.0
  %842 = vmatpush.msra.mxu0 0.0
  %843 = vmatpush.msra.mxu0 0.0
  %844 = vmatpush.msra.mxu0 0.0
  %845 = vmatpush.msra.mxu0 0.0
  %846 = vmatpush.msra.mxu0 0.0
  %847 = vmatpush.msra.mxu0 0.0
  %848 = vmatpush.msra.mxu0 %v143
  %849 = vmatpush.msra.mxu0 %v142
  %850 = vmatpush.msra.mxu0 %v141
  %851 = vmatpush.msra.mxu0 %v140
  %852 = vmatmul.f32.gmra.mxu0 %v834
  %v853 = vpop.f32.mrf.mxu0
  %v854 = vadd.f32 %v209, %v853
  %855 = vdwg.mxu0
  %856 = vmatpush.msra.mxu0 0.0
  %857 = vmatpush.msra.mxu0 0.0
  %858 = vmatpush.msra.mxu0 0.0
  %859 = vmatpush.msra.mxu0 0.0
  %860 = vmatpush.msra.mxu0 0.0
  %861 = vmatpush.msra.mxu0 0.0
  %862 = vmatpush.msra.mxu0 0.0
  %863 = vmatpush.msra.mxu0 0.0
  %864 = vmatpush.msra.mxu0 0.0
  %865 = vmatpush.msra.mxu0 0.0
  %866 = vmatpush.msra.mxu0 0.0
  %867 = vmatpush.msra.mxu0 0.0
  %868 = vmatpush.msra.mxu0 %v147
  %869 = vmatpush.msra.mxu0 %v146
  %870 = vmatpush.msra.mxu0 %v145
  %871 = vmatpush.msra.mxu0 %v144
  %872 = vmatmul.f32.gmra.mxu0 %v834
  %v873 = vpop.f32.mrf.mxu0
  %v874 = vadd.f32 %v210, %v873
  %875 = vdwg.mxu0
  %876 = vmatpush.msra.mxu0 0.0
  %877 = vmatpush.msra.mxu0 0.0
  %878 = vmatpush.msra.mxu0 0.0
  %879 = vmatpush.msra.mxu0 0.0
  %880 = vmatpush.msra.mxu0 0.0
  %881 = vmatpush.msra.mxu0 0.0
  %882 = vmatpush.msra.mxu0 0.0
  %883 = vmatpush.msra.mxu0 0.0
  %884 = vmatpush.msra.mxu0 0.0
  %885 = vmatpush.msra.mxu0 0.0
  %886 = vmatpush.msra.mxu0 0.0
  %887 = vmatpush.msra.mxu0 0.0
  %888 = vmatpush.msra.mxu0 %v151
  %889 = vmatpush.msra.mxu0 %v150
  %890 = vmatpush.msra.mxu0 %v149
  %891 = vmatpush.msra.mxu0 %v148
  %892 = vmatmul.f32.gmra.mxu0 %v834
  %v893 = vpop.f32.mrf.mxu0
  %v894 = vadd.f32 %v211, %v893
  %895 = vdwg.mxu0
  %896 = vmatpush.msra.mxu0 0.0
  %897 = vmatpush.msra.mxu0 0.0
  %898 = vmatpush.msra.mxu0 0.0
  %899 = vmatpush.msra.mxu0 0.0
  %900 = vmatpush.msra.mxu0 0.0
  %901 = vmatpush.msra.mxu0 0.0
  %902 = vmatpush.msra.mxu0 0.0
  %903 = vmatpush.msra.mxu0 0.0
  %904 = vmatpush.msra.mxu0 0.0
  %905 = vmatpush.msra.mxu0 0.0
  %906 = vmatpush.msra.mxu0 0.0
  %907 = vmatpush.msra.mxu0 0.0
  %908 = vmatpush.msra.mxu0 %v155
  %909 = vmatpush.msra.mxu0 %v154
  %910 = vmatpush.msra.mxu0 %v153
  %911 = vmatpush.msra.mxu0 %v152
  %912 = vmatmul.f32.gmra.mxu0 %v834
  %v913 = vpop.f32.mrf.mxu0
  %v914 = vadd.f32 %v212, %v913
  %915 = vdwg.mxu0
  %916 = vmatpush.msra.mxu0 0.0
  %917 = vmatpush.msra.mxu0 0.0
  %918 = vmatpush.msra.mxu0 0.0
  %919 = vmatpush.msra.mxu0 0.0
  %920 = vmatpush.msra.mxu0 0.0
  %921 = vmatpush.msra.mxu0 0.0
  %922 = vmatpush.msra.mxu0 0.0
  %923 = vmatpush.msra.mxu0 0.0
  %924 = vmatpush.msra.mxu0 0.0
  %925 = vmatpush.msra.mxu0 0.0
  %926 = vmatpush.msra.mxu0 0.0
  %927 = vmatpush.msra.mxu0 0.0
  %928 = vmatpush.msra.mxu0 %v163
  %929 = vmatpush.msra.mxu0 %v162
  %930 = vmatpush.msra.mxu0 %v161
  %931 = vmatpush.msra.mxu0 %v160
  %932 = vmatmul.f32.gmra.mxu0 %v834
  %v933 = vpop.f32.mrf.mxu0
  %v934 = vadd.f32 %v304, %v933
  %935 = vdwg.mxu0
  %936 = vmatpush.msra.mxu0 0.0
  %937 = vmatpush.msra.mxu0 0.0
  %938 = vmatpush.msra.mxu0 0.0
  %939 = vmatpush.msra.mxu0 0.0
  %940 = vmatpush.msra.mxu0 0.0
  %941 = vmatpush.msra.mxu0 0.0
  %942 = vmatpush.msra.mxu0 0.0
  %943 = vmatpush.msra.mxu0 0.0
  %944 = vmatpush.msra.mxu0 0.0
  %945 = vmatpush.msra.mxu0 0.0
  %946 = vmatpush.msra.mxu0 0.0
  %947 = vmatpush.msra.mxu0 0.0
  %948 = vmatpush.msra.mxu0 %v167
  %949 = vmatpush.msra.mxu0 %v166
  %950 = vmatpush.msra.mxu0 %v165
  %951 = vmatpush.msra.mxu0 %v164
  %952 = vmatmul.f32.gmra.mxu0 %v834
  %v953 = vpop.f32.mrf.mxu0
  %v954 = vadd.f32 %v305, %v953
  %955 = vdwg.mxu0
  %956 = vmatpush.msra.mxu0 0.0
  %957 = vmatpush.msra.mxu0 0.0
  %958 = vmatpush.msra.mxu0 0.0
  %959 = vmatpush.msra.mxu0 0.0
  %960 = vmatpush.msra.mxu0 0.0
  %961 = vmatpush.msra.mxu0 0.0
  %962 = vmatpush.msra.mxu0 0.0
  %963 = vmatpush.msra.mxu0 0.0
  %964 = vmatpush.msra.mxu0 0.0
  %965 = vmatpush.msra.mxu0 0.0
  %966 = vmatpush.msra.mxu0 0.0
  %967 = vmatpush.msra.mxu0 0.0
  %968 = vmatpush.msra.mxu0 %v171
  %969 = vmatpush.msra.mxu0 %v170
  %970 = vmatpush.msra.mxu0 %v169
  %971 = vmatpush.msra.mxu0 %v168
  %972 = vmatmul.f32.gmra.mxu0 %v834
  %v973 = vpop.f32.mrf.mxu0
  %v974 = vadd.f32 %v306, %v973
  %975 = vdwg.mxu0
  %976 = vmatpush.msra.mxu0 0.0
  %977 = vmatpush.msra.mxu0 0.0
  %978 = vmatpush.msra.mxu0 0.0
  %979 = vmatpush.msra.mxu0 0.0
  %980 = vmatpush.msra.mxu0 0.0
  %981 = vmatpush.msra.mxu0 0.0
  %982 = vmatpush.msra.mxu0 0.0
  %983 = vmatpush.msra.mxu0 0.0
  %984 = vmatpush.msra.mxu0 0.0
  %985 = vmatpush.msra.mxu0 0.0
  %986 = vmatpush.msra.mxu0 0.0
  %987 = vmatpush.msra.mxu0 0.0
  %988 = vmatpush.msra.mxu0 %v175
  %989 = vmatpush.msra.mxu0 %v174
  %990 = vmatpush.msra.mxu0 %v173
  %991 = vmatpush.msra.mxu0 %v172
  %992 = vmatmul.f32.gmra.mxu0 %v834
  %v993 = vpop.f32.mrf.mxu0
  %v994 = vadd.f32 %v307, %v993
  %995 = vdwg.mxu0
  %996 = vmatpush.msra.mxu0 0.0
  %997 = vmatpush.msra.mxu0 0.0
  %998 = vmatpush.msra.mxu0 0.0
  %999 = vmatpush.msra.mxu0 0.0
  %1000 = vmatpush.msra.mxu0 0.0
  %1001 = vmatpush.msra.mxu0 0.0
  %1002 = vmatpush.msra.mxu0 0.0
  %1003 = vmatpush.msra.mxu0 0.0
  %1004 = vmatpush.msra.mxu0 0.0
  %1005 = vmatpush.msra.mxu0 0.0
  %1006 = vmatpush.msra.mxu0 0.0
  %1007 = vmatpush.msra.mxu0 0.0
  %1008 = vmatpush.msra.mxu0 %v183
  %1009 = vmatpush.msra.mxu0 %v182
  %1010 = vmatpush.msra.mxu0 %v181
  %1011 = vmatpush.msra.mxu0 %v180
  %1012 = vmatmul.f32.gmra.mxu0 %v834
  %v1013 = vpop.f32.mrf.mxu0
  %v1014 = vadd.f32 %v396, %v1013
  %1015 = vdwg.mxu0
  %1016 = vmatpush.msra.mxu0 0.0
  %1017 = vmatpush.msra.mxu0 0.0
  %1018 = vmatpush.msra.mxu0 0.0
  %1019 = vmatpush.msra.mxu0 0.0
  %1020 = vmatpush.msra.mxu0 0.0
  %1021 = vmatpush.msra.mxu0 0.0
  %1022 = vmatpush.msra.mxu0 0.0
  %1023 = vmatpush.msra.mxu0 0.0
  %1024 = vmatpush.msra.mxu0 0.0
  %1025 = vmatpush.msra.mxu0 0.0
  %1026 = vmatpush.msra.mxu0 0.0
  %1027 = vmatpush.msra.mxu0 0.0
  %1028 = vmatpush.msra.mxu0 %v187
  %1029 = vmatpush.msra.mxu0 %v186
  %1030 = vmatpush.msra.mxu0 %v185
  %1031 = vmatpush.msra.mxu0 %v184
  %1032 = vmatmul.f32.gmra.mxu0 %v834
  %v1033 = vpop.f32.mrf.mxu0
  %v1034 = vadd.f32 %v397, %v1033
  %1035 = vdwg.mxu0
  %1036 = vmatpush.msra.mxu0 0.0
  %1037 = vmatpush.msra.mxu0 0.0
  %1038 = vmatpush.msra.mxu0 0.0
  %1039 = vmatpush.msra.mxu0 0.0
  %1040 = vmatpush.msra.mxu0 0.0
  %1041 = vmatpush.msra.mxu0 0.0
  %1042 = vmatpush.msra.mxu0 0.0
  %1043 = vmatpush.msra.mxu0 0.0
  %1044 = vmatpush.msra.mxu0 0.0
  %1045 = vmatpush.msra.mxu0 0.0
  %1046 = vmatpush.msra.mxu0 0.0
  %1047 = vmatpush.msra.mxu0 0.0
  %1048 = vmatpush.msra.mxu0 %v191
  %1049 = vmatpush.msra.mxu0 %v190
  %1050 = vmatpush.msra.mxu0 %v189
  %1051 = vmatpush.msra.mxu0 %v188
  %1052 = vmatmul.f32.gmra.mxu0 %v834
  %v1053 = vpop.f32.mrf.mxu0
  %v1054 = vadd.f32 %v398, %v1053
  %1055 = vdwg.mxu0
  %1056 = vmatpush.msra.mxu0 0.0
  %1057 = vmatpush.msra.mxu0 0.0
  %1058 = vmatpush.msra.mxu0 0.0
  %1059 = vmatpush.msra.mxu0 0.0
  %1060 = vmatpush.msra.mxu0 0.0
  %1061 = vmatpush.msra.mxu0 0.0
  %1062 = vmatpush.msra.mxu0 0.0
  %1063 = vmatpush.msra.mxu0 0.0
  %1064 = vmatpush.msra.mxu0 0.0
  %1065 = vmatpush.msra.mxu0 0.0
  %1066 = vmatpush.msra.mxu0 0.0
  %1067 = vmatpush.msra.mxu0 0.0
  %1068 = vmatpush.msra.mxu0 %v195
  %1069 = vmatpush.msra.mxu0 %v194
  %1070 = vmatpush.msra.mxu0 %v193
  %1071 = vmatpush.msra.mxu0 %v192
  %1072 = vmatmul.f32.gmra.mxu0 %v834
  %v1073 = vpop.f32.mrf.mxu0
  %v1074 = vadd.f32 %v399, %v1073
  %1075 = vdwg.mxu0
  %v1077 = vsel %vm484, %v854, 0
  %v1080 = vsel %vm484, %v934, 0
  %1082 = vmatpush.xpose.msra.mxu0 0.0
  %1083 = vmatpush.xpose.msra.mxu0 0.0
  %1084 = vmatpush.xpose.msra.mxu0 0.0
  %1085 = vmatpush.xpose.msra.mxu0 0.0
  %1086 = vmatpush.xpose.msra.mxu0 0.0
  %1087 = vmatpush.xpose.msra.mxu0 0.0
  %1088 = vmatpush.xpose.msra.mxu0 0.0
  %1089 = vmatpush.xpose.msra.mxu0 0.0
  %1090 = vmatpush.xpose.msra.mxu0 0.0
  %1091 = vmatpush.xpose.msra.mxu0 0.0
  %1092 = vmatpush.xpose.msra.mxu0 0.0
  %1093 = vmatpush.xpose.msra.mxu0 0.0
  %1094 = vmatpush.xpose.msra.mxu0 0.0
  %1095 = vmatpush.xpose.msra.mxu0 0.0
  %1096 = vmatpush.xpose.msra.mxu0 0.0
  %1097 = vmatpush.xpose.msra.mxu0 %v1080
  %1098 = vmatmul.f32.gmra.mxu0 %v1077
  %v1099 = vpop.f32.mrf.mxu0
  %v1100 = vadd.f32 0.0, %v1099
  %1101 = vdwg.mxu0
  %v1103 = vsel %vm484, %v874, 0
  %v1106 = vsel %vm484, %v954, 0
  %1108 = vmatpush.xpose.msra.mxu0 0.0
  %1109 = vmatpush.xpose.msra.mxu0 0.0
  %1110 = vmatpush.xpose.msra.mxu0 0.0
  %1111 = vmatpush.xpose.msra.mxu0 0.0
  %1112 = vmatpush.xpose.msra.mxu0 0.0
  %1113 = vmatpush.xpose.msra.mxu0 0.0
  %1114 = vmatpush.xpose.msra.mxu0 0.0
  %1115 = vmatpush.xpose.msra.mxu0 0.0
  %1116 = vmatpush.xpose.msra.mxu0 0.0
  %1117 = vmatpush.xpose.msra.mxu0 0.0
  %1118 = vmatpush.xpose.msra.mxu0 0.0
  %1119 = vmatpush.xpose.msra.mxu0 0.0
  %1120 = vmatpush.xpose.msra.mxu0 0.0
  %1121 = vmatpush.xpose.msra.mxu0 0.0
  %1122 = vmatpush.xpose.msra.mxu0 0.0
  %1123 = vmatpush.xpose.msra.mxu0 %v1106
  %1124 = vmatmul.f32.gmra.mxu0 %v1103
  %v1125 = vpop.f32.mrf.mxu0
  %v1126 = vadd.f32 0.0, %v1125
  %1127 = vdwg.mxu0
  %v1129 = vsel %vm484, %v894, 0
  %v1132 = vsel %vm484, %v974, 0
  %1134 = vmatpush.xpose.msra.mxu0 0.0
  %1135 = vmatpush.xpose.msra.mxu0 0.0
  %1136 = vmatpush.xpose.msra.mxu0 0.0
  %1137 = vmatpush.xpose.msra.mxu0 0.0
  %1138 = vmatpush.xpose.msra.mxu0 0.0
  %1139 = vmatpush.xpose.msra.mxu0 0.0
  %1140 = vmatpush.xpose.msra.mxu0 0.0
  %1141 = vmatpush.xpose.msra.mxu0 0.0
  %1142 = vmatpush.xpose.msra.mxu0 0.0
  %1143 = vmatpush.xpose.msra.mxu0 0.0
  %1144 = vmatpush.xpose.msra.mxu0 0.0
  %1145 = vmatpush.xpose.msra.mxu0 0.0
  %1146 = vmatpush.xpose.msra.mxu0 0.0
  %1147 = vmatpush.xpose.msra.mxu0 0.0
  %1148 = vmatpush.xpose.msra.mxu0 0.0
  %1149 = vmatpush.xpose.msra.mxu0 %v1132
  %1150 = vmatmul.f32.gmra.mxu0 %v1129
  %v1151 = vpop.f32.mrf.mxu0
  %v1152 = vadd.f32 0.0, %v1151
  %1153 = vdwg.mxu0
  %v1155 = vsel %vm484, %v914, 0
  %v1158 = vsel %vm484, %v994, 0
  %1160 = vmatpush.xpose.msra.mxu0 0.0
  %1161 = vmatpush.xpose.msra.mxu0 0.0
  %1162 = vmatpush.xpose.msra.mxu0 0.0
  %1163 = vmatpush.xpose.msra.mxu0 0.0
  %1164 = vmatpush.xpose.msra.mxu0 0.0
  %1165 = vmatpush.xpose.msra.mxu0 0.0
  %1166 = vmatpush.xpose.msra.mxu0 0.0
  %1167 = vmatpush.xpose.msra.mxu0 0.0
  %1168 = vmatpush.xpose.msra.mxu0 0.0
  %1169 = vmatpush.xpose.msra.mxu0 0.0
  %1170 = vmatpush.xpose.msra.mxu0 0.0
  %1171 = vmatpush.xpose.msra.mxu0 0.0
  %1172 = vmatpush.xpose.msra.mxu0 0.0
  %1173 = vmatpush.xpose.msra.mxu0 0.0
  %1174 = vmatpush.xpose.msra.mxu0 0.0
  %1175 = vmatpush.xpose.msra.mxu0 %v1158
  %1176 = vmatmul.f32.gmra.mxu0 %v1155
  %v1177 = vpop.f32.mrf.mxu0
  %v1178 = vadd.f32 0.0, %v1177
  %1179 = vdwg.mxu0
  %v1180 = vmul.f32 %v1100, 0.35355338
  %v1181 = vmul.f32 %v1126, 0.35355338
  %v1182 = vmul.f32 %v1152, 0.35355338
  %v1183 = vmul.f32 %v1178, 0.35355338
  %v1184 = vperm.slane %v73, 1
  %v1185 = vadd.f32 %v1180, %v1184
  %v1186 = vadd.f32 %v1181, %v1184
  %v1187 = vadd.f32 %v1182, %v1184
  %v1188 = vadd.f32 %v1183, %v1184
  %v1189 = vsel %vm484, %v1185, -inf
  %1190 = vmax.xlane.f32.xlu0 %v1189
  %v1191 = vpop.xlane.xlu0 %1190
  %v1192 = vsel %vm484, %v1186, -inf
  %1193 = vmax.xlane.f32.xlu0 %v1192
  %v1194 = vpop.xlane.xlu0 %1193
  %v1195 = vsel %vm484, %v1187, -inf
  %1196 = vmax.xlane.f32.xlu0 %v1195
  %v1197 = vpop.xlane.xlu0 %1196
  %v1198 = vsel %vm484, %v1188, -inf
  %1199 = vmax.xlane.f32.xlu0 %v1198
  %v1200 = vpop.xlane.xlu0 %1199
  %v1201 = vsub.f32 %v1185, %v1191
  %v1202 = vsub.f32 %v1186, %v1194
  %v1203 = vsub.f32 %v1187, %v1197
  %v1204 = vsub.f32 %v1188, %v1200
  %v1205 = vmul.f32 %v1201, 1.442695
  %v1206 = vpow.pop %v1205
  %v1207 = vmul.f32 %v1202, 1.442695
  %v1208 = vpow.pop %v1207
  %v1209 = vmul.f32 %v1203, 1.442695
  %v1210 = vpow.pop %v1209
  %v1211 = vmul.f32 %v1204, 1.442695
  %v1212 = vpow.pop %v1211
  %v1213 = vsel %vm484, %v1206, 0.0
  %1214 = vadd.xlane.f32.xlu0 %v1213
  %v1215 = vpop.xlane.xlu0 %1214
  %v1216 = vsel %vm484, %v1208, 0.0
  %1217 = vadd.xlane.f32.xlu0 %v1216
  %v1218 = vpop.xlane.xlu0 %1217
  %v1219 = vsel %vm484, %v1210, 0.0
  %1220 = vadd.xlane.f32.xlu0 %v1219
  %v1221 = vpop.xlane.xlu0 %1220
  %v1222 = vsel %vm484, %v1212, 0.0
  %1223 = vadd.xlane.f32.xlu0 %v1222
  %v1224 = vpop.xlane.xlu0 %1223
  %v1225 = vrcp.pop %v1215
  %v1226 = vrcp.pop %v1218
  %v1227 = vrcp.pop %v1221
  %v1228 = vrcp.pop %v1224
  %v1229 = vmul.f32 %v1206, %v1225
  %v1230 = vmul.f32 %v1208, %v1226
  %v1231 = vmul.f32 %v1210, %v1227
  %v1232 = vmul.f32 %v1212, %v1228
  %v1234 = vsel %vm484, %v1229, 0
  %1236 = vmatpush.msra.mxu0 0.0
  %1237 = vmatpush.msra.mxu0 0.0
  %1238 = vmatpush.msra.mxu0 0.0
  %1239 = vmatpush.msra.mxu0 0.0
  %1240 = vmatpush.msra.mxu0 0.0
  %1241 = vmatpush.msra.mxu0 0.0
  %1242 = vmatpush.msra.mxu0 0.0
  %1243 = vmatpush.msra.mxu0 0.0
  %1244 = vmatpush.msra.mxu0 0.0
  %1245 = vmatpush.msra.mxu0 0.0
  %1246 = vmatpush.msra.mxu0 0.0
  %1247 = vmatpush.msra.mxu0 0.0
  %1248 = vmatpush.msra.mxu0 0.0
  %1249 = vmatpush.msra.mxu0 0.0
  %1250 = vmatpush.msra.mxu0 0.0
  %1251 = vmatpush.msra.mxu0 %v1014
  %1252 = vmatmul.f32.gmra.mxu0 %v1234
  %v1253 = vpop.f32.mrf.mxu0
  %v1254 = vadd.f32 0.0, %v1253
  %1255 = vdwg.mxu0
  %v1257 = vsel %vm484, %v1230, 0
  %1259 = vmatpush.msra.mxu0 0.0
  %1260 = vmatpush.msra.mxu0 0.0
  %1261 = vmatpush.msra.mxu0 0.0
  %1262 = vmatpush.msra.mxu0 0.0
  %1263 = vmatpush.msra.mxu0 0.0
  %1264 = vmatpush.msra.mxu0 0.0
  %1265 = vmatpush.msra.mxu0 0.0
  %1266 = vmatpush.msra.mxu0 0.0
  %1267 = vmatpush.msra.mxu0 0.0
  %1268 = vmatpush.msra.mxu0 0.0
  %1269 = vmatpush.msra.mxu0 0.0
  %1270 = vmatpush.msra.mxu0 0.0
  %1271 = vmatpush.msra.mxu0 0.0
  %1272 = vmatpush.msra.mxu0 0.0
  %1273 = vmatpush.msra.mxu0 0.0
  %1274 = vmatpush.msra.mxu0 %v1034
  %1275 = vmatmul.f32.gmra.mxu0 %v1257
  %v1276 = vpop.f32.mrf.mxu0
  %v1277 = vadd.f32 0.0, %v1276
  %1278 = vdwg.mxu0
  %v1280 = vsel %vm484, %v1231, 0
  %1282 = vmatpush.msra.mxu0 0.0
  %1283 = vmatpush.msra.mxu0 0.0
  %1284 = vmatpush.msra.mxu0 0.0
  %1285 = vmatpush.msra.mxu0 0.0
  %1286 = vmatpush.msra.mxu0 0.0
  %1287 = vmatpush.msra.mxu0 0.0
  %1288 = vmatpush.msra.mxu0 0.0
  %1289 = vmatpush.msra.mxu0 0.0
  %1290 = vmatpush.msra.mxu0 0.0
  %1291 = vmatpush.msra.mxu0 0.0
  %1292 = vmatpush.msra.mxu0 0.0
  %1293 = vmatpush.msra.mxu0 0.0
  %1294 = vmatpush.msra.mxu0 0.0
  %1295 = vmatpush.msra.mxu0 0.0
  %1296 = vmatpush.msra.mxu0 0.0
  %1297 = vmatpush.msra.mxu0 %v1054
  %1298 = vmatmul.f32.gmra.mxu0 %v1280
  %v1299 = vpop.f32.mrf.mxu0
  %v1300 = vadd.f32 0.0, %v1299
  %1301 = vdwg.mxu0
  %v1303 = vsel %vm484, %v1232, 0
  %1305 = vmatpush.msra.mxu0 0.0
  %1306 = vmatpush.msra.mxu0 0.0
  %1307 = vmatpush.msra.mxu0 0.0
  %1308 = vmatpush.msra.mxu0 0.0
  %1309 = vmatpush.msra.mxu0 0.0
  %1310 = vmatpush.msra.mxu0 0.0
  %1311 = vmatpush.msra.mxu0 0.0
  %1312 = vmatpush.msra.mxu0 0.0
  %1313 = vmatpush.msra.mxu0 0.0
  %1314 = vmatpush.msra.mxu0 0.0
  %1315 = vmatpush.msra.mxu0 0.0
  %1316 = vmatpush.msra.mxu0 0.0
  %1317 = vmatpush.msra.mxu0 0.0
  %1318 = vmatpush.msra.mxu0 0.0
  %1319 = vmatpush.msra.mxu0 0.0
  %1320 = vmatpush.msra.mxu0 %v1074
  %1321 = vmatmul.f32.gmra.mxu0 %v1303
  %v1322 = vpop.f32.mrf.mxu0
  %v1323 = vadd.f32 0.0, %v1322
  %1324 = vdwg.mxu0
  %v1326 = vsel %vm484, %v1254, 0
  %1328 = vmatpush.msra.mxu0 0.0
  %1329 = vmatpush.msra.mxu0 0.0
  %1330 = vmatpush.msra.mxu0 0.0
  %1331 = vmatpush.msra.mxu0 0.0
  %1332 = vmatpush.msra.mxu0 0.0
  %1333 = vmatpush.msra.mxu0 0.0
  %1334 = vmatpush.msra.mxu0 0.0
  %1335 = vmatpush.msra.mxu0 0.0
  %1336 = vmatpush.msra.mxu0 0.0
  %1337 = vmatpush.msra.mxu0 0.0
  %1338 = vmatpush.msra.mxu0 0.0
  %1339 = vmatpush.msra.mxu0 0.0
  %1340 = vmatpush.msra.mxu0 0.0
  %1341 = vmatpush.msra.mxu0 0.0
  %1342 = vmatpush.msra.mxu0 0.0
  %1343 = vmatpush.msra.mxu0 %v200
  %1344 = vmatmul.f32.gmra.mxu0 %v1326
  %v1345 = vpop.f32.mrf.mxu0
  %v1346 = vadd.f32 0.0, %v1345
  %1347 = vdwg.mxu0
  %v1348 = vadd.f32 %v735, %v1346
  %v1350 = vsel %vm484, %v1277, 0
  %1352 = vmatpush.msra.mxu0 0.0
  %1353 = vmatpush.msra.mxu0 0.0
  %1354 = vmatpush.msra.mxu0 0.0
  %1355 = vmatpush.msra.mxu0 0.0
  %1356 = vmatpush.msra.mxu0 0.0
  %1357 = vmatpush.msra.mxu0 0.0
  %1358 = vmatpush.msra.mxu0 0.0
  %1359 = vmatpush.msra.mxu0 0.0
  %1360 = vmatpush.msra.mxu0 0.0
  %1361 = vmatpush.msra.mxu0 0.0
  %1362 = vmatpush.msra.mxu0 0.0
  %1363 = vmatpush.msra.mxu0 0.0
  %1364 = vmatpush.msra.mxu0 0.0
  %1365 = vmatpush.msra.mxu0 0.0
  %1366 = vmatpush.msra.mxu0 0.0
  %1367 = vmatpush.msra.mxu0 %v201
  %1368 = vmatmul.f32.gmra.mxu0 %v1350
  %v1369 = vpop.f32.mrf.mxu0
  %v1370 = vadd.f32 0.0, %v1369
  %1371 = vdwg.mxu0
  %v1372 = vadd.f32 %v1348, %v1370
  %v1374 = vsel %vm484, %v1300, 0
  %1376 = vmatpush.msra.mxu0 0.0
  %1377 = vmatpush.msra.mxu0 0.0
  %1378 = vmatpush.msra.mxu0 0.0
  %1379 = vmatpush.msra.mxu0 0.0
  %1380 = vmatpush.msra.mxu0 0.0
  %1381 = vmatpush.msra.mxu0 0.0
  %1382 = vmatpush.msra.mxu0 0.0
  %1383 = vmatpush.msra.mxu0 0.0
  %1384 = vmatpush.msra.mxu0 0.0
  %1385 = vmatpush.msra.mxu0 0.0
  %1386 = vmatpush.msra.mxu0 0.0
  %1387 = vmatpush.msra.mxu0 0.0
  %1388 = vmatpush.msra.mxu0 0.0
  %1389 = vmatpush.msra.mxu0 0.0
  %1390 = vmatpush.msra.mxu0 0.0
  %1391 = vmatpush.msra.mxu0 %v202
  %1392 = vmatmul.f32.gmra.mxu0 %v1374
  %v1393 = vpop.f32.mrf.mxu0
  %v1394 = vadd.f32 0.0, %v1393
  %1395 = vdwg.mxu0
  %v1396 = vadd.f32 %v1372, %v1394
  %v1398 = vsel %vm484, %v1323, 0
  %1400 = vmatpush.msra.mxu0 0.0
  %1401 = vmatpush.msra.mxu0 0.0
  %1402 = vmatpush.msra.mxu0 0.0
  %1403 = vmatpush.msra.mxu0 0.0
  %1404 = vmatpush.msra.mxu0 0.0
  %1405 = vmatpush.msra.mxu0 0.0
  %1406 = vmatpush.msra.mxu0 0.0
  %1407 = vmatpush.msra.mxu0 0.0
  %1408 = vmatpush.msra.mxu0 0.0
  %1409 = vmatpush.msra.mxu0 0.0
  %1410 = vmatpush.msra.mxu0 0.0
  %1411 = vmatpush.msra.mxu0 0.0
  %1412 = vmatpush.msra.mxu0 0.0
  %1413 = vmatpush.msra.mxu0 0.0
  %1414 = vmatpush.msra.mxu0 0.0
  %1415 = vmatpush.msra.mxu0 %v203
  %1416 = vmatmul.f32.gmra.mxu0 %v1398
  %v1417 = vpop.f32.mrf.mxu0
  %v1418 = vadd.f32 0.0, %v1417
  %1419 = vdwg.mxu0
  %v1420 = vadd.f32 %v1396, %v1418
  %v1421 = vadd.f32 %v138, %v832
  %v1422 = vadd.f32 %v139, %v1420
  %v1423 = vld [vmem:[%s12] sm:$0x1]
  %v1424 = vld [vmem:[%s13] sm:$0x1]
  %v1425 = vsel %vm78, %v1421, 0.0
  %1426 = vadd.xlane.f32.xlu0 %v1425
  %v1427 = vpop.xlane.xlu0 %1426
  %v1428 = vsel %vm78, %v1422, 0.0
  %1429 = vadd.xlane.f32.xlu0 %v1428
  %v1430 = vpop.xlane.xlu0 %1429
  %v1431 = vmul.f32 %v1427, %v91
  %v1432 = vmul.f32 %v1430, %v91
  %v1433 = vsub.f32 %v1421, %v1431
  %v1434 = vsub.f32 %v1422, %v1432
  %v1435 = vmul.f32 %v1433, %v1433
  %v1436 = vmul.f32 %v1434, %v1434
  %v1437 = vsel %vm78, %v1435, 0.0
  %1438 = vadd.xlane.f32.xlu0 %v1437
  %v1439 = vpop.xlane.xlu0 %1438
  %v1440 = vsel %vm78, %v1436, 0.0
  %1441 = vadd.xlane.f32.xlu0 %v1440
  %v1442 = vpop.xlane.xlu0 %1441
  %v1443 = vmul.f32 %v1439, %v91
  %v1444 = vmul.f32 %v1442, %v91
  %v1445 = vadd.f32 %v1443, 1e-12
  %v1446 = vadd.f32 %v1444, 1e-12
  %v1447 = vrsqrt.pop %v1445
  %v1448 = vmul.f32 %v1447, %v1445
  %v1449 = vmul.f32 %v1448, %v1447
  %v1450 = vmul.f32 0.5, %v1449
  %v1451 = vsub.f32 1.5, %v1450
  %v1452 = vmul.f32 %v1447, %v1451
  %vm1453 = vweird.f32 %v1445
  %vm1454 = vweird.f32 %v1447
  %vm1455 = vmor %vm1453, %vm1454
  %v1456 = vsel %vm1455, %v1447, %v1452
  %v1457 = vrsqrt.pop %v1446
  %v1458 = vmul.f32 %v1457, %v1446
  %v1459 = vmul.f32 %v1458, %v1457
  %v1460 = vmul.f32 0.5, %v1459
  %v1461 = vsub.f32 1.5, %v1460
  %v1462 = vmul.f32 %v1457, %v1461
  %vm1463 = vweird.f32 %v1446
  %vm1464 = vweird.f32 %v1457
  %vm1465 = vmor %vm1463, %vm1464
  %v1466 = vsel %vm1465, %v1457, %v1462
  %v1467 = vmul.f32 %v1433, %v1456
  %v1468 = vmul.f32 %v1434, %v1466
  %v1470 = vperm.slane %v1423, 0
  %v1472 = vmul.f32 %v1467, %v1470
  %v1473 = vmul.f32 %v1468, %v1470
  %v1475 = vperm.slane %v1424, 0
  %v1477 = vadd.f32 %v1472, %v1475
  %v1478 = vadd.f32 %v1473, %v1475
  %v1479 = vld [vmem:[%s14] sm:$0xff]
  %v1480 = vld [vmem:[%s14 + $0x8] sm:$0xff]
  %v1481 = vld [vmem:[%s14 + $0x10] sm:$0xff]
  %v1482 = vld [vmem:[%s14 + $0x18] sm:$0xff]
  %v1483 = vld [vmem:[%s15] sm:$0x1]
  %v1485 = vperm.slane %v1483, 0
  %v1488 = vsel %vm78, %v1477, 0
  %v1491 = vsel %vm78, %v1478, 0
  %1493 = vmatpush.msra.mxu0 0.0
  %1494 = vmatpush.msra.mxu0 0.0
  %1495 = vmatpush.msra.mxu0 0.0
  %1496 = vmatpush.msra.mxu0 0.0
  %1497 = vmatpush.msra.mxu0 0.0
  %1498 = vmatpush.msra.mxu0 0.0
  %1499 = vmatpush.msra.mxu0 0.0
  %1500 = vmatpush.msra.mxu0 0.0
  %1501 = vmatpush.msra.mxu0 0.0
  %1502 = vmatpush.msra.mxu0 0.0
  %1503 = vmatpush.msra.mxu0 0.0
  %1504 = vmatpush.msra.mxu0 0.0
  %1505 = vmatpush.msra.mxu0 %v1482
  %1506 = vmatpush.msra.mxu0 %v1481
  %1507 = vmatpush.msra.mxu0 %v1480
  %1508 = vmatpush.msra.mxu0 %v1479
  %1509 = vmatmul.f32.gmra.mxu0 %v1488
  %v1510 = vpop.f32.mrf.mxu0
  %v1511 = vadd.f32 %v1485, %v1510
  %1512 = vmatmul.f32.gmra.mxu0 %v1491
  %v1513 = vpop.f32.mrf.mxu0
  %v1514 = vadd.f32 %v1485, %v1513
  %1515 = vdwg.mxu0
  %v1516 = vmul.f32 %v1511, %v1511
  %v1517 = vmul.f32 %v1514, %v1514
  %v1518 = vmul.f32 %v1511, %v1516
  %v1519 = vmul.f32 %v1514, %v1517
  %v1520 = vmul.f32 %v1518, 0.044715
  %v1521 = vmul.f32 %v1519, 0.044715
  %v1522 = vadd.f32 %v1511, %v1520
  %v1523 = vadd.f32 %v1514, %v1521
  %v1524 = vmul.f32 %v1522, 0.7978846
  %v1525 = vmul.f32 %v1523, 0.7978846
  %v1526 = vtanh.pop %v1524
  %v1527 = vtanh.pop %v1525
  %v1528 = vadd.f32 %v1526, 1.0
  %v1529 = vadd.f32 %v1527, 1.0
  %v1530 = vmul.f32 %v1528, 0.5
  %v1531 = vmul.f32 %v1529, 0.5
  %v1532 = vmul.f32 %v1511, %v1530
  %v1533 = vmul.f32 %v1514, %v1531
  %v1534 = vld [vmem:[%s16] sm:$0xff]
  %v1535 = vld [vmem:[%s16 + $0x8] sm:$0xff]
  %v1536 = vld [vmem:[%s16 + $0x10] sm:$0xff]
  %v1537 = vld [vmem:[%s16 + $0x18] sm:$0xff]
  %v1538 = vld [vmem:[%s16 + $0x20] sm:$0xff]
  %v1539 = vld [vmem:[%s16 + $0x28] sm:$0xff]
  %v1540 = vld [vmem:[%s16 + $0x30] sm:$0xff]
  %v1541 = vld [vmem:[%s16 + $0x38] sm:$0xff]
  %v1542 = vld [vmem:[%s17] sm:$0x1]
  %v1544 = vperm.slane %v1542, 0
  %vm1546 = vcmask 523264
  %v1548 = vsel %vm1546, %v1532, 0
  %v1551 = vsel %vm1546, %v1533, 0
  %1553 = vmatpush.msra.mxu0 0.0
  %1554 = vmatpush.msra.mxu0 0.0
  %1555 = vmatpush.msra.mxu0 0.0
  %1556 = vmatpush.msra.mxu0 0.0
  %1557 = vmatpush.msra.mxu0 0.0
  %1558 = vmatpush.msra.mxu0 0.0
  %1559 = vmatpush.msra.mxu0 0.0
  %1560 = vmatpush.msra.mxu0 0.0
  %1561 = vmatpush.msra.mxu0 %v1541
  %1562 = vmatpush.msra.mxu0 %v1540
  %1563 = vmatpush.msra.mxu0 %v1539
  %1564 = vmatpush.msra.mxu0 %v1538
  %1565 = vmatpush.msra.mxu0 %v1537
  %1566 = vmatpush.msra.mxu0 %v1536
  %1567 = vmatpush.msra.mxu0 %v1535
  %1568 = vmatpush.msra.mxu0 %v1534
  %1569 = vmatmul.f32.gmra.mxu0 %v1548
  %v1570 = vpop.f32.mrf.mxu0
  %v1571 = vadd.f32 %v1544, %v1570
  %1572 = vmatmul.f32.gmra.mxu0 %v1551
  %v1573 = vpop.f32.mrf.mxu0
  %v1574 = vadd.f32 %v1544, %v1573
  %1575 = vdwg.mxu0
  %v1576 = vadd.f32 %v1477, %v1571
  %v1577 = vadd.f32 %v1478, %v1574
  %v1578 = vld [vmem:[%s18] sm:$0x1]
  %v1579 = vld [vmem:[%s19] sm:$0x1]
  %v1580 = vsel %vm78, %v1576, 0.0
  %1581 = vadd.xlane.f32.xlu0 %v1580
  %v1582 = vpop.xlane.xlu0 %1581
  %v1583 = vsel %vm78, %v1577, 0.0
  %1584 = vadd.xlane.f32.xlu0 %v1583
  %v1585 = vpop.xlane.xlu0 %1584
  %v1586 = vmul.f32 %v1582, %v91
  %v1587 = vmul.f32 %v1585, %v91
  %v1588 = vsub.f32 %v1576, %v1586
  %v1589 = vsub.f32 %v1577, %v1587
  %v1590 = vmul.f32 %v1588, %v1588
  %v1591 = vmul.f32 %v1589, %v1589
  %v1592 = vsel %vm78, %v1590, 0.0
  %1593 = vadd.xlane.f32.xlu0 %v1592
  %v1594 = vpop.xlane.xlu0 %1593
  %v1595 = vsel %vm78, %v1591, 0.0
  %1596 = vadd.xlane.f32.xlu0 %v1595
  %v1597 = vpop.xlane.xlu0 %1596
  %v1598 = vmul.f32 %v1594, %v91
  %v1599 = vmul.f32 %v1597, %v91
  %v1600 = vadd.f32 %v1598, 1e-12
  %v1601 = vadd.f32 %v1599, 1e-12
  %v1602 = vrsqrt.pop %v1600
  %v1603 = vmul.f32 %v1602, %v1600
  %v1604 = vmul.f32 %v1603, %v1602
  %v1605 = vmul.f32 0.5, %v1604
  %v1606 = vsub.f32 1.5, %v1605
  %v1607 = vmul.f32 %v1602, %v1606
  %vm1608 = vweird.f32 %v1600
  %vm1609 = vweird.f32 %v1602
  %vm1610 = vmor %vm1608, %vm1609
  %v1611 = vsel %vm1610, %v1602, %v1607
  %v1612 = vrsqrt.pop %v1601
  %v1613 = vmul.f32 %v1612, %v1601
  %v1614 = vmul.f32 %v1613, %v1612
  %v1615 = vmul.f32 0.5, %v1614
  %v1616 = vsub.f32 1.5, %v1615
  %v1617 = vmul.f32 %v1612, %v1616
  %vm1618 = vweird.f32 %v1601
  %vm1619 = vweird.f32 %v1612
  %vm1620 = vmor %vm1618, %vm1619
  %v1621 = vsel %vm1620, %v1612, %v1617
  %v1622 = vmul.f32 %v1588, %v1611
  %v1623 = vmul.f32 %v1589, %v1621
  %v1625 = vperm.slane %v1578, 0
  %v1627 = vmul.f32 %v1622, %v1625
  %v1628 = vmul.f32 %v1623, %v1625
  %v1630 = vperm.slane %v1579, 0
  %v1632 = vadd.f32 %v1627, %v1630
  %v1633 = vadd.f32 %v1628, %v1630
  %s1634 = scalar_lea.vmem %s4, 128
  %v1635 = vld [vmem:[%s1634] sm:$0xff]
  %v1636 = vld [vmem:[%s1634 + $0x8] sm:$0xff]
  %v1637 = vld [vmem:[%s1634 + $0x10] sm:$0xff]
  %v1638 = vld [vmem:[%s1634 + $0x18] sm:$0xff]
  %v1639 = vld [vmem:[%s1634 + $0x20] sm:$0xff]
  %v1640 = vld [vmem:[%s1634 + $0x28] sm:$0xff]
  %v1641 = vld [vmem:[%s1634 + $0x30] sm:$0xff]
  %v1642 = vld [vmem:[%s1634 + $0x38] sm:$0xff]
  %v1643 = vld [vmem:[%s1634 + $0x40] sm:$0xff]
  %v1644 = vld [vmem:[%s1634 + $0x48] sm:$0xff]
  %v1645 = vld [vmem:[%s1634 + $0x50] sm:$0xff]
  %v1646 = vld [vmem:[%s1634 + $0x58] sm:$0xff]
  %v1647 = vld [vmem:[%s1634 + $0x60] sm:$0xff]
  %v1648 = vld [vmem:[%s1634 + $0x68] sm:$0xff]
  %v1649 = vld [vmem:[%s1634 + $0x70] sm:$0xff]
  %v1650 = vld [vmem:[%s1634 + $0x78] sm:$0xff]
  %s1651 = scalar_lea.vmem %s5, 4
  %v1652 = vld [vmem:[%s1651] sm:$0x1]
  %v1653 = vld [vmem:[%s1651 + $0x1] sm:$0x1]
  %v1654 = vld [vmem:[%s1651 + $0x2] sm:$0x1]
  %v1655 = vld [vmem:[%s1651 + $0x3] sm:$0x1]
  %s1656 = scalar_lea.vmem %s6, 128
  %v1657 = vld [vmem:[%s1656] sm:$0xff]
  %v1658 = vld [vmem:[%s1656 + $0x8] sm:$0xff]
  %v1659 = vld [vmem:[%s1656 + $0x10] sm:$0xff]
  %v1660 = vld [vmem:[%s1656 + $0x18] sm:$0xff]
  %v1661 = vld [vmem:[%s1656 + $0x20] sm:$0xff]
  %v1662 = vld [vmem:[%s1656 + $0x28] sm:$0xff]
  %v1663 = vld [vmem:[%s1656 + $0x30] sm:$0xff]
  %v1664 = vld [vmem:[%s1656 + $0x38] sm:$0xff]
  %v1665 = vld [vmem:[%s1656 + $0x40] sm:$0xff]
  %v1666 = vld [vmem:[%s1656 + $0x48] sm:$0xff]
  %v1667 = vld [vmem:[%s1656 + $0x50] sm:$0xff]
  %v1668 = vld [vmem:[%s1656 + $0x58] sm:$0xff]
  %v1669 = vld [vmem:[%s1656 + $0x60] sm:$0xff]
  %v1670 = vld [vmem:[%s1656 + $0x68] sm:$0xff]
  %v1671 = vld [vmem:[%s1656 + $0x70] sm:$0xff]
  %v1672 = vld [vmem:[%s1656 + $0x78] sm:$0xff]
  %s1673 = scalar_lea.vmem %s7, 4
  %v1674 = vld [vmem:[%s1673] sm:$0x1]
  %v1675 = vld [vmem:[%s1673 + $0x1] sm:$0x1]
  %v1676 = vld [vmem:[%s1673 + $0x2] sm:$0x1]
  %v1677 = vld [vmem:[%s1673 + $0x3] sm:$0x1]
  %s1678 = scalar_lea.vmem %s8, 128
  %v1679 = vld [vmem:[%s1678] sm:$0xff]
  %v1680 = vld [vmem:[%s1678 + $0x8] sm:$0xff]
  %v1681 = vld [vmem:[%s1678 + $0x10] sm:$0xff]
  %v1682 = vld [vmem:[%s1678 + $0x18] sm:$0xff]
  %v1683 = vld [vmem:[%s1678 + $0x20] sm:$0xff]
  %v1684 = vld [vmem:[%s1678 + $0x28] sm:$0xff]
  %v1685 = vld [vmem:[%s1678 + $0x30] sm:$0xff]
  %v1686 = vld [vmem:[%s1678 + $0x38] sm:$0xff]
  %v1687 = vld [vmem:[%s1678 + $0x40] sm:$0xff]
  %v1688 = vld [vmem:[%s1678 + $0x48] sm:$0xff]
  %v1689 = vld [vmem:[%s1678 + $0x50] sm:$0xff]
  %v1690 = vld [vmem:[%s1678 + $0x58] sm:$0xff]
  %v1691 = vld [vmem:[%s1678 + $0x60] sm:$0xff]
  %v1692 = vld [vmem:[%s1678 + $0x68] sm:$0xff]
  %v1693 = vld [vmem:[%s1678 + $0x70] sm:$0xff]
  %v1694 = vld [vmem:[%s1678 + $0x78] sm:$0xff]
  %s1695 = scalar_lea.vmem %s9, 4
  %v1696 = vld [vmem:[%s1695] sm:$0x1]
  %v1697 = vld [vmem:[%s1695 + $0x1] sm:$0x1]
  %v1698 = vld [vmem:[%s1695 + $0x2] sm:$0x1]
  %v1699 = vld [vmem:[%s1695 + $0x3] sm:$0x1]
  %s1700 = scalar_lea.vmem %s10, 32
  %v1701 = vld [vmem:[%s1700] sm:$0xff]
  %v1702 = vld [vmem:[%s1700 + $0x8] sm:$0xff]
  %v1703 = vld [vmem:[%s1700 + $0x10] sm:$0xff]
  %v1704 = vld [vmem:[%s1700 + $0x18] sm:$0xff]
  %s1705 = scalar_lea.vmem %s11, 1
  %v1706 = vld [vmem:[%s1705] sm:$0x1]
  %v1711 = vperm.slane %v1652, 0
  %v1712 = vperm.slane %v1653, 0
  %v1713 = vperm.slane %v1654, 0
  %v1714 = vperm.slane %v1655, 0
  %v1720 = vsel %vm78, %v1632, 0
  %1722 = vmatpush.msra.mxu0 0.0
  %1723 = vmatpush.msra.mxu0 0.0
  %1724 = vmatpush.msra.mxu0 0.0
  %1725 = vmatpush.msra.mxu0 0.0
  %1726 = vmatpush.msra.mxu0 0.0
  %1727 = vmatpush.msra.mxu0 0.0
  %1728 = vmatpush.msra.mxu0 0.0
  %1729 = vmatpush.msra.mxu0 0.0
  %1730 = vmatpush.msra.mxu0 0.0
  %1731 = vmatpush.msra.mxu0 0.0
  %1732 = vmatpush.msra.mxu0 0.0
  %1733 = vmatpush.msra.mxu0 0.0
  %1734 = vmatpush.msra.mxu0 %v1638
  %1735 = vmatpush.msra.mxu0 %v1637
  %1736 = vmatpush.msra.mxu0 %v1636
  %1737 = vmatpush.msra.mxu0 %v1635
  %1738 = vmatmul.f32.gmra.mxu0 %v1720
  %v1739 = vpop.f32.mrf.mxu0
  %v1740 = vadd.f32 %v1711, %v1739
  %1741 = vdwg.mxu0
  %1742 = vmatpush.msra.mxu0 0.0
  %1743 = vmatpush.msra.mxu0 0.0
  %1744 = vmatpush.msra.mxu0 0.0
  %1745 = vmatpush.msra.mxu0 0.0
  %1746 = vmatpush.msra.mxu0 0.0
  %1747 = vmatpush.msra.mxu0 0.0
  %1748 = vmatpush.msra.mxu0 0.0
  %1749 = vmatpush.msra.mxu0 0.0
  %1750 = vmatpush.msra.mxu0 0.0
  %1751 = vmatpush.msra.mxu0 0.0
  %1752 = vmatpush.msra.mxu0 0.0
  %1753 = vmatpush.msra.mxu0 0.0
  %1754 = vmatpush.msra.mxu0 %v1642
  %1755 = vmatpush.msra.mxu0 %v1641
  %1756 = vmatpush.msra.mxu0 %v1640
  %1757 = vmatpush.msra.mxu0 %v1639
  %1758 = vmatmul.f32.gmra.mxu0 %v1720
  %v1759 = vpop.f32.mrf.mxu0
  %v1760 = vadd.f32 %v1712, %v1759
  %1761 = vdwg.mxu0
  %1762 = vmatpush.msra.mxu0 0.0
  %1763 = vmatpush.msra.mxu0 0.0
  %1764 = vmatpush.msra.mxu0 0.0
  %1765 = vmatpush.msra.mxu0 0.0
  %1766 = vmatpush.msra.mxu0 0.0
  %1767 = vmatpush.msra.mxu0 0.0
  %1768 = vmatpush.msra.mxu0 0.0
  %1769 = vmatpush.msra.mxu0 0.0
  %1770 = vmatpush.msra.mxu0 0.0
  %1771 = vmatpush.msra.mxu0 0.0
  %1772 = vmatpush.msra.mxu0 0.0
  %1773 = vmatpush.msra.mxu0 0.0
  %1774 = vmatpush.msra.mxu0 %v1646
  %1775 = vmatpush.msra.mxu0 %v1645
  %1776 = vmatpush.msra.mxu0 %v1644
  %1777 = vmatpush.msra.mxu0 %v1643
  %1778 = vmatmul.f32.gmra.mxu0 %v1720
  %v1779 = vpop.f32.mrf.mxu0
  %v1780 = vadd.f32 %v1713, %v1779
  %1781 = vdwg.mxu0
  %1782 = vmatpush.msra.mxu0 0.0
  %1783 = vmatpush.msra.mxu0 0.0
  %1784 = vmatpush.msra.mxu0 0.0
  %1785 = vmatpush.msra.mxu0 0.0
  %1786 = vmatpush.msra.mxu0 0.0
  %1787 = vmatpush.msra.mxu0 0.0
  %1788 = vmatpush.msra.mxu0 0.0
  %1789 = vmatpush.msra.mxu0 0.0
  %1790 = vmatpush.msra.mxu0 0.0
  %1791 = vmatpush.msra.mxu0 0.0
  %1792 = vmatpush.msra.mxu0 0.0
  %1793 = vmatpush.msra.mxu0 0.0
  %1794 = vmatpush.msra.mxu0 %v1650
  %1795 = vmatpush.msra.mxu0 %v1649
  %1796 = vmatpush.msra.mxu0 %v1648
  %1797 = vmatpush.msra.mxu0 %v1647
  %1798 = vmatmul.f32.gmra.mxu0 %v1720
  %v1799 = vpop.f32.mrf.mxu0
  %v1800 = vadd.f32 %v1714, %v1799
  %1801 = vdwg.mxu0
  %v1806 = vperm.slane %v1674, 0
  %v1807 = vperm.slane %v1675, 0
  %v1808 = vperm.slane %v1676, 0
  %v1809 = vperm.slane %v1677, 0
  %1814 = vmatpush.msra.mxu0 0.0
  %1815 = vmatpush.msra.mxu0 0.0
  %1816 = vmatpush.msra.mxu0 0.0
  %1817 = vmatpush.msra.mxu0 0.0
  %1818 = vmatpush.msra.mxu0 0.0
  %1819 = vmatpush.msra.mxu0 0.0
  %1820 = vmatpush.msra.mxu0 0.0
  %1821 = vmatpush.msra.mxu0 0.0
  %1822 = vmatpush.msra.mxu0 0.0
  %1823 = vmatpush.msra.mxu0 0.0
  %1824 = vmatpush.msra.mxu0 0.0
  %1825 = vmatpush.msra.mxu0 0.0
  %1826 = vmatpush.msra.mxu0 %v1660
  %1827 = vmatpush.msra.mxu0 %v1659
  %1828 = vmatpush.msra.mxu0 %v1658
  %1829 = vmatpush.msra.mxu0 %v1657
  %1830 = vmatmul.f32.gmra.mxu0 %v1720
  %v1831 = vpop.f32.mrf.mxu0
  %v1832 = vadd.f32 %v1806, %v1831
  %1833 = vdwg.mxu0
  %1834 = vmatpush.msra.mxu0 0.0
  %1835 = vmatpush.msra.mxu0 0.0
  %1836 = vmatpush.msra.mxu0 0.0
  %1837 = vmatpush.msra.mxu0 0.0
  %1838 = vmatpush.msra.mxu0 0.0
  %1839 = vmatpush.msra.mxu0 0.0
  %1840 = vmatpush.msra.mxu0 0.0
  %1841 = vmatpush.msra.mxu0 0.0
  %1842 = vmatpush.msra.mxu0 0.0
  %1843 = vmatpush.msra.mxu0 0.0
  %1844 = vmatpush.msra.mxu0 0.0
  %1845 = vmatpush.msra.mxu0 0.0
  %1846 = vmatpush.msra.mxu0 %v1664
  %1847 = vmatpush.msra.mxu0 %v1663
  %1848 = vmatpush.msra.mxu0 %v1662
  %1849 = vmatpush.msra.mxu0 %v1661
  %1850 = vmatmul.f32.gmra.mxu0 %v1720
  %v1851 = vpop.f32.mrf.mxu0
  %v1852 = vadd.f32 %v1807, %v1851
  %1853 = vdwg.mxu0
  %1854 = vmatpush.msra.mxu0 0.0
  %1855 = vmatpush.msra.mxu0 0.0
  %1856 = vmatpush.msra.mxu0 0.0
  %1857 = vmatpush.msra.mxu0 0.0
  %1858 = vmatpush.msra.mxu0 0.0
  %1859 = vmatpush.msra.mxu0 0.0
  %1860 = vmatpush.msra.mxu0 0.0
  %1861 = vmatpush.msra.mxu0 0.0
  %1862 = vmatpush.msra.mxu0 0.0
  %1863 = vmatpush.msra.mxu0 0.0
  %1864 = vmatpush.msra.mxu0 0.0
  %1865 = vmatpush.msra.mxu0 0.0
  %1866 = vmatpush.msra.mxu0 %v1668
  %1867 = vmatpush.msra.mxu0 %v1667
  %1868 = vmatpush.msra.mxu0 %v1666
  %1869 = vmatpush.msra.mxu0 %v1665
  %1870 = vmatmul.f32.gmra.mxu0 %v1720
  %v1871 = vpop.f32.mrf.mxu0
  %v1872 = vadd.f32 %v1808, %v1871
  %1873 = vdwg.mxu0
  %1874 = vmatpush.msra.mxu0 0.0
  %1875 = vmatpush.msra.mxu0 0.0
  %1876 = vmatpush.msra.mxu0 0.0
  %1877 = vmatpush.msra.mxu0 0.0
  %1878 = vmatpush.msra.mxu0 0.0
  %1879 = vmatpush.msra.mxu0 0.0
  %1880 = vmatpush.msra.mxu0 0.0
  %1881 = vmatpush.msra.mxu0 0.0
  %1882 = vmatpush.msra.mxu0 0.0
  %1883 = vmatpush.msra.mxu0 0.0
  %1884 = vmatpush.msra.mxu0 0.0
  %1885 = vmatpush.msra.mxu0 0.0
  %1886 = vmatpush.msra.mxu0 %v1672
  %1887 = vmatpush.msra.mxu0 %v1671
  %1888 = vmatpush.msra.mxu0 %v1670
  %1889 = vmatpush.msra.mxu0 %v1669
  %1890 = vmatmul.f32.gmra.mxu0 %v1720
  %v1891 = vpop.f32.mrf.mxu0
  %v1892 = vadd.f32 %v1809, %v1891
  %1893 = vdwg.mxu0
  %v1898 = vperm.slane %v1696, 0
  %v1899 = vperm.slane %v1697, 0
  %v1900 = vperm.slane %v1698, 0
  %v1901 = vperm.slane %v1699, 0
  %1906 = vmatpush.msra.mxu0 0.0
  %1907 = vmatpush.msra.mxu0 0.0
  %1908 = vmatpush.msra.mxu0 0.0
  %1909 = vmatpush.msra.mxu0 0.0
  %1910 = vmatpush.msra.mxu0 0.0
  %1911 = vmatpush.msra.mxu0 0.0
  %1912 = vmatpush.msra.mxu0 0.0
  %1913 = vmatpush.msra.mxu0 0.0
  %1914 = vmatpush.msra.mxu0 0.0
  %1915 = vmatpush.msra.mxu0 0.0
  %1916 = vmatpush.msra.mxu0 0.0
  %1917 = vmatpush.msra.mxu0 0.0
  %1918 = vmatpush.msra.mxu0 %v1682
  %1919 = vmatpush.msra.mxu0 %v1681
  %1920 = vmatpush.msra.mxu0 %v1680
  %1921 = vmatpush.msra.mxu0 %v1679
  %1922 = vmatmul.f32.gmra.mxu0 %v1720
  %v1923 = vpop.f32.mrf.mxu0
  %v1924 = vadd.f32 %v1898, %v1923
  %1925 = vdwg.mxu0
  %1926 = vmatpush.msra.mxu0 0.0
  %1927 = vmatpush.msra.mxu0 0.0
  %1928 = vmatpush.msra.mxu0 0.0
  %1929 = vmatpush.msra.mxu0 0.0
  %1930 = vmatpush.msra.mxu0 0.0
  %1931 = vmatpush.msra.mxu0 0.0
  %1932 = vmatpush.msra.mxu0 0.0
  %1933 = vmatpush.msra.mxu0 0.0
  %1934 = vmatpush.msra.mxu0 0.0
  %1935 = vmatpush.msra.mxu0 0.0
  %1936 = vmatpush.msra.mxu0 0.0
  %1937 = vmatpush.msra.mxu0 0.0
  %1938 = vmatpush.msra.mxu0 %v1686
  %1939 = vmatpush.msra.mxu0 %v1685
  %1940 = vmatpush.msra.mxu0 %v1684
  %1941 = vmatpush.msra.mxu0 %v1683
  %1942 = vmatmul.f32.gmra.mxu0 %v1720
  %v1943 = vpop.f32.mrf.mxu0
  %v1944 = vadd.f32 %v1899, %v1943
  %1945 = vdwg.mxu0
  %1946 = vmatpush.msra.mxu0 0.0
  %1947 = vmatpush.msra.mxu0 0.0
  %1948 = vmatpush.msra.mxu0 0.0
  %1949 = vmatpush.msra.mxu0 0.0
  %1950 = vmatpush.msra.mxu0 0.0
  %1951 = vmatpush.msra.mxu0 0.0
  %1952 = vmatpush.msra.mxu0 0.0
  %1953 = vmatpush.msra.mxu0 0.0
  %1954 = vmatpush.msra.mxu0 0.0
  %1955 = vmatpush.msra.mxu0 0.0
  %1956 = vmatpush.msra.mxu0 0.0
  %1957 = vmatpush.msra.mxu0 0.0
  %1958 = vmatpush.msra.mxu0 %v1690
  %1959 = vmatpush.msra.mxu0 %v1689
  %1960 = vmatpush.msra.mxu0 %v1688
  %1961 = vmatpush.msra.mxu0 %v1687
  %1962 = vmatmul.f32.gmra.mxu0 %v1720
  %v1963 = vpop.f32.mrf.mxu0
  %v1964 = vadd.f32 %v1900, %v1963
  %1965 = vdwg.mxu0
  %1966 = vmatpush.msra.mxu0 0.0
  %1967 = vmatpush.msra.mxu0 0.0
  %1968 = vmatpush.msra.mxu0 0.0
  %1969 = vmatpush.msra.mxu0 0.0
  %1970 = vmatpush.msra.mxu0 0.0
  %1971 = vmatpush.msra.mxu0 0.0
  %1972 = vmatpush.msra.mxu0 0.0
  %1973 = vmatpush.msra.mxu0 0.0
  %1974 = vmatpush.msra.mxu0 0.0
  %1975 = vmatpush.msra.mxu0 0.0
  %1976 = vmatpush.msra.mxu0 0.0
  %1977 = vmatpush.msra.mxu0 0.0
  %1978 = vmatpush.msra.mxu0 %v1694
  %1979 = vmatpush.msra.mxu0 %v1693
  %1980 = vmatpush.msra.mxu0 %v1692
  %1981 = vmatpush.msra.mxu0 %v1691
  %1982 = vmatmul.f32.gmra.mxu0 %v1720
  %v1983 = vpop.f32.mrf.mxu0
  %v1984 = vadd.f32 %v1901, %v1983
  %1985 = vdwg.mxu0
  %v1987 = vsel %vm484, %v1740, 0
  %v1990 = vsel %vm484, %v1832, 0
  %1992 = vmatpush.xpose.msra.mxu0 0.0
  %1993 = vmatpush.xpose.msra.mxu0 0.0
  %1994 = vmatpush.xpose.msra.mxu0 0.0
  %1995 = vmatpush.xpose.msra.mxu0 0.0
  %1996 = vmatpush.xpose.msra.mxu0 0.0
  %1997 = vmatpush.xpose.msra.mxu0 0.0
  %1998 = vmatpush.xpose.msra.mxu0 0.0
  %1999 = vmatpush.xpose.msra.mxu0 0.0
  %2000 = vmatpush.xpose.msra.mxu0 0.0
  %2001 = vmatpush.xpose.msra.mxu0 0.0
  %2002 = vmatpush.xpose.msra.mxu0 0.0
  %2003 = vmatpush.xpose.msra.mxu0 0.0
  %2004 = vmatpush.xpose.msra.mxu0 0.0
  %2005 = vmatpush.xpose.msra.mxu0 0.0
  %2006 = vmatpush.xpose.msra.mxu0 0.0
  %2007 = vmatpush.xpose.msra.mxu0 %v1990
  %2008 = vmatmul.f32.gmra.mxu0 %v1987
  %v2009 = vpop.f32.mrf.mxu0
  %v2010 = vadd.f32 0.0, %v2009
  %2011 = vdwg.mxu0
  %v2013 = vsel %vm484, %v1760, 0
  %v2016 = vsel %vm484, %v1852, 0
  %2018 = vmatpush.xpose.msra.mxu0 0.0
  %2019 = vmatpush.xpose.msra.mxu0 0.0
  %2020 = vmatpush.xpose.msra.mxu0 0.0
  %2021 = vmatpush.xpose.msra.mxu0 0.0
  %2022 = vmatpush.xpose.msra.mxu0 0.0
  %2023 = vmatpush.xpose.msra.mxu0 0.0
  %2024 = vmatpush.xpose.msra.mxu0 0.0
  %2025 = vmatpush.xpose.msra.mxu0 0.0
  %2026 = vmatpush.xpose.msra.mxu0 0.0
  %2027 = vmatpush.xpose.msra.mxu0 0.0
  %2028 = vmatpush.xpose.msra.mxu0 0.0
  %2029 = vmatpush.xpose.msra.mxu0 0.0
  %2030 = vmatpush.xpose.msra.mxu0 0.0
  %2031 = vmatpush.xpose.msra.mxu0 0.0
  %2032 = vmatpush.xpose.msra.mxu0 0.0
  %2033 = vmatpush.xpose.msra.mxu0 %v2016
  %2034 = vmatmul.f32.gmra.mxu0 %v2013
  %v2035 = vpop.f32.mrf.mxu0
  %v2036 = vadd.f32 0.0, %v2035
  %2037 = vdwg.mxu0
  %v2039 = vsel %vm484, %v1780, 0
  %v2042 = vsel %vm484, %v1872, 0
  %2044 = vmatpush.xpose.msra.mxu0 0.0
  %2045 = vmatpush.xpose.msra.mxu0 0.0
  %2046 = vmatpush.xpose.msra.mxu0 0.0
  %2047 = vmatpush.xpose.msra.mxu0 0.0
  %2048 = vmatpush.xpose.msra.mxu0 0.0
  %2049 = vmatpush.xpose.msra.mxu0 0.0
  %2050 = vmatpush.xpose.msra.mxu0 0.0
  %2051 = vmatpush.xpose.msra.mxu0 0.0
  %2052 = vmatpush.xpose.msra.mxu0 0.0
  %2053 = vmatpush.xpose.msra.mxu0 0.0
  %2054 = vmatpush.xpose.msra.mxu0 0.0
  %2055 = vmatpush.xpose.msra.mxu0 0.0
  %2056 = vmatpush.xpose.msra.mxu0 0.0
  %2057 = vmatpush.xpose.msra.mxu0 0.0
  %2058 = vmatpush.xpose.msra.mxu0 0.0
  %2059 = vmatpush.xpose.msra.mxu0 %v2042
  %2060 = vmatmul.f32.gmra.mxu0 %v2039
  %v2061 = vpop.f32.mrf.mxu0
  %v2062 = vadd.f32 0.0, %v2061
  %2063 = vdwg.mxu0
  %v2065 = vsel %vm484, %v1800, 0
  %v2068 = vsel %vm484, %v1892, 0
  %2070 = vmatpush.xpose.msra.mxu0 0.0
  %2071 = vmatpush.xpose.msra.mxu0 0.0
  %2072 = vmatpush.xpose.msra.mxu0 0.0
  %2073 = vmatpush.xpose.msra.mxu0 0.0
  %2074 = vmatpush.xpose.msra.mxu0 0.0
  %2075 = vmatpush.xpose.msra.mxu0 0.0
  %2076 = vmatpush.xpose.msra.mxu0 0.0
  %2077 = vmatpush.xpose.msra.mxu0 0.0
  %2078 = vmatpush.xpose.msra.mxu0 0.0
  %2079 = vmatpush.xpose.msra.mxu0 0.0
  %2080 = vmatpush.xpose.msra.mxu0 0.0
  %2081 = vmatpush.xpose.msra.mxu0 0.0
  %2082 = vmatpush.xpose.msra.mxu0 0.0
  %2083 = vmatpush.xpose.msra.mxu0 0.0
  %2084 = vmatpush.xpose.msra.mxu0 0.0
  %2085 = vmatpush.xpose.msra.mxu0 %v2068
  %2086 = vmatmul.f32.gmra.mxu0 %v2065
  %v2087 = vpop.f32.mrf.mxu0
  %v2088 = vadd.f32 0.0, %v2087
  %2089 = vdwg.mxu0
  %v2090 = vmul.f32 %v2010, 0.35355338
  %v2091 = vmul.f32 %v2036, 0.35355338
  %v2092 = vmul.f32 %v2062, 0.35355338
  %v2093 = vmul.f32 %v2088, 0.35355338
  %v2094 = vadd.f32 %v2090, %v593
  %v2095 = vadd.f32 %v2091, %v593
  %v2096 = vadd.f32 %v2092, %v593
  %v2097 = vadd.f32 %v2093, %v593
  %v2098 = vsel %vm484, %v2094, -inf
  %2099 = vmax.xlane.f32.xlu0 %v2098
  %v2100 = vpop.xlane.xlu0 %2099
  %v2101 = vsel %vm484, %v2095, -inf
  %2102 = vmax.xlane.f32.xlu0 %v2101
  %v2103 = vpop.xlane.xlu0 %2102
  %v2104 = vsel %vm484, %v2096, -inf
  %2105 = vmax.xlane.f32.xlu0 %v2104
  %v2106 = vpop.xlane.xlu0 %2105
  %v2107 = vsel %vm484, %v2097, -inf
  %2108 = vmax.xlane.f32.xlu0 %v2107
  %v2109 = vpop.xlane.xlu0 %2108
  %v2110 = vsub.f32 %v2094, %v2100
  %v2111 = vsub.f32 %v2095, %v2103
  %v2112 = vsub.f32 %v2096, %v2106
  %v2113 = vsub.f32 %v2097, %v2109
  %v2114 = vmul.f32 %v2110, 1.442695
  %v2115 = vpow.pop %v2114
  %v2116 = vmul.f32 %v2111, 1.442695
  %v2117 = vpow.pop %v2116
  %v2118 = vmul.f32 %v2112, 1.442695
  %v2119 = vpow.pop %v2118
  %v2120 = vmul.f32 %v2113, 1.442695
  %v2121 = vpow.pop %v2120
  %v2122 = vsel %vm484, %v2115, 0.0
  %2123 = vadd.xlane.f32.xlu0 %v2122
  %v2124 = vpop.xlane.xlu0 %2123
  %v2125 = vsel %vm484, %v2117, 0.0
  %2126 = vadd.xlane.f32.xlu0 %v2125
  %v2127 = vpop.xlane.xlu0 %2126
  %v2128 = vsel %vm484, %v2119, 0.0
  %2129 = vadd.xlane.f32.xlu0 %v2128
  %v2130 = vpop.xlane.xlu0 %2129
  %v2131 = vsel %vm484, %v2121, 0.0
  %2132 = vadd.xlane.f32.xlu0 %v2131
  %v2133 = vpop.xlane.xlu0 %2132
  %v2134 = vrcp.pop %v2124
  %v2135 = vrcp.pop %v2127
  %v2136 = vrcp.pop %v2130
  %v2137 = vrcp.pop %v2133
  %v2138 = vmul.f32 %v2115, %v2134
  %v2139 = vmul.f32 %v2117, %v2135
  %v2140 = vmul.f32 %v2119, %v2136
  %v2141 = vmul.f32 %v2121, %v2137
  %v2143 = vsel %vm484, %v2138, 0
  %2145 = vmatpush.msra.mxu0 0.0
  %2146 = vmatpush.msra.mxu0 0.0
  %2147 = vmatpush.msra.mxu0 0.0
  %2148 = vmatpush.msra.mxu0 0.0
  %2149 = vmatpush.msra.mxu0 0.0
  %2150 = vmatpush.msra.mxu0 0.0
  %2151 = vmatpush.msra.mxu0 0.0
  %2152 = vmatpush.msra.mxu0 0.0
  %2153 = vmatpush.msra.mxu0 0.0
  %2154 = vmatpush.msra.mxu0 0.0
  %2155 = vmatpush.msra.mxu0 0.0
  %2156 = vmatpush.msra.mxu0 0.0
  %2157 = vmatpush.msra.mxu0 0.0
  %2158 = vmatpush.msra.mxu0 0.0
  %2159 = vmatpush.msra.mxu0 0.0
  %2160 = vmatpush.msra.mxu0 %v1924
  %2161 = vmatmul.f32.gmra.mxu0 %v2143
  %v2162 = vpop.f32.mrf.mxu0
  %v2163 = vadd.f32 0.0, %v2162
  %2164 = vdwg.mxu0
  %v2166 = vsel %vm484, %v2139, 0
  %2168 = vmatpush.msra.mxu0 0.0
  %2169 = vmatpush.msra.mxu0 0.0
  %2170 = vmatpush.msra.mxu0 0.0
  %2171 = vmatpush.msra.mxu0 0.0
  %2172 = vmatpush.msra.mxu0 0.0
  %2173 = vmatpush.msra.mxu0 0.0
  %2174 = vmatpush.msra.mxu0 0.0
  %2175 = vmatpush.msra.mxu0 0.0
  %2176 = vmatpush.msra.mxu0 0.0
  %2177 = vmatpush.msra.mxu0 0.0
  %2178 = vmatpush.msra.mxu0 0.0
  %2179 = vmatpush.msra.mxu0 0.0
  %2180 = vmatpush.msra.mxu0 0.0
  %2181 = vmatpush.msra.mxu0 0.0
  %2182 = vmatpush.msra.mxu0 0.0
  %2183 = vmatpush.msra.mxu0 %v1944
  %2184 = vmatmul.f32.gmra.mxu0 %v2166
  %v2185 = vpop.f32.mrf.mxu0
  %v2186 = vadd.f32 0.0, %v2185
  %2187 = vdwg.mxu0
  %v2189 = vsel %vm484, %v2140, 0
  %2191 = vmatpush.msra.mxu0 0.0
  %2192 = vmatpush.msra.mxu0 0.0
  %2193 = vmatpush.msra.mxu0 0.0
  %2194 = vmatpush.msra.mxu0 0.0
  %2195 = vmatpush.msra.mxu0 0.0
  %2196 = vmatpush.msra.mxu0 0.0
  %2197 = vmatpush.msra.mxu0 0.0
  %2198 = vmatpush.msra.mxu0 0.0
  %2199 = vmatpush.msra.mxu0 0.0
  %2200 = vmatpush.msra.mxu0 0.0
  %2201 = vmatpush.msra.mxu0 0.0
  %2202 = vmatpush.msra.mxu0 0.0
  %2203 = vmatpush.msra.mxu0 0.0
  %2204 = vmatpush.msra.mxu0 0.0
  %2205 = vmatpush.msra.mxu0 0.0
  %2206 = vmatpush.msra.mxu0 %v1964
  %2207 = vmatmul.f32.gmra.mxu0 %v2189
  %v2208 = vpop.f32.mrf.mxu0
  %v2209 = vadd.f32 0.0, %v2208
  %2210 = vdwg.mxu0
  %v2212 = vsel %vm484, %v2141, 0
  %2214 = vmatpush.msra.mxu0 0.0
  %2215 = vmatpush.msra.mxu0 0.0
  %2216 = vmatpush.msra.mxu0 0.0
  %2217 = vmatpush.msra.mxu0 0.0
  %2218 = vmatpush.msra.mxu0 0.0
  %2219 = vmatpush.msra.mxu0 0.0
  %2220 = vmatpush.msra.mxu0 0.0
  %2221 = vmatpush.msra.mxu0 0.0
  %2222 = vmatpush.msra.mxu0 0.0
  %2223 = vmatpush.msra.mxu0 0.0
  %2224 = vmatpush.msra.mxu0 0.0
  %2225 = vmatpush.msra.mxu0 0.0
  %2226 = vmatpush.msra.mxu0 0.0
  %2227 = vmatpush.msra.mxu0 0.0
  %2228 = vmatpush.msra.mxu0 0.0
  %2229 = vmatpush.msra.mxu0 %v1984
  %2230 = vmatmul.f32.gmra.mxu0 %v2212
  %v2231 = vpop.f32.mrf.mxu0
  %v2232 = vadd.f32 0.0, %v2231
  %2233 = vdwg.mxu0
  %v2235 = vperm.slane %v1706, 0
  %v2238 = vsel %vm484, %v2163, 0
  %2240 = vmatpush.msra.mxu0 0.0
  %2241 = vmatpush.msra.mxu0 0.0
  %2242 = vmatpush.msra.mxu0 0.0
  %2243 = vmatpush.msra.mxu0 0.0
  %2244 = vmatpush.msra.mxu0 0.0
  %2245 = vmatpush.msra.mxu0 0.0
  %2246 = vmatpush.msra.mxu0 0.0
  %2247 = vmatpush.msra.mxu0 0.0
  %2248 = vmatpush.msra.mxu0 0.0
  %2249 = vmatpush.msra.mxu0 0.0
  %2250 = vmatpush.msra.mxu0 0.0
  %2251 = vmatpush.msra.mxu0 0.0
  %2252 = vmatpush.msra.mxu0 0.0
  %2253 = vmatpush.msra.mxu0 0.0
  %2254 = vmatpush.msra.mxu0 0.0
  %2255 = vmatpush.msra.mxu0 %v1701
  %2256 = vmatmul.f32.gmra.mxu0 %v2238
  %v2257 = vpop.f32.mrf.mxu0
  %v2258 = vadd.f32 0.0, %v2257
  %2259 = vdwg.mxu0
  %v2260 = vadd.f32 %v2235, %v2258
  %v2262 = vsel %vm484, %v2186, 0
  %2264 = vmatpush.msra.mxu0 0.0
  %2265 = vmatpush.msra.mxu0 0.0
  %2266 = vmatpush.msra.mxu0 0.0
  %2267 = vmatpush.msra.mxu0 0.0
  %2268 = vmatpush.msra.mxu0 0.0
  %2269 = vmatpush.msra.mxu0 0.0
  %2270 = vmatpush.msra.mxu0 0.0
  %2271 = vmatpush.msra.mxu0 0.0
  %2272 = vmatpush.msra.mxu0 0.0
  %2273 = vmatpush.msra.mxu0 0.0
  %2274 = vmatpush.msra.mxu0 0.0
  %2275 = vmatpush.msra.mxu0 0.0
  %2276 = vmatpush.msra.mxu0 0.0
  %2277 = vmatpush.msra.mxu0 0.0
  %2278 = vmatpush.msra.mxu0 0.0
  %2279 = vmatpush.msra.mxu0 %v1702
  %2280 = vmatmul.f32.gmra.mxu0 %v2262
  %v2281 = vpop.f32.mrf.mxu0
  %v2282 = vadd.f32 0.0, %v2281
  %2283 = vdwg.mxu0
  %v2284 = vadd.f32 %v2260, %v2282
  %v2286 = vsel %vm484, %v2209, 0
  %2288 = vmatpush.msra.mxu0 0.0
  %2289 = vmatpush.msra.mxu0 0.0
  %2290 = vmatpush.msra.mxu0 0.0
  %2291 = vmatpush.msra.mxu0 0.0
  %2292 = vmatpush.msra.mxu0 0.0
  %2293 = vmatpush.msra.mxu0 0.0
  %2294 = vmatpush.msra.mxu0 0.0
  %2295 = vmatpush.msra.mxu0 0.0
  %2296 = vmatpush.msra.mxu0 0.0
  %2297 = vmatpush.msra.mxu0 0.0
  %2298 = vmatpush.msra.mxu0 0.0
  %2299 = vmatpush.msra.mxu0 0.0
  %2300 = vmatpush.msra.mxu0 0.0
  %2301 = vmatpush.msra.mxu0 0.0
  %2302 = vmatpush.msra.mxu0 0.0
  %2303 = vmatpush.msra.mxu0 %v1703
  %2304 = vmatmul.f32.gmra.mxu0 %v2286
  %v2305 = vpop.f32.mrf.mxu0
  %v2306 = vadd.f32 0.0, %v2305
  %2307 = vdwg.mxu0
  %v2308 = vadd.f32 %v2284, %v2306
  %v2310 = vsel %vm484, %v2232, 0
  %2312 = vmatpush.msra.mxu0 0.0
  %2313 = vmatpush.msra.mxu0 0.0
  %2314 = vmatpush.msra.mxu0 0.0
  %2315 = vmatpush.msra.mxu0 0.0
  %2316 = vmatpush.msra.mxu0 0.0
  %2317 = vmatpush.msra.mxu0 0.0
  %2318 = vmatpush.msra.mxu0 0.0
  %2319 = vmatpush.msra.mxu0 0.0
  %2320 = vmatpush.msra.mxu0 0.0
  %2321 = vmatpush.msra.mxu0 0.0
  %2322 = vmatpush.msra.mxu0 0.0
  %2323 = vmatpush.msra.mxu0 0.0
  %2324 = vmatpush.msra.mxu0 0.0
  %2325 = vmatpush.msra.mxu0 0.0
  %2326 = vmatpush.msra.mxu0 0.0
  %2327 = vmatpush.msra.mxu0 %v1704
  %2328 = vmatmul.f32.gmra.mxu0 %v2310
  %v2329 = vpop.f32.mrf.mxu0
  %v2330 = vadd.f32 0.0, %v2329
  %2331 = vdwg.mxu0
  %v2332 = vadd.f32 %v2308, %v2330
  %v2334 = vsel %vm78, %v1633, 0
  %2336 = vmatpush.msra.mxu0 0.0
  %2337 = vmatpush.msra.mxu0 0.0
  %2338 = vmatpush.msra.mxu0 0.0
  %2339 = vmatpush.msra.mxu0 0.0
  %2340 = vmatpush.msra.mxu0 0.0
  %2341 = vmatpush.msra.mxu0 0.0
  %2342 = vmatpush.msra.mxu0 0.0
  %2343 = vmatpush.msra.mxu0 0.0
  %2344 = vmatpush.msra.mxu0 0.0
  %2345 = vmatpush.msra.mxu0 0.0
  %2346 = vmatpush.msra.mxu0 0.0
  %2347 = vmatpush.msra.mxu0 0.0
  %2348 = vmatpush.msra.mxu0 %v1638
  %2349 = vmatpush.msra.mxu0 %v1637
  %2350 = vmatpush.msra.mxu0 %v1636
  %2351 = vmatpush.msra.mxu0 %v1635
  %2352 = vmatmul.f32.gmra.mxu0 %v2334
  %v2353 = vpop.f32.mrf.mxu0
  %v2354 = vadd.f32 %v1711, %v2353
  %2355 = vdwg.mxu0
  %2356 = vmatpush.msra.mxu0 0.0
  %2357 = vmatpush.msra.mxu0 0.0
  %2358 = vmatpush.msra.mxu0 0.0
  %2359 = vmatpush.msra.mxu0 0.0
  %2360 = vmatpush.msra.mxu0 0.0
  %2361 = vmatpush.msra.mxu0 0.0
  %2362 = vmatpush.msra.mxu0 0.0
  %2363 = vmatpush.msra.mxu0 0.0
  %2364 = vmatpush.msra.mxu0 0.0
  %2365 = vmatpush.msra.mxu0 0.0
  %2366 = vmatpush.msra.mxu0 0.0
  %2367 = vmatpush.msra.mxu0 0.0
  %2368 = vmatpush.msra.mxu0 %v1642
  %2369 = vmatpush.msra.mxu0 %v1641
  %2370 = vmatpush.msra.mxu0 %v1640
  %2371 = vmatpush.msra.mxu0 %v1639
  %2372 = vmatmul.f32.gmra.mxu0 %v2334
  %v2373 = vpop.f32.mrf.mxu0
  %v2374 = vadd.f32 %v1712, %v2373
  %2375 = vdwg.mxu0
  %2376 = vmatpush.msra.mxu0 0.0
  %2377 = vmatpush.msra.mxu0 0.0
  %2378 = vmatpush.msra.mxu0 0.0
  %2379 = vmatpush.msra.mxu0 0.0
  %2380 = vmatpush.msra.mxu0 0.0
  %2381 = vmatpush.msra.mxu0 0.0
  %2382 = vmatpush.msra.mxu0 0.0
  %2383 = vmatpush.msra.mxu0 0.0
  %2384 = vmatpush.msra.mxu0 0.0
  %2385 = vmatpush.msra.mxu0 0.0
  %2386 = vmatpush.msra.mxu0 0.0
  %2387 = vmatpush.msra.mxu0 0.0
  %2388 = vmatpush.msra.mxu0 %v1646
  %2389 = vmatpush.msra.mxu0 %v1645
  %2390 = vmatpush.msra.mxu0 %v1644
  %2391 = vmatpush.msra.mxu0 %v1643
  %2392 = vmatmul.f32.gmra.mxu0 %v2334
  %v2393 = vpop.f32.mrf.mxu0
  %v2394 = vadd.f32 %v1713, %v2393
  %2395 = vdwg.mxu0
  %2396 = vmatpush.msra.mxu0 0.0
  %2397 = vmatpush.msra.mxu0 0.0
  %2398 = vmatpush.msra.mxu0 0.0
  %2399 = vmatpush.msra.mxu0 0.0
  %2400 = vmatpush.msra.mxu0 0.0
  %2401 = vmatpush.msra.mxu0 0.0
  %2402 = vmatpush.msra.mxu0 0.0
  %2403 = vmatpush.msra.mxu0 0.0
  %2404 = vmatpush.msra.mxu0 0.0
  %2405 = vmatpush.msra.mxu0 0.0
  %2406 = vmatpush.msra.mxu0 0.0
  %2407 = vmatpush.msra.mxu0 0.0
  %2408 = vmatpush.msra.mxu0 %v1650
  %2409 = vmatpush.msra.mxu0 %v1649
  %2410 = vmatpush.msra.mxu0 %v1648
  %2411 = vmatpush.msra.mxu0 %v1647
  %2412 = vmatmul.f32.gmra.mxu0 %v2334
  %v2413 = vpop.f32.mrf.mxu0
  %v2414 = vadd.f32 %v1714, %v2413
  %2415 = vdwg.mxu0
  %2416 = vmatpush.msra.mxu0 0.0
  %2417 = vmatpush.msra.mxu0 0.0
  %2418 = vmatpush.msra.mxu0 0.0
  %2419 = vmatpush.msra.mxu0 0.0
  %2420 = vmatpush.msra.mxu0 0.0
  %2421 = vmatpush.msra.mxu0 0.0
  %2422 = vmatpush.msra.mxu0 0.0
  %2423 = vmatpush.msra.mxu0 0.0
  %2424 = vmatpush.msra.mxu0 0.0
  %2425 = vmatpush.msra.mxu0 0.0
  %2426 = vmatpush.msra.mxu0 0.0
  %2427 = vmatpush.msra.mxu0 0.0
  %2428 = vmatpush.msra.mxu0 %v1660
  %2429 = vmatpush.msra.mxu0 %v1659
  %2430 = vmatpush.msra.mxu0 %v1658
  %2431 = vmatpush.msra.mxu0 %v1657
  %2432 = vmatmul.f32.gmra.mxu0 %v2334
  %v2433 = vpop.f32.mrf.mxu0
  %v2434 = vadd.f32 %v1806, %v2433
  %2435 = vdwg.mxu0
  %2436 = vmatpush.msra.mxu0 0.0
  %2437 = vmatpush.msra.mxu0 0.0
  %2438 = vmatpush.msra.mxu0 0.0
  %2439 = vmatpush.msra.mxu0 0.0
  %2440 = vmatpush.msra.mxu0 0.0
  %2441 = vmatpush.msra.mxu0 0.0
  %2442 = vmatpush.msra.mxu0 0.0
  %2443 = vmatpush.msra.mxu0 0.0
  %2444 = vmatpush.msra.mxu0 0.0
  %2445 = vmatpush.msra.mxu0 0.0
  %2446 = vmatpush.msra.mxu0 0.0
  %2447 = vmatpush.msra.mxu0 0.0
  %2448 = vmatpush.msra.mxu0 %v1664
  %2449 = vmatpush.msra.mxu0 %v1663
  %2450 = vmatpush.msra.mxu0 %v1662
  %2451 = vmatpush.msra.mxu0 %v1661
  %2452 = vmatmul.f32.gmra.mxu0 %v2334
  %v2453 = vpop.f32.mrf.mxu0
  %v2454 = vadd.f32 %v1807, %v2453
  %2455 = vdwg.mxu0
  %2456 = vmatpush.msra.mxu0 0.0
  %2457 = vmatpush.msra.mxu0 0.0
  %2458 = vmatpush.msra.mxu0 0.0
  %2459 = vmatpush.msra.mxu0 0.0
  %2460 = vmatpush.msra.mxu0 0.0
  %2461 = vmatpush.msra.mxu0 0.0
  %2462 = vmatpush.msra.mxu0 0.0
  %2463 = vmatpush.msra.mxu0 0.0
  %2464 = vmatpush.msra.mxu0 0.0
  %2465 = vmatpush.msra.mxu0 0.0
  %2466 = vmatpush.msra.mxu0 0.0
  %2467 = vmatpush.msra.mxu0 0.0
  %2468 = vmatpush.msra.mxu0 %v1668
  %2469 = vmatpush.msra.mxu0 %v1667
  %2470 = vmatpush.msra.mxu0 %v1666
  %2471 = vmatpush.msra.mxu0 %v1665
  %2472 = vmatmul.f32.gmra.mxu0 %v2334
  %v2473 = vpop.f32.mrf.mxu0
  %v2474 = vadd.f32 %v1808, %v2473
  %2475 = vdwg.mxu0
  %2476 = vmatpush.msra.mxu0 0.0
  %2477 = vmatpush.msra.mxu0 0.0
  %2478 = vmatpush.msra.mxu0 0.0
  %2479 = vmatpush.msra.mxu0 0.0
  %2480 = vmatpush.msra.mxu0 0.0
  %2481 = vmatpush.msra.mxu0 0.0
  %2482 = vmatpush.msra.mxu0 0.0
  %2483 = vmatpush.msra.mxu0 0.0
  %2484 = vmatpush.msra.mxu0 0.0
  %2485 = vmatpush.msra.mxu0 0.0
  %2486 = vmatpush.msra.mxu0 0.0
  %2487 = vmatpush.msra.mxu0 0.0
  %2488 = vmatpush.msra.mxu0 %v1672
  %2489 = vmatpush.msra.mxu0 %v1671
  %2490 = vmatpush.msra.mxu0 %v1670
  %2491 = vmatpush.msra.mxu0 %v1669
  %2492 = vmatmul.f32.gmra.mxu0 %v2334
  %v2493 = vpop.f32.mrf.mxu0
  %v2494 = vadd.f32 %v1809, %v2493
  %2495 = vdwg.mxu0
  %2496 = vmatpush.msra.mxu0 0.0
  %2497 = vmatpush.msra.mxu0 0.0
  %2498 = vmatpush.msra.mxu0 0.0
  %2499 = vmatpush.msra.mxu0 0.0
  %2500 = vmatpush.msra.mxu0 0.0
  %2501 = vmatpush.msra.mxu0 0.0
  %2502 = vmatpush.msra.mxu0 0.0
  %2503 = vmatpush.msra.mxu0 0.0
  %2504 = vmatpush.msra.mxu0 0.0
  %2505 = vmatpush.msra.mxu0 0.0
  %2506 = vmatpush.msra.mxu0 0.0
  %2507 = vmatpush.msra.mxu0 0.0
  %2508 = vmatpush.msra.mxu0 %v1682
  %2509 = vmatpush.msra.mxu0 %v1681
  %2510 = vmatpush.msra.mxu0 %v1680
  %2511 = vmatpush.msra.mxu0 %v1679
  %2512 = vmatmul.f32.gmra.mxu0 %v2334
  %v2513 = vpop.f32.mrf.mxu0
  %v2514 = vadd.f32 %v1898, %v2513
  %2515 = vdwg.mxu0
  %2516 = vmatpush.msra.mxu0 0.0
  %2517 = vmatpush.msra.mxu0 0.0
  %2518 = vmatpush.msra.mxu0 0.0
  %2519 = vmatpush.msra.mxu0 0.0
  %2520 = vmatpush.msra.mxu0 0.0
  %2521 = vmatpush.msra.mxu0 0.0
  %2522 = vmatpush.msra.mxu0 0.0
  %2523 = vmatpush.msra.mxu0 0.0
  %2524 = vmatpush.msra.mxu0 0.0
  %2525 = vmatpush.msra.mxu0 0.0
  %2526 = vmatpush.msra.mxu0 0.0
  %2527 = vmatpush.msra.mxu0 0.0
  %2528 = vmatpush.msra.mxu0 %v1686
  %2529 = vmatpush.msra.mxu0 %v1685
  %2530 = vmatpush.msra.mxu0 %v1684
  %2531 = vmatpush.msra.mxu0 %v1683
  %2532 = vmatmul.f32.gmra.mxu0 %v2334
  %v2533 = vpop.f32.mrf.mxu0
  %v2534 = vadd.f32 %v1899, %v2533
  %2535 = vdwg.mxu0
  %2536 = vmatpush.msra.mxu0 0.0
  %2537 = vmatpush.msra.mxu0 0.0
  %2538 = vmatpush.msra.mxu0 0.0
  %2539 = vmatpush.msra.mxu0 0.0
  %2540 = vmatpush.msra.mxu0 0.0
  %2541 = vmatpush.msra.mxu0 0.0
  %2542 = vmatpush.msra.mxu0 0.0
  %2543 = vmatpush.msra.mxu0 0.0
  %2544 = vmatpush.msra.mxu0 0.0
  %2545 = vmatpush.msra.mxu0 0.0
  %2546 = vmatpush.msra.mxu0 0.0
  %2547 = vmatpush.msra.mxu0 0.0
  %2548 = vmatpush.msra.mxu0 %v1690
  %2549 = vmatpush.msra.mxu0 %v1689
  %2550 = vmatpush.msra.mxu0 %v1688
  %2551 = vmatpush.msra.mxu0 %v1687
  %2552 = vmatmul.f32.gmra.mxu0 %v2334
  %v2553 = vpop.f32.mrf.mxu0
  %v2554 = vadd.f32 %v1900, %v2553
  %2555 = vdwg.mxu0
  %2556 = vmatpush.msra.mxu0 0.0
  %2557 = vmatpush.msra.mxu0 0.0
  %2558 = vmatpush.msra.mxu0 0.0
  %2559 = vmatpush.msra.mxu0 0.0
  %2560 = vmatpush.msra.mxu0 0.0
  %2561 = vmatpush.msra.mxu0 0.0
  %2562 = vmatpush.msra.mxu0 0.0
  %2563 = vmatpush.msra.mxu0 0.0
  %2564 = vmatpush.msra.mxu0 0.0
  %2565 = vmatpush.msra.mxu0 0.0
  %2566 = vmatpush.msra.mxu0 0.0
  %2567 = vmatpush.msra.mxu0 0.0
  %2568 = vmatpush.msra.mxu0 %v1694
  %2569 = vmatpush.msra.mxu0 %v1693
  %2570 = vmatpush.msra.mxu0 %v1692
  %2571 = vmatpush.msra.mxu0 %v1691
  %2572 = vmatmul.f32.gmra.mxu0 %v2334
  %v2573 = vpop.f32.mrf.mxu0
  %v2574 = vadd.f32 %v1901, %v2573
  %2575 = vdwg.mxu0
  %v2577 = vsel %vm484, %v2354, 0
  %v2580 = vsel %vm484, %v2434, 0
  %2582 = vmatpush.xpose.msra.mxu0 0.0
  %2583 = vmatpush.xpose.msra.mxu0 0.0
  %2584 = vmatpush.xpose.msra.mxu0 0.0
  %2585 = vmatpush.xpose.msra.mxu0 0.0
  %2586 = vmatpush.xpose.msra.mxu0 0.0
  %2587 = vmatpush.xpose.msra.mxu0 0.0
  %2588 = vmatpush.xpose.msra.mxu0 0.0
  %2589 = vmatpush.xpose.msra.mxu0 0.0
  %2590 = vmatpush.xpose.msra.mxu0 0.0
  %2591 = vmatpush.xpose.msra.mxu0 0.0
  %2592 = vmatpush.xpose.msra.mxu0 0.0
  %2593 = vmatpush.xpose.msra.mxu0 0.0
  %2594 = vmatpush.xpose.msra.mxu0 0.0
  %2595 = vmatpush.xpose.msra.mxu0 0.0
  %2596 = vmatpush.xpose.msra.mxu0 0.0
  %2597 = vmatpush.xpose.msra.mxu0 %v2580
  %2598 = vmatmul.f32.gmra.mxu0 %v2577
  %v2599 = vpop.f32.mrf.mxu0
  %v2600 = vadd.f32 0.0, %v2599
  %2601 = vdwg.mxu0
  %v2603 = vsel %vm484, %v2374, 0
  %v2606 = vsel %vm484, %v2454, 0
  %2608 = vmatpush.xpose.msra.mxu0 0.0
  %2609 = vmatpush.xpose.msra.mxu0 0.0
  %2610 = vmatpush.xpose.msra.mxu0 0.0
  %2611 = vmatpush.xpose.msra.mxu0 0.0
  %2612 = vmatpush.xpose.msra.mxu0 0.0
  %2613 = vmatpush.xpose.msra.mxu0 0.0
  %2614 = vmatpush.xpose.msra.mxu0 0.0
  %2615 = vmatpush.xpose.msra.mxu0 0.0
  %2616 = vmatpush.xpose.msra.mxu0 0.0
  %2617 = vmatpush.xpose.msra.mxu0 0.0
  %2618 = vmatpush.xpose.msra.mxu0 0.0
  %2619 = vmatpush.xpose.msra.mxu0 0.0
  %2620 = vmatpush.xpose.msra.mxu0 0.0
  %2621 = vmatpush.xpose.msra.mxu0 0.0
  %2622 = vmatpush.xpose.msra.mxu0 0.0
  %2623 = vmatpush.xpose.msra.mxu0 %v2606
  %2624 = vmatmul.f32.gmra.mxu0 %v2603
  %v2625 = vpop.f32.mrf.mxu0
  %v2626 = vadd.f32 0.0, %v2625
  %2627 = vdwg.mxu0
  %v2629 = vsel %vm484, %v2394, 0
  %v2632 = vsel %vm484, %v2474, 0
  %2634 = vmatpush.xpose.msra.mxu0 0.0
  %2635 = vmatpush.xpose.msra.mxu0 0.0
  %2636 = vmatpush.xpose.msra.mxu0 0.0
  %2637 = vmatpush.xpose.msra.mxu0 0.0
  %2638 = vmatpush.xpose.msra.mxu0 0.0
  %2639 = vmatpush.xpose.msra.mxu0 0.0
  %2640 = vmatpush.xpose.msra.mxu0 0.0
  %2641 = vmatpush.xpose.msra.mxu0 0.0
  %2642 = vmatpush.xpose.msra.mxu0 0.0
  %2643 = vmatpush.xpose.msra.mxu0 0.0
  %2644 = vmatpush.xpose.msra.mxu0 0.0
  %2645 = vmatpush.xpose.msra.mxu0 0.0
  %2646 = vmatpush.xpose.msra.mxu0 0.0
  %2647 = vmatpush.xpose.msra.mxu0 0.0
  %2648 = vmatpush.xpose.msra.mxu0 0.0
  %2649 = vmatpush.xpose.msra.mxu0 %v2632
  %2650 = vmatmul.f32.gmra.mxu0 %v2629
  %v2651 = vpop.f32.mrf.mxu0
  %v2652 = vadd.f32 0.0, %v2651
  %2653 = vdwg.mxu0
  %v2655 = vsel %vm484, %v2414, 0
  %v2658 = vsel %vm484, %v2494, 0
  %2660 = vmatpush.xpose.msra.mxu0 0.0
  %2661 = vmatpush.xpose.msra.mxu0 0.0
  %2662 = vmatpush.xpose.msra.mxu0 0.0
  %2663 = vmatpush.xpose.msra.mxu0 0.0
  %2664 = vmatpush.xpose.msra.mxu0 0.0
  %2665 = vmatpush.xpose.msra.mxu0 0.0
  %2666 = vmatpush.xpose.msra.mxu0 0.0
  %2667 = vmatpush.xpose.msra.mxu0 0.0
  %2668 = vmatpush.xpose.msra.mxu0 0.0
  %2669 = vmatpush.xpose.msra.mxu0 0.0
  %2670 = vmatpush.xpose.msra.mxu0 0.0
  %2671 = vmatpush.xpose.msra.mxu0 0.0
  %2672 = vmatpush.xpose.msra.mxu0 0.0
  %2673 = vmatpush.xpose.msra.mxu0 0.0
  %2674 = vmatpush.xpose.msra.mxu0 0.0
  %2675 = vmatpush.xpose.msra.mxu0 %v2658
  %2676 = vmatmul.f32.gmra.mxu0 %v2655
  %v2677 = vpop.f32.mrf.mxu0
  %v2678 = vadd.f32 0.0, %v2677
  %2679 = vdwg.mxu0
  %v2680 = vmul.f32 %v2600, 0.35355338
  %v2681 = vmul.f32 %v2626, 0.35355338
  %v2682 = vmul.f32 %v2652, 0.35355338
  %v2683 = vmul.f32 %v2678, 0.35355338
  %v2684 = vadd.f32 %v2680, %v1184
  %v2685 = vadd.f32 %v2681, %v1184
  %v2686 = vadd.f32 %v2682, %v1184
  %v2687 = vadd.f32 %v2683, %v1184
  %v2688 = vsel %vm484, %v2684, -inf
  %2689 = vmax.xlane.f32.xlu0 %v2688
  %v2690 = vpop.xlane.xlu0 %2689
  %v2691 = vsel %vm484, %v2685, -inf
  %2692 = vmax.xlane.f32.xlu0 %v2691
  %v2693 = vpop.xlane.xlu0 %2692
  %v2694 = vsel %vm484, %v2686, -inf
  %2695 = vmax.xlane.f32.xlu0 %v2694
  %v2696 = vpop.xlane.xlu0 %2695
  %v2697 = vsel %vm484, %v2687, -inf
  %2698 = vmax.xlane.f32.xlu0 %v2697
  %v2699 = vpop.xlane.xlu0 %2698
  %v2700 = vsub.f32 %v2684, %v2690
  %v2701 = vsub.f32 %v2685, %v2693
  %v2702 = vsub.f32 %v2686, %v2696
  %v2703 = vsub.f32 %v2687, %v2699
  %v2704 = vmul.f32 %v2700, 1.442695
  %v2705 = vpow.pop %v2704
  %v2706 = vmul.f32 %v2701, 1.442695
  %v2707 = vpow.pop %v2706
  %v2708 = vmul.f32 %v2702, 1.442695
  %v2709 = vpow.pop %v2708
  %v2710 = vmul.f32 %v2703, 1.442695
  %v2711 = vpow.pop %v2710
  %v2712 = vsel %vm484, %v2705, 0.0
  %2713 = vadd.xlane.f32.xlu0 %v2712
  %v2714 = vpop.xlane.xlu0 %2713
  %v2715 = vsel %vm484, %v2707, 0.0
  %2716 = vadd.xlane.f32.xlu0 %v2715
  %v2717 = vpop.xlane.xlu0 %2716
  %v2718 = vsel %vm484, %v2709, 0.0
  %2719 = vadd.xlane.f32.xlu0 %v2718
  %v2720 = vpop.xlane.xlu0 %2719
  %v2721 = vsel %vm484, %v2711, 0.0
  %2722 = vadd.xlane.f32.xlu0 %v2721
  %v2723 = vpop.xlane.xlu0 %2722
  %v2724 = vrcp.pop %v2714
  %v2725 = vrcp.pop %v2717
  %v2726 = vrcp.pop %v2720
  %v2727 = vrcp.pop %v2723
  %v2728 = vmul.f32 %v2705, %v2724
  %v2729 = vmul.f32 %v2707, %v2725
  %v2730 = vmul.f32 %v2709, %v2726
  %v2731 = vmul.f32 %v2711, %v2727
  %v2733 = vsel %vm484, %v2728, 0
  %2735 = vmatpush.msra.mxu0 0.0
  %2736 = vmatpush.msra.mxu0 0.0
  %2737 = vmatpush.msra.mxu0 0.0
  %2738 = vmatpush.msra.mxu0 0.0
  %2739 = vmatpush.msra.mxu0 0.0
  %2740 = vmatpush.msra.mxu0 0.0
  %2741 = vmatpush.msra.mxu0 0.0
  %2742 = vmatpush.msra.mxu0 0.0
  %2743 = vmatpush.msra.mxu0 0.0
  %2744 = vmatpush.msra.mxu0 0.0
  %2745 = vmatpush.msra.mxu0 0.0
  %2746 = vmatpush.msra.mxu0 0.0
  %2747 = vmatpush.msra.mxu0 0.0
  %2748 = vmatpush.msra.mxu0 0.0
  %2749 = vmatpush.msra.mxu0 0.0
  %2750 = vmatpush.msra.mxu0 %v2514
  %2751 = vmatmul.f32.gmra.mxu0 %v2733
  %v2752 = vpop.f32.mrf.mxu0
  %v2753 = vadd.f32 0.0, %v2752
  %2754 = vdwg.mxu0
  %v2756 = vsel %vm484, %v2729, 0
  %2758 = vmatpush.msra.mxu0 0.0
  %2759 = vmatpush.msra.mxu0 0.0
  %2760 = vmatpush.msra.mxu0 0.0
  %2761 = vmatpush.msra.mxu0 0.0
  %2762 = vmatpush.msra.mxu0 0.0
  %2763 = vmatpush.msra.mxu0 0.0
  %2764 = vmatpush.msra.mxu0 0.0
  %2765 = vmatpush.msra.mxu0 0.0
  %2766 = vmatpush.msra.mxu0 0.0
  %2767 = vmatpush.msra.mxu0 0.0
  %2768 = vmatpush.msra.mxu0 0.0
  %2769 = vmatpush.msra.mxu0 0.0
  %2770 = vmatpush.msra.mxu0 0.0
  %2771 = vmatpush.msra.mxu0 0.0
  %2772 = vmatpush.msra.mxu0 0.0
  %2773 = vmatpush.msra.mxu0 %v2534
  %2774 = vmatmul.f32.gmra.mxu0 %v2756
  %v2775 = vpop.f32.mrf.mxu0
  %v2776 = vadd.f32 0.0, %v2775
  %2777 = vdwg.mxu0
  %v2779 = vsel %vm484, %v2730, 0
  %2781 = vmatpush.msra.mxu0 0.0
  %2782 = vmatpush.msra.mxu0 0.0
  %2783 = vmatpush.msra.mxu0 0.0
  %2784 = vmatpush.msra.mxu0 0.0
  %2785 = vmatpush.msra.mxu0 0.0
  %2786 = vmatpush.msra.mxu0 0.0
  %2787 = vmatpush.msra.mxu0 0.0
  %2788 = vmatpush.msra.mxu0 0.0
  %2789 = vmatpush.msra.mxu0 0.0
  %2790 = vmatpush.msra.mxu0 0.0
  %2791 = vmatpush.msra.mxu0 0.0
  %2792 = vmatpush.msra.mxu0 0.0
  %2793 = vmatpush.msra.mxu0 0.0
  %2794 = vmatpush.msra.mxu0 0.0
  %2795 = vmatpush.msra.mxu0 0.0
  %2796 = vmatpush.msra.mxu0 %v2554
  %2797 = vmatmul.f32.gmra.mxu0 %v2779
  %v2798 = vpop.f32.mrf.mxu0
  %v2799 = vadd.f32 0.0, %v2798
  %2800 = vdwg.mxu0
  %v2802 = vsel %vm484, %v2731, 0
  %2804 = vmatpush.msra.mxu0 0.0
  %2805 = vmatpush.msra.mxu0 0.0
  %2806 = vmatpush.msra.mxu0 0.0
  %2807 = vmatpush.msra.mxu0 0.0
  %2808 = vmatpush.msra.mxu0 0.0
  %2809 = vmatpush.msra.mxu0 0.0
  %2810 = vmatpush.msra.mxu0 0.0
  %2811 = vmatpush.msra.mxu0 0.0
  %2812 = vmatpush.msra.mxu0 0.0
  %2813 = vmatpush.msra.mxu0 0.0
  %2814 = vmatpush.msra.mxu0 0.0
  %2815 = vmatpush.msra.mxu0 0.0
  %2816 = vmatpush.msra.mxu0 0.0
  %2817 = vmatpush.msra.mxu0 0.0
  %2818 = vmatpush.msra.mxu0 0.0
  %2819 = vmatpush.msra.mxu0 %v2574
  %2820 = vmatmul.f32.gmra.mxu0 %v2802
  %v2821 = vpop.f32.mrf.mxu0
  %v2822 = vadd.f32 0.0, %v2821
  %2823 = vdwg.mxu0
  %v2825 = vsel %vm484, %v2753, 0
  %2827 = vmatpush.msra.mxu0 0.0
  %2828 = vmatpush.msra.mxu0 0.0
  %2829 = vmatpush.msra.mxu0 0.0
  %2830 = vmatpush.msra.mxu0 0.0
  %2831 = vmatpush.msra.mxu0 0.0
  %2832 = vmatpush.msra.mxu0 0.0
  %2833 = vmatpush.msra.mxu0 0.0
  %2834 = vmatpush.msra.mxu0 0.0
  %2835 = vmatpush.msra.mxu0 0.0
  %2836 = vmatpush.msra.mxu0 0.0
  %2837 = vmatpush.msra.mxu0 0.0
  %2838 = vmatpush.msra.mxu0 0.0
  %2839 = vmatpush.msra.mxu0 0.0
  %2840 = vmatpush.msra.mxu0 0.0
  %2841 = vmatpush.msra.mxu0 0.0
  %2842 = vmatpush.msra.mxu0 %v1701
  %2843 = vmatmul.f32.gmra.mxu0 %v2825
  %v2844 = vpop.f32.mrf.mxu0
  %v2845 = vadd.f32 0.0, %v2844
  %2846 = vdwg.mxu0
  %v2847 = vadd.f32 %v2235, %v2845
  %v2849 = vsel %vm484, %v2776, 0
  %2851 = vmatpush.msra.mxu0 0.0
  %2852 = vmatpush.msra.mxu0 0.0
  %2853 = vmatpush.msra.mxu0 0.0
  %2854 = vmatpush.msra.mxu0 0.0
  %2855 = vmatpush.msra.mxu0 0.0
  %2856 = vmatpush.msra.mxu0 0.0
  %2857 = vmatpush.msra.mxu0 0.0
  %2858 = vmatpush.msra.mxu0 0.0
  %2859 = vmatpush.msra.mxu0 0.0
  %2860 = vmatpush.msra.mxu0 0.0
  %2861 = vmatpush.msra.mxu0 0.0
  %2862 = vmatpush.msra.mxu0 0.0
  %2863 = vmatpush.msra.mxu0 0.0
  %2864 = vmatpush.msra.mxu0 0.0
  %2865 = vmatpush.msra.mxu0 0.0
  %2866 = vmatpush.msra.mxu0 %v1702
  %2867 = vmatmul.f32.gmra.mxu0 %v2849
  %v2868 = vpop.f32.mrf.mxu0
  %v2869 = vadd.f32 0.0, %v2868
  %2870 = vdwg.mxu0
  %v2871 = vadd.f32 %v2847, %v2869
  %v2873 = vsel %vm484, %v2799, 0
  %2875 = vmatpush.msra.mxu0 0.0
  %2876 = vmatpush.msra.mxu0 0.0
  %2877 = vmatpush.msra.mxu0 0.0
  %2878 = vmatpush.msra.mxu0 0.0
  %2879 = vmatpush.msra.mxu0 0.0
  %2880 = vmatpush.msra.mxu0 0.0
  %2881 = vmatpush.msra.mxu0 0.0
  %2882 = vmatpush.msra.mxu0 0.0
  %2883 = vmatpush.msra.mxu0 0.0
  %2884 = vmatpush.msra.mxu0 0.0
  %2885 = vmatpush.msra.mxu0 0.0
  %2886 = vmatpush.msra.mxu0 0.0
  %2887 = vmatpush.msra.mxu0 0.0
  %2888 = vmatpush.msra.mxu0 0.0
  %2889 = vmatpush.msra.mxu0 0.0
  %2890 = vmatpush.msra.mxu0 %v1703
  %2891 = vmatmul.f32.gmra.mxu0 %v2873
  %v2892 = vpop.f32.mrf.mxu0
  %v2893 = vadd.f32 0.0, %v2892
  %2894 = vdwg.mxu0
  %v2895 = vadd.f32 %v2871, %v2893
  %v2897 = vsel %vm484, %v2822, 0
  %2899 = vmatpush.msra.mxu0 0.0
  %2900 = vmatpush.msra.mxu0 0.0
  %2901 = vmatpush.msra.mxu0 0.0
  %2902 = vmatpush.msra.mxu0 0.0
  %2903 = vmatpush.msra.mxu0 0.0
  %2904 = vmatpush.msra.mxu0 0.0
  %2905 = vmatpush.msra.mxu0 0.0
  %2906 = vmatpush.msra.mxu0 0.0
  %2907 = vmatpush.msra.mxu0 0.0
  %2908 = vmatpush.msra.mxu0 0.0
  %2909 = vmatpush.msra.mxu0 0.0
  %2910 = vmatpush.msra.mxu0 0.0
  %2911 = vmatpush.msra.mxu0 0.0
  %2912 = vmatpush.msra.mxu0 0.0
  %2913 = vmatpush.msra.mxu0 0.0
  %2914 = vmatpush.msra.mxu0 %v1704
  %2915 = vmatmul.f32.gmra.mxu0 %v2897
  %v2916 = vpop.f32.mrf.mxu0
  %v2917 = vadd.f32 0.0, %v2916
  %2918 = vdwg.mxu0
  %v2919 = vadd.f32 %v2895, %v2917
  %v2920 = vadd.f32 %v1632, %v2332
  %v2921 = vadd.f32 %v1633, %v2919
  %s2922 = scalar_lea.vmem %s12, 1
  %v2923 = vld [vmem:[%s2922] sm:$0x1]
  %s2924 = scalar_lea.vmem %s13, 1
  %v2925 = vld [vmem:[%s2924] sm:$0x1]
  %v2926 = vsel %vm78, %v2920, 0.0
  %2927 = vadd.xlane.f32.xlu0 %v2926
  %v2928 = vpop.xlane.xlu0 %2927
  %v2929 = vsel %vm78, %v2921, 0.0
  %2930 = vadd.xlane.f32.xlu0 %v2929
  %v2931 = vpop.xlane.xlu0 %2930
  %v2932 = vmul.f32 %v2928, %v91
  %v2933 = vmul.f32 %v2931, %v91
  %v2934 = vsub.f32 %v2920, %v2932
  %v2935 = vsub.f32 %v2921, %v2933
  %v2936 = vmul.f32 %v2934, %v2934
  %v2937 = vmul.f32 %v2935, %v2935
  %v2938 = vsel %vm78, %v2936, 0.0
  %2939 = vadd.xlane.f32.xlu0 %v2938
  %v2940 = vpop.xlane.xlu0 %2939
  %v2941 = vsel %vm78, %v2937, 0.0
  %2942 = vadd.xlane.f32.xlu0 %v2941
  %v2943 = vpop.xlane.xlu0 %2942
  %v2944 = vmul.f32 %v2940, %v91
  %v2945 = vmul.f32 %v2943, %v91
  %v2946 = vadd.f32 %v2944, 1e-12
  %v2947 = vadd.f32 %v2945, 1e-12
  %v2948 = vrsqrt.pop %v2946
  %v2949 = vmul.f32 %v2948, %v2946
  %v2950 = vmul.f32 %v2949, %v2948
  %v2951 = vmul.f32 0.5, %v2950
  %v2952 = vsub.f32 1.5, %v2951
  %v2953 = vmul.f32 %v2948, %v2952
  %vm2954 = vweird.f32 %v2946
  %vm2955 = vweird.f32 %v2948
  %vm2956 = vmor %vm2954, %vm2955
  %v2957 = vsel %vm2956, %v2948, %v2953
  %v2958 = vrsqrt.pop %v2947
  %v2959 = vmul.f32 %v2958, %v2947
  %v2960 = vmul.f32 %v2959, %v2958
  %v2961 = vmul.f32 0.5, %v2960
  %v2962 = vsub.f32 1.5, %v2961
  %v2963 = vmul.f32 %v2958, %v2962
  %vm2964 = vweird.f32 %v2947
  %vm2965 = vweird.f32 %v2958
  %vm2966 = vmor %vm2964, %vm2965
  %v2967 = vsel %vm2966, %v2958, %v2963
  %v2968 = vmul.f32 %v2934, %v2957
  %v2969 = vmul.f32 %v2935, %v2967
  %v2971 = vperm.slane %v2923, 0
  %v2973 = vmul.f32 %v2968, %v2971
  %v2974 = vmul.f32 %v2969, %v2971
  %v2976 = vperm.slane %v2925, 0
  %v2978 = vadd.f32 %v2973, %v2976
  %v2979 = vadd.f32 %v2974, %v2976
  %s2980 = scalar_lea.vmem %s14, 32
  %v2981 = vld [vmem:[%s2980] sm:$0xff]
  %v2982 = vld [vmem:[%s2980 + $0x8] sm:$0xff]
  %v2983 = vld [vmem:[%s2980 + $0x10] sm:$0xff]
  %v2984 = vld [vmem:[%s2980 + $0x18] sm:$0xff]
  %s2985 = scalar_lea.vmem %s15, 1
  %v2986 = vld [vmem:[%s2985] sm:$0x1]
  %v2988 = vperm.slane %v2986, 0
  %v2991 = vsel %vm78, %v2978, 0
  %v2994 = vsel %vm78, %v2979, 0
  %2996 = vmatpush.msra.mxu0 0.0
  %2997 = vmatpush.msra.mxu0 0.0
  %2998 = vmatpush.msra.mxu0 0.0
  %2999 = vmatpush.msra.mxu0 0.0
  %3000 = vmatpush.msra.mxu0 0.0
  %3001 = vmatpush.msra.mxu0 0.0
  %3002 = vmatpush.msra.mxu0 0.0
  %3003 = vmatpush.msra.mxu0 0.0
  %3004 = vmatpush.msra.mxu0 0.0
  %3005 = vmatpush.msra.mxu0 0.0
  %3006 = vmatpush.msra.mxu0 0.0
  %3007 = vmatpush.msra.mxu0 0.0
  %3008 = vmatpush.msra.mxu0 %v2984
  %3009 = vmatpush.msra.mxu0 %v2983
  %3010 = vmatpush.msra.mxu0 %v2982
  %3011 = vmatpush.msra.mxu0 %v2981
  %3012 = vmatmul.f32.gmra.mxu0 %v2991
  %v3013 = vpop.f32.mrf.mxu0
  %v3014 = vadd.f32 %v2988, %v3013
  %3015 = vmatmul.f32.gmra.mxu0 %v2994
  %v3016 = vpop.f32.mrf.mxu0
  %v3017 = vadd.f32 %v2988, %v3016
  %3018 = vdwg.mxu0
  %v3019 = vmul.f32 %v3014, %v3014
  %v3020 = vmul.f32 %v3017, %v3017
  %v3021 = vmul.f32 %v3014, %v3019
  %v3022 = vmul.f32 %v3017, %v3020
  %v3023 = vmul.f32 %v3021, 0.044715
  %v3024 = vmul.f32 %v3022, 0.044715
  %v3025 = vadd.f32 %v3014, %v3023
  %v3026 = vadd.f32 %v3017, %v3024
  %v3027 = vmul.f32 %v3025, 0.7978846
  %v3028 = vmul.f32 %v3026, 0.7978846
  %v3029 = vtanh.pop %v3027
  %v3030 = vtanh.pop %v3028
  %v3031 = vadd.f32 %v3029, 1.0
  %v3032 = vadd.f32 %v3030, 1.0
  %v3033 = vmul.f32 %v3031, 0.5
  %v3034 = vmul.f32 %v3032, 0.5
  %v3035 = vmul.f32 %v3014, %v3033
  %v3036 = vmul.f32 %v3017, %v3034
  %s3037 = scalar_lea.vmem %s16, 64
  %v3038 = vld [vmem:[%s3037] sm:$0xff]
  %v3039 = vld [vmem:[%s3037 + $0x8] sm:$0xff]
  %v3040 = vld [vmem:[%s3037 + $0x10] sm:$0xff]
  %v3041 = vld [vmem:[%s3037 + $0x18] sm:$0xff]
  %v3042 = vld [vmem:[%s3037 + $0x20] sm:$0xff]
  %v3043 = vld [vmem:[%s3037 + $0x28] sm:$0xff]
  %v3044 = vld [vmem:[%s3037 + $0x30] sm:$0xff]
  %v3045 = vld [vmem:[%s3037 + $0x38] sm:$0xff]
  %s3046 = scalar_lea.vmem %s17, 1
  %v3047 = vld [vmem:[%s3046] sm:$0x1]
  %v3049 = vperm.slane %v3047, 0
  %v3052 = vsel %vm1546, %v3035, 0
  %v3055 = vsel %vm1546, %v3036, 0
  %3057 = vmatpush.msra.mxu0 0.0
  %3058 = vmatpush.msra.mxu0 0.0
  %3059 = vmatpush.msra.mxu0 0.0
  %3060 = vmatpush.msra.mxu0 0.0
  %3061 = vmatpush.msra.mxu0 0.0
  %3062 = vmatpush.msra.mxu0 0.0
  %3063 = vmatpush.msra.mxu0 0.0
  %3064 = vmatpush.msra.mxu0 0.0
  %3065 = vmatpush.msra.mxu0 %v3045
  %3066 = vmatpush.msra.mxu0 %v3044
  %3067 = vmatpush.msra.mxu0 %v3043
  %3068 = vmatpush.msra.mxu0 %v3042
  %3069 = vmatpush.msra.mxu0 %v3041
  %3070 = vmatpush.msra.mxu0 %v3040
  %3071 = vmatpush.msra.mxu0 %v3039
  %3072 = vmatpush.msra.mxu0 %v3038
  %3073 = vmatmul.f32.gmra.mxu0 %v3052
  %v3074 = vpop.f32.mrf.mxu0
  %v3075 = vadd.f32 %v3049, %v3074
  %3076 = vmatmul.f32.gmra.mxu0 %v3055
  %v3077 = vpop.f32.mrf.mxu0
  %v3078 = vadd.f32 %v3049, %v3077
  %3079 = vdwg.mxu0
  %v3080 = vadd.f32 %v2978, %v3075
  %v3081 = vadd.f32 %v2979, %v3078
  %s3082 = scalar_lea.vmem %s18, 1
  %v3083 = vld [vmem:[%s3082] sm:$0x1]
  %s3084 = scalar_lea.vmem %s19, 1
  %v3085 = vld [vmem:[%s3084] sm:$0x1]
  %v3086 = vsel %vm78, %v3080, 0.0
  %3087 = vadd.xlane.f32.xlu0 %v3086
  %v3088 = vpop.xlane.xlu0 %3087
  %v3089 = vsel %vm78, %v3081, 0.0
  %3090 = vadd.xlane.f32.xlu0 %v3089
  %v3091 = vpop.xlane.xlu0 %3090
  %v3092 = vmul.f32 %v3088, %v91
  %v3093 = vmul.f32 %v3091, %v91
  %v3094 = vsub.f32 %v3080, %v3092
  %v3095 = vsub.f32 %v3081, %v3093
  %v3096 = vmul.f32 %v3094, %v3094
  %v3097 = vmul.f32 %v3095, %v3095
  %v3098 = vsel %vm78, %v3096, 0.0
  %3099 = vadd.xlane.f32.xlu0 %v3098
  %v3100 = vpop.xlane.xlu0 %3099
  %v3101 = vsel %vm78, %v3097, 0.0
  %3102 = vadd.xlane.f32.xlu0 %v3101
  %v3103 = vpop.xlane.xlu0 %3102
  %v3104 = vmul.f32 %v3100, %v91
  %v3105 = vmul.f32 %v3103, %v91
  %v3106 = vadd.f32 %v3104, 1e-12
  %v3107 = vadd.f32 %v3105, 1e-12
  %v3108 = vrsqrt.pop %v3106
  %v3109 = vmul.f32 %v3108, %v3106
  %v3110 = vmul.f32 %v3109, %v3108
  %v3111 = vmul.f32 0.5, %v3110
  %v3112 = vsub.f32 1.5, %v3111
  %v3113 = vmul.f32 %v3108, %v3112
  %vm3114 = vweird.f32 %v3106
  %vm3115 = vweird.f32 %v3108
  %vm3116 = vmor %vm3114, %vm3115
  %v3117 = vsel %vm3116, %v3108, %v3113
  %v3118 = vrsqrt.pop %v3107
  %v3119 = vmul.f32 %v3118, %v3107
  %v3120 = vmul.f32 %v3119, %v3118
  %v3121 = vmul.f32 0.5, %v3120
  %v3122 = vsub.f32 1.5, %v3121
  %v3123 = vmul.f32 %v3118, %v3122
  %vm3124 = vweird.f32 %v3107
  %vm3125 = vweird.f32 %v3118
  %vm3126 = vmor %vm3124, %vm3125
  %v3127 = vsel %vm3126, %v3118, %v3123
  %v3128 = vmul.f32 %v3094, %v3117
  %v3129 = vmul.f32 %v3095, %v3127
  %v3131 = vperm.slane %v3083, 0
  %v3133 = vmul.f32 %v3128, %v3131
  %v3134 = vmul.f32 %v3129, %v3131
  %v3136 = vperm.slane %v3085, 0
  %v3138 = vadd.f32 %v3133, %v3136
  %v3139 = vadd.f32 %v3134, %v3136
  %v3140 = vld [vmem:[%s20] sm:$0xff]
  %v3141 = vld [vmem:[%s20 + $0x8] sm:$0xff]
  %v3142 = vld [vmem:[%s20 + $0x10] sm:$0xff]
  %v3143 = vld [vmem:[%s20 + $0x18] sm:$0xff]
  %v3144 = vld [vmem:[%s21] sm:$0x1]
  %v3146 = vperm.slane %v3144, 0
  %v3149 = vsel %vm78, %v3138, 0
  %v3152 = vsel %vm78, %v3139, 0
  %3154 = vmatpush.msra.mxu0 0.0
  %3155 = vmatpush.msra.mxu0 0.0
  %3156 = vmatpush.msra.mxu0 0.0
  %3157 = vmatpush.msra.mxu0 0.0
  %3158 = vmatpush.msra.mxu0 0.0
  %3159 = vmatpush.msra.mxu0 0.0
  %3160 = vmatpush.msra.mxu0 0.0
  %3161 = vmatpush.msra.mxu0 0.0
  %3162 = vmatpush.msra.mxu0 0.0
  %3163 = vmatpush.msra.mxu0 0.0
  %3164 = vmatpush.msra.mxu0 0.0
  %3165 = vmatpush.msra.mxu0 0.0
  %3166 = vmatpush.msra.mxu0 %v3143
  %3167 = vmatpush.msra.mxu0 %v3142
  %3168 = vmatpush.msra.mxu0 %v3141
  %3169 = vmatpush.msra.mxu0 %v3140
  %3170 = vmatmul.f32.gmra.mxu0 %v3149
  %v3171 = vpop.f32.mrf.mxu0
  %v3172 = vadd.f32 %v3146, %v3171
  %3173 = vmatmul.f32.gmra.mxu0 %v3152
  %v3174 = vpop.f32.mrf.mxu0
  %v3175 = vadd.f32 %v3146, %v3174
  %3176 = vdwg.mxu0
  %3177 = vst [vmem:[%s22] sm:$0xff] %v3172
  %3178 = vst [vmem:[%s22 + $0x8] sm:$0xff] %v3175
  // Predicated region
  $region90: #{multitask_forward.1} parent=0 // pred_check
    _
  $region91: #{multitask_forward.1} parent=0 // pred_check_branch
    %3180 = sbr.rel (0) target = $region93
  $region92: #{multitask_forward.1} parent=0 // pred_region
    _
  $region93: #{multitask_forward.1} parent=0 // pred_fallthru
    _
  // Predicated region
  $region94: #{multitask_forward.1} parent=0 // pred_check
    _
  $region95: #{multitask_forward.1} parent=0 // pred_check_branch
    %3182 = sbr.rel (0) target = $region97
  $region96: #{multitask_forward.1} parent=0 // pred_region
    _
  $region97: #{multitask_forward.1} parent=0 // pred_fallthru
    _

</llo_original>
